<compile_context>
chip_gen: v7x
topology: tpu7x:2x2x1
jax: 0.10.0
libtpu: 0.0.40
codegen_flags: <defaults>
</compile_context>

<pallas_src>
import functools

import jax
import jax.numpy as jnp
import numpy as np
from jax.experimental import pallas as pl
from jax.experimental.pallas import tpu as pltpu


def _round_up(n, m):
    return (n + m - 1) // m * m


def _spatial_attention_kernel(x_ref, watt_ref, wf_ref, scale_ref, shift_ref,
                              o_ref, catp_ref, ypad_ref, patt_ref, pfus_ref,
                              *, H, W):
    C = x_ref.shape[0]
    Wp = W + 8                       # width stride: room for 4-pad on each side
    HWp = H * Wp

    x = x_ref[...].astype(jnp.float32)                  # (C, H*Wp), lane-dense

    # ---- channel-wise mean / max: single cross-sublane reductions ----------
    avg = jnp.mean(x, axis=0, keepdims=True)            # (1, H*Wp)
    mx = jnp.max(x, axis=0, keepdims=True)              # (1, H*Wp)
    cat = jnp.concatenate([avg, mx], axis=0)            # (2, H*Wp)

    # ---- zero-padded (avg,max) map, flat Wp-strided: pixel (i,j) sits at
    #      (i+4)*Wp + (j+4).  One shifted block write; border stays zero. ----
    catp_ref[...] = jnp.zeros_like(catp_ref)
    catp_ref[:, pl.ds(4 * Wp + 4, HWp)] = cat

    # ---- im2col for the fused 5x5/7x7/9x9 attention convolutions -----------
    # row (di*9+dj)*2 + c  <->  padded_c[i+di, j+dj]; each row is a plain
    # lane-offset slice of the flat padded map (no reshape needed).
    n_att = 2 * 81
    pad_att = patt_ref.shape[0] - n_att                 # K padded to mult. of 8
    if pad_att:
        patt_ref[pl.ds(n_att, pad_att), :] = jnp.zeros((pad_att, HWp),
                                                       jnp.float32)
    for di in range(9):
        for dj in range(9):
            tap = di * 9 + dj
            patt_ref[pl.ds(2 * tap, 2), :] = catp_ref[:, pl.ds(di * Wp + dj,
                                                               HWp)]

    # one MXU matmul replaces 310 scalar-broadcast VPU FMA taps
    att3 = jnp.dot(watt_ref[...], patt_ref[...],
                   preferred_element_type=jnp.float32)           # (3, H*Wp)
    att = jnp.sum(jax.nn.sigmoid(att3), axis=0, keepdims=True)   # (1, H*Wp)

    # f*att1 + f*att2 + f*att3 == f * (att1 + att2 + att3)
    y = x * att                                                  # (C, H*Wp)

    # ---- 3x3 C->C fusion conv: zero-padded y (pad=1), same flat trick ------
    ypad_ref[...] = jnp.zeros_like(ypad_ref)
    ypad_ref[:, pl.ds(Wp + 1, HWp)] = y

    n_fus = 9 * C
    pad_fus = pfus_ref.shape[0] - n_fus
    if pad_fus:
        pfus_ref[pl.ds(n_fus, pad_fus), :] = jnp.zeros((pad_fus, HWp),
                                                       jnp.float32)
    for di in range(3):
        for dj in range(3):
            tap = di * 3 + dj
            pfus_ref[pl.ds(tap * C, C), :] = ypad_ref[:, pl.ds(di * Wp + dj,
                                                               HWp)]

    out = jnp.dot(wf_ref[...], pfus_ref[...],
                  preferred_element_type=jnp.float32)            # (C, H*Wp)

    # folded conv-bias + BatchNorm(eval) + ReLU; single lane-dense store
    out = out * scale_ref[...] + shift_ref[...]
    o_ref[...] = jnp.maximum(out, 0.0).astype(o_ref.dtype)


def spatial_attention(x, w5, w7, w9, wf, bf,
                      gamma, beta, run_mean, run_var, eps=1e-5):
    B, C, H, W = x.shape
    Wp = W + 8
    HWp = H * Wp
    n_att_pad = _round_up(2 * 81, 8)
    n_fus_pad = _round_up(9 * C, 8)

    # ---- host-side (XLA) weight packing: pure layout, cheap -----------------
    def pad_to_9x9(w):                        # (1, 2, k, k) -> (2, 9, 9)
        k = w.shape[-1]
        p = (9 - k) // 2
        return jnp.pad(w[0], ((0, 0), (p, p), (p, p)))

    # fused attention weights -> (3, n_att_pad), column order (di, dj, c)
    w_att = jnp.stack([pad_to_9x9(w5), pad_to_9x9(w7), pad_to_9x9(w9)], 0)
    w_att = w_att.transpose(0, 2, 3, 1).reshape(3, 2 * 81)
    w_att = jnp.pad(w_att, ((0, 0), (0, n_att_pad - 2 * 81))).astype(jnp.float32)

    # fusion conv weights -> (C, n_fus_pad), column order (di, dj, ci)
    wf_mat = wf.transpose(0, 2, 3, 1).reshape(C, 9 * C)
    wf_mat = jnp.pad(wf_mat, ((0, 0), (0, n_fus_pad - 9 * C))).astype(jnp.float32)

    # fold conv bias + BatchNorm (eval mode) into per-channel scale / shift
    inv = gamma / jnp.sqrt(run_var + eps)
    scale = inv.reshape(C, 1).astype(jnp.float32)
    shift = ((bf - run_mean) * inv + beta).reshape(C, 1).astype(jnp.float32)

    # lane-dense, width-padded input slab: (B, C, H*Wp)
    x_wp = jnp.pad(x, ((0, 0), (0, 0), (0, 0), (0, Wp - W))).reshape(B, C, HWp)

    kernel = functools.partial(_spatial_attention_kernel, H=H, W=W)

    img_spec = pl.BlockSpec((None, C, HWp), lambda b: (b, 0, 0))

    def full_spec(shape):
        return pl.BlockSpec(shape, lambda b: (0,) * len(shape))

    out_wp = pl.pallas_call(
        kernel,
        out_shape=jax.ShapeDtypeStruct((B, C, HWp), x.dtype),
        grid=(B,),
        in_specs=[
            img_spec,                          # x: one image per grid step
            full_spec((3, n_att_pad)),         # fused attention weights (VMEM)
            full_spec((C, n_fus_pad)),         # fusion conv weights     (VMEM)
            full_spec((C, 1)),                 # folded BN scale
            full_spec((C, 1)),                 # folded BN shift + bias
        ],
        out_specs=img_spec,
        scratch_shapes=[
            pltpu.VMEM((2, (H + 8) * Wp + 8), jnp.float32),   # padded (avg,max)
            pltpu.VMEM((C, (H + 2) * Wp + 8), jnp.float32),   # padded y
            pltpu.VMEM((n_att_pad, HWp), jnp.float32),        # attention im2col
            pltpu.VMEM((n_fus_pad, HWp), jnp.float32),        # fusion im2col
        ],
        compiler_params=pltpu.CompilerParams(
            dimension_semantics=("parallel",),       # shard batch across TCs
            vmem_limit_bytes=32 * 1024 * 1024),
    )(x_wp, w_att, wf_mat, scale, shift)

    # strip the width padding (cheap XLA slice, outside the kernel)
    return out_wp.reshape(B, C, H, Wp)[:, :, :, :W]


def ref_forward(x, w5, w7, w9, wf, bf, gamma, beta, run_mean, run_var,
                eps=1e-5):
    """Plain-JAX reference (mirrors the PyTorch forward, BN in eval mode)."""
    avg = jnp.mean(x, axis=1, keepdims=True)
    mx = jnp.max(x, axis=1, keepdims=True)
    cat = jnp.concatenate([avg, mx], axis=1)

    def conv(inp, w, pad):
        return jax.lax.conv_general_dilated(
            inp, w, window_strides=(1, 1),
            padding=[(pad, pad), (pad, pad)],
            dimension_numbers=("NCHW", "OIHW", "NCHW"))

    a = (jax.nn.sigmoid(conv(cat, w5, 2))
         + jax.nn.sigmoid(conv(cat, w7, 3))
         + jax.nn.sigmoid(conv(cat, w9, 4)))
    s = x * a
    z = conv(s, wf, 1) + bf[None, :, None, None]
    z = ((z - run_mean[None, :, None, None])
         / jnp.sqrt(run_var[None, :, None, None] + eps)
         * gamma[None, :, None, None] + beta[None, :, None, None])
    return jnp.maximum(z, 0.0)


if __name__ == "__main__":
    B, C, H, W = 2, 4, 16, 16            # embed_dim = 4
    key = jax.random.PRNGKey(0)
    ks = jax.random.split(key, 6)

    x = jax.random.normal(ks[0], (B, C, H, W), jnp.float32)
    w5 = jax.random.normal(ks[1], (1, 2, 5, 5), jnp.float32) * 0.1
    w7 = jax.random.normal(ks[2], (1, 2, 7, 7), jnp.float32) * 0.1
    w9 = jax.random.normal(ks[3], (1, 2, 9, 9), jnp.float32) * 0.1
    wf = jax.random.normal(ks[4], (C, C, 3, 3), jnp.float32) * 0.1
    bf = jax.random.normal(ks[5], (C,), jnp.float32) * 0.1
    gamma = jnp.ones((C,), jnp.float32)
    beta = jnp.zeros((C,), jnp.float32)
    run_mean = jnp.zeros((C,), jnp.float32)
    run_var = jnp.ones((C,), jnp.float32)

    # TODO(synk): BatchNorm2d is evaluated in inference mode (running stats
    # folded into a per-channel scale/shift); training-mode batch statistics
    # are not computed inside the kernel.
    out = jax.jit(spatial_attention)(x, w5, w7, w9, wf, bf,
                                     gamma, beta, run_mean, run_var)
    out = jax.block_until_ready(out)

    ref = ref_forward(x, w5, w7, w9, wf, bf, gamma, beta, run_mean, run_var)
    np.testing.assert_allclose(np.asarray(out), np.asarray(ref),
                               atol=2e-3, rtol=2e-3)
    print("KERNEL_OK")
</pallas_src>

<mosaic_0001>
module attributes {stable_mosaic.version = 11 : i64} {
  func.func @_spatial_attention_kernel(%arg0: i32, %arg1: memref<1x4x384xf32, #tpu.memory_space<vmem>>, %arg2: memref<3x168xf32, #tpu.memory_space<vmem>>, %arg3: memref<4x40xf32, #tpu.memory_space<vmem>>, %arg4: memref<4x1xf32, #tpu.memory_space<vmem>>, %arg5: memref<4x1xf32, #tpu.memory_space<vmem>>, %arg6: memref<1x4x384xf32, #tpu.memory_space<vmem>>, %arg7: memref<2x584xf32, #tpu.memory_space<vmem>>, %arg8: memref<4x440xf32, #tpu.memory_space<vmem>>, %arg9: memref<168x384xf32, #tpu.memory_space<vmem>>, %arg10: memref<40x384xf32, #tpu.memory_space<vmem>>) attributes {dimension_semantics = [#tpu.dimension_semantics<parallel>], iteration_bounds = array<i64: 2>, scalar_prefetch = 0 : i64, scratch_operands = 4 : i64, tpu.core_type = #tpu.core_type<tc>, window_params = [{transform_indices = @transform_0, window_bounds = array<i64: 1, 4, 384>}, {pipeline_mode = #tpu.pipeline_mode<synchronous>, transform_indices = @transform_1, window_bounds = array<i64: 3, 168>}, {pipeline_mode = #tpu.pipeline_mode<synchronous>, transform_indices = @transform_2, window_bounds = array<i64: 4, 40>}, {pipeline_mode = #tpu.pipeline_mode<synchronous>, transform_indices = @transform_3, window_bounds = array<i64: 4, 1>}, {pipeline_mode = #tpu.pipeline_mode<synchronous>, transform_indices = @transform_4, window_bounds = array<i64: 4, 1>}, {transform_indices = @transform_5, window_bounds = array<i64: 1, 4, 384>}]} {
    %c0 = arith.constant 0 : index
    %c0_0 = arith.constant 0 : index
    %c0_1 = arith.constant 0 : index
    %0 = vector.load %arg1[%c0, %c0_0, %c0_1] : memref<1x4x384xf32, #tpu.memory_space<vmem>>, vector<1x4x384xf32>
    %1 = vector.shape_cast %0 : vector<1x4x384xf32> to vector<4x384xf32>
    %cst = arith.constant dense<0.000000e+00> : vector<384xf32>
    %2 = vector.multi_reduction <add>, %1, %cst [0] : vector<4x384xf32> to vector<384xf32>
    %3 = vector.shape_cast %2 : vector<384xf32> to vector<1x384xf32>
    %cst_2 = arith.constant 4.000000e+00 : f32
    %4 = vector.broadcast %cst_2 : f32 to vector<1x384xf32>
    %5 = arith.divf %3, %4 : vector<1x384xf32>
    %cst_3 = arith.constant dense<0xFF800000> : vector<384xf32>
    %6 = vector.multi_reduction <maximumf>, %1, %cst_3 [0] : vector<4x384xf32> to vector<384xf32>
    %7 = vector.shape_cast %6 : vector<384xf32> to vector<1x384xf32>
    %8 = tpu.concatenate %5, %7 in 0 : vector<1x384xf32>, vector<1x384xf32> -> vector<2x384xf32>
    %cst_4 = arith.constant 0.000000e+00 : f32
    %9 = vector.broadcast %cst_4 : f32 to vector<2x584xf32>
    %c0_5 = arith.constant 0 : index
    %c0_6 = arith.constant 0 : index
    %10 = vector.load %arg7[%c0_5, %c0_6] : memref<2x584xf32, #tpu.memory_space<vmem>>, vector<2x584xf32>
    tpu.vector_store %arg7[%c0_5, %c0_6], %9 {strides = array<i32>} : memref<2x584xf32, #tpu.memory_space<vmem>>, vector<2x584xf32>,
    %c0_7 = arith.constant 0 : index
    %c100 = arith.constant 100 : index
    %11 = vector.load %arg7[%c0_7, %c100] : memref<2x584xf32, #tpu.memory_space<vmem>>, vector<2x384xf32>
    tpu.vector_store %arg7[%c0_7, %c100], %8 {strides = array<i32>} : memref<2x584xf32, #tpu.memory_space<vmem>>, vector<2x384xf32>,
    %cst_8 = arith.constant 0.000000e+00 : f32
    %12 = vector.broadcast %cst_8 : f32 to vector<6x384xf32>
    %c162 = arith.constant 162 : index
    %c0_9 = arith.constant 0 : index
    %13 = vector.load %arg9[%c162, %c0_9] : memref<168x384xf32, #tpu.memory_space<vmem>>, vector<6x384xf32>
    tpu.vector_store %arg9[%c162, %c0_9], %12 {strides = array<i32>} : memref<168x384xf32, #tpu.memory_space<vmem>>, vector<6x384xf32>,
    %c0_10 = arith.constant 0 : index
    %c0_11 = arith.constant 0 : index
    %14 = vector.load %arg7[%c0_10, %c0_11] : memref<2x584xf32, #tpu.memory_space<vmem>>, vector<2x384xf32>
    %c0_12 = arith.constant 0 : index
    %c0_13 = arith.constant 0 : index
    %15 = vector.load %arg9[%c0_12, %c0_13] : memref<168x384xf32, #tpu.memory_space<vmem>>, vector<2x384xf32>
    tpu.vector_store %arg9[%c0_12, %c0_13], %14 {strides = array<i32>} : memref<168x384xf32, #tpu.memory_space<vmem>>, vector<2x384xf32>,
    %c0_14 = arith.constant 0 : index
    %c1 = arith.constant 1 : index
    %16 = vector.load %arg7[%c0_14, %c1] : memref<2x584xf32, #tpu.memory_space<vmem>>, vector<2x384xf32>
    %c2 = arith.constant 2 : index
    %c0_15 = arith.constant 0 : index
    %17 = vector.load %arg9[%c2, %c0_15] : memref<168x384xf32, #tpu.memory_space<vmem>>, vector<2x384xf32>
    tpu.vector_store %arg9[%c2, %c0_15], %16 {strides = array<i32>} : memref<168x384xf32, #tpu.memory_space<vmem>>, vector<2x384xf32>,
    %c0_16 = arith.constant 0 : index
    %c2_17 = arith.constant 2 : index
    %18 = vector.load %arg7[%c0_16, %c2_17] : memref<2x584xf32, #tpu.memory_space<vmem>>, vector<2x384xf32>
    %c4 = arith.constant 4 : index
    %c0_18 = arith.constant 0 : index
    %19 = vector.load %arg9[%c4, %c0_18] : memref<168x384xf32, #tpu.memory_space<vmem>>, vector<2x384xf32>
    tpu.vector_store %arg9[%c4, %c0_18], %18 {strides = array<i32>} : memref<168x384xf32, #tpu.memory_space<vmem>>, vector<2x384xf32>,
    %c0_19 = arith.constant 0 : index
    %c3 = arith.constant 3 : index
    %20 = vector.load %arg7[%c0_19, %c3] : memref<2x584xf32, #tpu.memory_space<vmem>>, vector<2x384xf32>
    %c6 = arith.constant 6 : index
    %c0_20 = arith.constant 0 : index
    %21 = vector.load %arg9[%c6, %c0_20] : memref<168x384xf32, #tpu.memory_space<vmem>>, vector<2x384xf32>
    tpu.vector_store %arg9[%c6, %c0_20], %20 {strides = array<i32>} : memref<168x384xf32, #tpu.memory_space<vmem>>, vector<2x384xf32>,
    %c0_21 = arith.constant 0 : index
    %c4_22 = arith.constant 4 : index
    %22 = vector.load %arg7[%c0_21, %c4_22] : memref<2x584xf32, #tpu.memory_space<vmem>>, vector<2x384xf32>
    %c8 = arith.constant 8 : index
    %c0_23 = arith.constant 0 : index
    %23 = vector.load %arg9[%c8, %c0_23] : memref<168x384xf32, #tpu.memory_space<vmem>>, vector<2x384xf32>
    tpu.vector_store %arg9[%c8, %c0_23], %22 {strides = array<i32>} : memref<168x384xf32, #tpu.memory_space<vmem>>, vector<2x384xf32>,
    %c0_24 = arith.constant 0 : index
    %c5 = arith.constant 5 : index
    %24 = vector.load %arg7[%c0_24, %c5] : memref<2x584xf32, #tpu.memory_space<vmem>>, vector<2x384xf32>
    %c10 = arith.constant 10 : index
    %c0_25 = arith.constant 0 : index
    %25 = vector.load %arg9[%c10, %c0_25] : memref<168x384xf32, #tpu.memory_space<vmem>>, vector<2x384xf32>
    tpu.vector_store %arg9[%c10, %c0_25], %24 {strides = array<i32>} : memref<168x384xf32, #tpu.memory_space<vmem>>, vector<2x384xf32>,
    %c0_26 = arith.constant 0 : index
    %c6_27 = arith.constant 6 : index
    %26 = vector.load %arg7[%c0_26, %c6_27] : memref<2x584xf32, #tpu.memory_space<vmem>>, vector<2x384xf32>
    %c12 = arith.constant 12 : index
    %c0_28 = arith.constant 0 : index
    %27 = vector.load %arg9[%c12, %c0_28] : memref<168x384xf32, #tpu.memory_space<vmem>>, vector<2x384xf32>
    tpu.vector_store %arg9[%c12, %c0_28], %26 {strides = array<i32>} : memref<168x384xf32, #tpu.memory_space<vmem>>, vector<2x384xf32>,
    %c0_29 = arith.constant 0 : index
    %c7 = arith.constant 7 : index
    %28 = vector.load %arg7[%c0_29, %c7] : memref<2x584xf32, #tpu.memory_space<vmem>>, vector<2x384xf32>
    %c14 = arith.constant 14 : index
    %c0_30 = arith.constant 0 : index
    %29 = vector.load %arg9[%c14, %c0_30] : memref<168x384xf32, #tpu.memory_space<vmem>>, vector<2x384xf32>
    tpu.vector_store %arg9[%c14, %c0_30], %28 {strides = array<i32>} : memref<168x384xf32, #tpu.memory_space<vmem>>, vector<2x384xf32>,
    %c0_31 = arith.constant 0 : index
    %c8_32 = arith.constant 8 : index
    %30 = vector.load %arg7[%c0_31, %c8_32] : memref<2x584xf32, #tpu.memory_space<vmem>>, vector<2x384xf32>
    %c16 = arith.constant 16 : index
    %c0_33 = arith.constant 0 : index
    %31 = vector.load %arg9[%c16, %c0_33] : memref<168x384xf32, #tpu.memory_space<vmem>>, vector<2x384xf32>
    tpu.vector_store %arg9[%c16, %c0_33], %30 {strides = array<i32>} : memref<168x384xf32, #tpu.memory_space<vmem>>, vector<2x384xf32>,
    %c0_34 = arith.constant 0 : index
    %c24 = arith.constant 24 : index
    %32 = vector.load %arg7[%c0_34, %c24] : memref<2x584xf32, #tpu.memory_space<vmem>>, vector<2x384xf32>
    %c18 = arith.constant 18 : index
    %c0_35 = arith.constant 0 : index
    %33 = vector.load %arg9[%c18, %c0_35] : memref<168x384xf32, #tpu.memory_space<vmem>>, vector<2x384xf32>
    tpu.vector_store %arg9[%c18, %c0_35], %32 {strides = array<i32>} : memref<168x384xf32, #tpu.memory_space<vmem>>, vector<2x384xf32>,
    %c0_36 = arith.constant 0 : index
    %c25 = arith.constant 25 : index
    %34 = vector.load %arg7[%c0_36, %c25] : memref<2x584xf32, #tpu.memory_space<vmem>>, vector<2x384xf32>
    %c20 = arith.constant 20 : index
    %c0_37 = arith.constant 0 : index
    %35 = vector.load %arg9[%c20, %c0_37] : memref<168x384xf32, #tpu.memory_space<vmem>>, vector<2x384xf32>
    tpu.vector_store %arg9[%c20, %c0_37], %34 {strides = array<i32>} : memref<168x384xf32, #tpu.memory_space<vmem>>, vector<2x384xf32>,
    %c0_38 = arith.constant 0 : index
    %c26 = arith.constant 26 : index
    %36 = vector.load %arg7[%c0_38, %c26] : memref<2x584xf32, #tpu.memory_space<vmem>>, vector<2x384xf32>
    %c22 = arith.constant 22 : index
    %c0_39 = arith.constant 0 : index
    %37 = vector.load %arg9[%c22, %c0_39] : memref<168x384xf32, #tpu.memory_space<vmem>>, vector<2x384xf32>
    tpu.vector_store %arg9[%c22, %c0_39], %36 {strides = array<i32>} : memref<168x384xf32, #tpu.memory_space<vmem>>, vector<2x384xf32>,
    %c0_40 = arith.constant 0 : index
    %c27 = arith.constant 27 : index
    %38 = vector.load %arg7[%c0_40, %c27] : memref<2x584xf32, #tpu.memory_space<vmem>>, vector<2x384xf32>
    %c24_41 = arith.constant 24 : index
    %c0_42 = arith.constant 0 : index
    %39 = vector.load %arg9[%c24_41, %c0_42] : memref<168x384xf32, #tpu.memory_space<vmem>>, vector<2x384xf32>
    tpu.vector_store %arg9[%c24_41, %c0_42], %38 {strides = array<i32>} : memref<168x384xf32, #tpu.memory_space<vmem>>, vector<2x384xf32>,
    %c0_43 = arith.constant 0 : index
    %c28 = arith.constant 28 : index
    %40 = vector.load %arg7[%c0_43, %c28] : memref<2x584xf32, #tpu.memory_space<vmem>>, vector<2x384xf32>
    %c26_44 = arith.constant 26 : index
    %c0_45 = arith.constant 0 : index
    %41 = vector.load %arg9[%c26_44, %c0_45] : memref<168x384xf32, #tpu.memory_space<vmem>>, vector<2x384xf32>
    tpu.vector_store %arg9[%c26_44, %c0_45], %40 {strides = array<i32>} : memref<168x384xf32, #tpu.memory_space<vmem>>, vector<2x384xf32>,
    %c0_46 = arith.constant 0 : index
    %c29 = arith.constant 29 : index
    %42 = vector.load %arg7[%c0_46, %c29] : memref<2x584xf32, #tpu.memory_space<vmem>>, vector<2x384xf32>
    %c28_47 = arith.constant 28 : index
    %c0_48 = arith.constant 0 : index
    %43 = vector.load %arg9[%c28_47, %c0_48] : memref<168x384xf32, #tpu.memory_space<vmem>>, vector<2x384xf32>
    tpu.vector_store %arg9[%c28_47, %c0_48], %42 {strides = array<i32>} : memref<168x384xf32, #tpu.memory_space<vmem>>, vector<2x384xf32>,
    %c0_49 = arith.constant 0 : index
    %c30 = arith.constant 30 : index
    %44 = vector.load %arg7[%c0_49, %c30] : memref<2x584xf32, #tpu.memory_space<vmem>>, vector<2x384xf32>
    %c30_50 = arith.constant 30 : index
    %c0_51 = arith.constant 0 : index
    %45 = vector.load %arg9[%c30_50, %c0_51] : memref<168x384xf32, #tpu.memory_space<vmem>>, vector<2x384xf32>
    tpu.vector_store %arg9[%c30_50, %c0_51], %44 {strides = array<i32>} : memref<168x384xf32, #tpu.memory_space<vmem>>, vector<2x384xf32>,
    %c0_52 = arith.constant 0 : index
    %c31 = arith.constant 31 : index
    %46 = vector.load %arg7[%c0_52, %c31] : memref<2x584xf32, #tpu.memory_space<vmem>>, vector<2x384xf32>
    %c32 = arith.constant 32 : index
    %c0_53 = arith.constant 0 : index
    %47 = vector.load %arg9[%c32, %c0_53] : memref<168x384xf32, #tpu.memory_space<vmem>>, vector<2x384xf32>
    tpu.vector_store %arg9[%c32, %c0_53], %46 {strides = array<i32>} : memref<168x384xf32, #tpu.memory_space<vmem>>, vector<2x384xf32>,
    %c0_54 = arith.constant 0 : index
    %c32_55 = arith.constant 32 : index
    %48 = vector.load %arg7[%c0_54, %c32_55] : memref<2x584xf32, #tpu.memory_space<vmem>>, vector<2x384xf32>
    %c34 = arith.constant 34 : index
    %c0_56 = arith.constant 0 : index
    %49 = vector.load %arg9[%c34, %c0_56] : memref<168x384xf32, #tpu.memory_space<vmem>>, vector<2x384xf32>
    tpu.vector_store %arg9[%c34, %c0_56], %48 {strides = array<i32>} : memref<168x384xf32, #tpu.memory_space<vmem>>, vector<2x384xf32>,
    %c0_57 = arith.constant 0 : index
    %c48 = arith.constant 48 : index
    %50 = vector.load %arg7[%c0_57, %c48] : memref<2x584xf32, #tpu.memory_space<vmem>>, vector<2x384xf32>
    %c36 = arith.constant 36 : index
    %c0_58 = arith.constant 0 : index
    %51 = vector.load %arg9[%c36, %c0_58] : memref<168x384xf32, #tpu.memory_space<vmem>>, vector<2x384xf32>
    tpu.vector_store %arg9[%c36, %c0_58], %50 {strides = array<i32>} : memref<168x384xf32, #tpu.memory_space<vmem>>, vector<2x384xf32>,
    %c0_59 = arith.constant 0 : index
    %c49 = arith.constant 49 : index
    %52 = vector.load %arg7[%c0_59, %c49] : memref<2x584xf32, #tpu.memory_space<vmem>>, vector<2x384xf32>
    %c38 = arith.constant 38 : index
    %c0_60 = arith.constant 0 : index
    %53 = vector.load %arg9[%c38, %c0_60] : memref<168x384xf32, #tpu.memory_space<vmem>>, vector<2x384xf32>
    tpu.vector_store %arg9[%c38, %c0_60], %52 {strides = array<i32>} : memref<168x384xf32, #tpu.memory_space<vmem>>, vector<2x384xf32>,
    %c0_61 = arith.constant 0 : index
    %c50 = arith.constant 50 : index
    %54 = vector.load %arg7[%c0_61, %c50] : memref<2x584xf32, #tpu.memory_space<vmem>>, vector<2x384xf32>
    %c40 = arith.constant 40 : index
    %c0_62 = arith.constant 0 : index
    %55 = vector.load %arg9[%c40, %c0_62] : memref<168x384xf32, #tpu.memory_space<vmem>>, vector<2x384xf32>
    tpu.vector_store %arg9[%c40, %c0_62], %54 {strides = array<i32>} : memref<168x384xf32, #tpu.memory_space<vmem>>, vector<2x384xf32>,
    %c0_63 = arith.constant 0 : index
    %c51 = arith.constant 51 : index
    %56 = vector.load %arg7[%c0_63, %c51] : memref<2x584xf32, #tpu.memory_space<vmem>>, vector<2x384xf32>
    %c42 = arith.constant 42 : index
    %c0_64 = arith.constant 0 : index
    %57 = vector.load %arg9[%c42, %c0_64] : memref<168x384xf32, #tpu.memory_space<vmem>>, vector<2x384xf32>
    tpu.vector_store %arg9[%c42, %c0_64], %56 {strides = array<i32>} : memref<168x384xf32, #tpu.memory_space<vmem>>, vector<2x384xf32>,
    %c0_65 = arith.constant 0 : index
    %c52 = arith.constant 52 : index
    %58 = vector.load %arg7[%c0_65, %c52] : memref<2x584xf32, #tpu.memory_space<vmem>>, vector<2x384xf32>
    %c44 = arith.constant 44 : index
    %c0_66 = arith.constant 0 : index
    %59 = vector.load %arg9[%c44, %c0_66] : memref<168x384xf32, #tpu.memory_space<vmem>>, vector<2x384xf32>
    tpu.vector_store %arg9[%c44, %c0_66], %58 {strides = array<i32>} : memref<168x384xf32, #tpu.memory_space<vmem>>, vector<2x384xf32>,
    %c0_67 = arith.constant 0 : index
    %c53 = arith.constant 53 : index
    %60 = vector.load %arg7[%c0_67, %c53] : memref<2x584xf32, #tpu.memory_space<vmem>>, vector<2x384xf32>
    %c46 = arith.constant 46 : index
    %c0_68 = arith.constant 0 : index
    %61 = vector.load %arg9[%c46, %c0_68] : memref<168x384xf32, #tpu.memory_space<vmem>>, vector<2x384xf32>
    tpu.vector_store %arg9[%c46, %c0_68], %60 {strides = array<i32>} : memref<168x384xf32, #tpu.memory_space<vmem>>, vector<2x384xf32>,
    %c0_69 = arith.constant 0 : index
    %c54 = arith.constant 54 : index
    %62 = vector.load %arg7[%c0_69, %c54] : memref<2x584xf32, #tpu.memory_space<vmem>>, vector<2x384xf32>
    %c48_70 = arith.constant 48 : index
    %c0_71 = arith.constant 0 : index
    %63 = vector.load %arg9[%c48_70, %c0_71] : memref<168x384xf32, #tpu.memory_space<vmem>>, vector<2x384xf32>
    tpu.vector_store %arg9[%c48_70, %c0_71], %62 {strides = array<i32>} : memref<168x384xf32, #tpu.memory_space<vmem>>, vector<2x384xf32>,
    %c0_72 = arith.constant 0 : index
    %c55 = arith.constant 55 : index
    %64 = vector.load %arg7[%c0_72, %c55] : memref<2x584xf32, #tpu.memory_space<vmem>>, vector<2x384xf32>
    %c50_73 = arith.constant 50 : index
    %c0_74 = arith.constant 0 : index
    %65 = vector.load %arg9[%c50_73, %c0_74] : memref<168x384xf32, #tpu.memory_space<vmem>>, vector<2x384xf32>
    tpu.vector_store %arg9[%c50_73, %c0_74], %64 {strides = array<i32>} : memref<168x384xf32, #tpu.memory_space<vmem>>, vector<2x384xf32>,
    %c0_75 = arith.constant 0 : index
    %c56 = arith.constant 56 : index
    %66 = vector.load %arg7[%c0_75, %c56] : memref<2x584xf32, #tpu.memory_space<vmem>>, vector<2x384xf32>
    %c52_76 = arith.constant 52 : index
    %c0_77 = arith.constant 0 : index
    %67 = vector.load %arg9[%c52_76, %c0_77] : memref<168x384xf32, #tpu.memory_space<vmem>>, vector<2x384xf32>
    tpu.vector_store %arg9[%c52_76, %c0_77], %66 {strides = array<i32>} : memref<168x384xf32, #tpu.memory_space<vmem>>, vector<2x384xf32>,
    %c0_78 = arith.constant 0 : index
    %c72 = arith.constant 72 : index
    %68 = vector.load %arg7[%c0_78, %c72] : memref<2x584xf32, #tpu.memory_space<vmem>>, vector<2x384xf32>
    %c54_79 = arith.constant 54 : index
    %c0_80 = arith.constant 0 : index
    %69 = vector.load %arg9[%c54_79, %c0_80] : memref<168x384xf32, #tpu.memory_space<vmem>>, vector<2x384xf32>
    tpu.vector_store %arg9[%c54_79, %c0_80], %68 {strides = array<i32>} : memref<168x384xf32, #tpu.memory_space<vmem>>, vector<2x384xf32>,
    %c0_81 = arith.constant 0 : index
    %c73 = arith.constant 73 : index
    %70 = vector.load %arg7[%c0_81, %c73] : memref<2x584xf32, #tpu.memory_space<vmem>>, vector<2x384xf32>
    %c56_82 = arith.constant 56 : index
    %c0_83 = arith.constant 0 : index
    %71 = vector.load %arg9[%c56_82, %c0_83] : memref<168x384xf32, #tpu.memory_space<vmem>>, vector<2x384xf32>
    tpu.vector_store %arg9[%c56_82, %c0_83], %70 {strides = array<i32>} : memref<168x384xf32, #tpu.memory_space<vmem>>, vector<2x384xf32>,
    %c0_84 = arith.constant 0 : index
    %c74 = arith.constant 74 : index
    %72 = vector.load %arg7[%c0_84, %c74] : memref<2x584xf32, #tpu.memory_space<vmem>>, vector<2x384xf32>
    %c58 = arith.constant 58 : index
    %c0_85 = arith.constant 0 : index
    %73 = vector.load %arg9[%c58, %c0_85] : memref<168x384xf32, #tpu.memory_space<vmem>>, vector<2x384xf32>
    tpu.vector_store %arg9[%c58, %c0_85], %72 {strides = array<i32>} : memref<168x384xf32, #tpu.memory_space<vmem>>, vector<2x384xf32>,
    %c0_86 = arith.constant 0 : index
    %c75 = arith.constant 75 : index
    %74 = vector.load %arg7[%c0_86, %c75] : memref<2x584xf32, #tpu.memory_space<vmem>>, vector<2x384xf32>
    %c60 = arith.constant 60 : index
    %c0_87 = arith.constant 0 : index
    %75 = vector.load %arg9[%c60, %c0_87] : memref<168x384xf32, #tpu.memory_space<vmem>>, vector<2x384xf32>
    tpu.vector_store %arg9[%c60, %c0_87], %74 {strides = array<i32>} : memref<168x384xf32, #tpu.memory_space<vmem>>, vector<2x384xf32>,
    %c0_88 = arith.constant 0 : index
    %c76 = arith.constant 76 : index
    %76 = vector.load %arg7[%c0_88, %c76] : memref<2x584xf32, #tpu.memory_space<vmem>>, vector<2x384xf32>
    %c62 = arith.constant 62 : index
    %c0_89 = arith.constant 0 : index
    %77 = vector.load %arg9[%c62, %c0_89] : memref<168x384xf32, #tpu.memory_space<vmem>>, vector<2x384xf32>
    tpu.vector_store %arg9[%c62, %c0_89], %76 {strides = array<i32>} : memref<168x384xf32, #tpu.memory_space<vmem>>, vector<2x384xf32>,
    %c0_90 = arith.constant 0 : index
    %c77 = arith.constant 77 : index
    %78 = vector.load %arg7[%c0_90, %c77] : memref<2x584xf32, #tpu.memory_space<vmem>>, vector<2x384xf32>
    %c64 = arith.constant 64 : index
    %c0_91 = arith.constant 0 : index
    %79 = vector.load %arg9[%c64, %c0_91] : memref<168x384xf32, #tpu.memory_space<vmem>>, vector<2x384xf32>
    tpu.vector_store %arg9[%c64, %c0_91], %78 {strides = array<i32>} : memref<168x384xf32, #tpu.memory_space<vmem>>, vector<2x384xf32>,
    %c0_92 = arith.constant 0 : index
    %c78 = arith.constant 78 : index
    %80 = vector.load %arg7[%c0_92, %c78] : memref<2x584xf32, #tpu.memory_space<vmem>>, vector<2x384xf32>
    %c66 = arith.constant 66 : index
    %c0_93 = arith.constant 0 : index
    %81 = vector.load %arg9[%c66, %c0_93] : memref<168x384xf32, #tpu.memory_space<vmem>>, vector<2x384xf32>
    tpu.vector_store %arg9[%c66, %c0_93], %80 {strides = array<i32>} : memref<168x384xf32, #tpu.memory_space<vmem>>, vector<2x384xf32>,
    %c0_94 = arith.constant 0 : index
    %c79 = arith.constant 79 : index
    %82 = vector.load %arg7[%c0_94, %c79] : memref<2x584xf32, #tpu.memory_space<vmem>>, vector<2x384xf32>
    %c68 = arith.constant 68 : index
    %c0_95 = arith.constant 0 : index
    %83 = vector.load %arg9[%c68, %c0_95] : memref<168x384xf32, #tpu.memory_space<vmem>>, vector<2x384xf32>
    tpu.vector_store %arg9[%c68, %c0_95], %82 {strides = array<i32>} : memref<168x384xf32, #tpu.memory_space<vmem>>, vector<2x384xf32>,
    %c0_96 = arith.constant 0 : index
    %c80 = arith.constant 80 : index
    %84 = vector.load %arg7[%c0_96, %c80] : memref<2x584xf32, #tpu.memory_space<vmem>>, vector<2x384xf32>
    %c70 = arith.constant 70 : index
    %c0_97 = arith.constant 0 : index
    %85 = vector.load %arg9[%c70, %c0_97] : memref<168x384xf32, #tpu.memory_space<vmem>>, vector<2x384xf32>
    tpu.vector_store %arg9[%c70, %c0_97], %84 {strides = array<i32>} : memref<168x384xf32, #tpu.memory_space<vmem>>, vector<2x384xf32>,
    %c0_98 = arith.constant 0 : index
    %c96 = arith.constant 96 : index
    %86 = vector.load %arg7[%c0_98, %c96] : memref<2x584xf32, #tpu.memory_space<vmem>>, vector<2x384xf32>
    %c72_99 = arith.constant 72 : index
    %c0_100 = arith.constant 0 : index
    %87 = vector.load %arg9[%c72_99, %c0_100] : memref<168x384xf32, #tpu.memory_space<vmem>>, vector<2x384xf32>
    tpu.vector_store %arg9[%c72_99, %c0_100], %86 {strides = array<i32>} : memref<168x384xf32, #tpu.memory_space<vmem>>, vector<2x384xf32>,
    %c0_101 = arith.constant 0 : index
    %c97 = arith.constant 97 : index
    %88 = vector.load %arg7[%c0_101, %c97] : memref<2x584xf32, #tpu.memory_space<vmem>>, vector<2x384xf32>
    %c74_102 = arith.constant 74 : index
    %c0_103 = arith.constant 0 : index
    %89 = vector.load %arg9[%c74_102, %c0_103] : memref<168x384xf32, #tpu.memory_space<vmem>>, vector<2x384xf32>
    tpu.vector_store %arg9[%c74_102, %c0_103], %88 {strides = array<i32>} : memref<168x384xf32, #tpu.memory_space<vmem>>, vector<2x384xf32>,
    %c0_104 = arith.constant 0 : index
    %c98 = arith.constant 98 : index
    %90 = vector.load %arg7[%c0_104, %c98] : memref<2x584xf32, #tpu.memory_space<vmem>>, vector<2x384xf32>
    %c76_105 = arith.constant 76 : index
    %c0_106 = arith.constant 0 : index
    %91 = vector.load %arg9[%c76_105, %c0_106] : memref<168x384xf32, #tpu.memory_space<vmem>>, vector<2x384xf32>
    tpu.vector_store %arg9[%c76_105, %c0_106], %90 {strides = array<i32>} : memref<168x384xf32, #tpu.memory_space<vmem>>, vector<2x384xf32>,
    %c0_107 = arith.constant 0 : index
    %c99 = arith.constant 99 : index
    %92 = vector.load %arg7[%c0_107, %c99] : memref<2x584xf32, #tpu.memory_space<vmem>>, vector<2x384xf32>
    %c78_108 = arith.constant 78 : index
    %c0_109 = arith.constant 0 : index
    %93 = vector.load %arg9[%c78_108, %c0_109] : memref<168x384xf32, #tpu.memory_space<vmem>>, vector<2x384xf32>
    tpu.vector_store %arg9[%c78_108, %c0_109], %92 {strides = array<i32>} : memref<168x384xf32, #tpu.memory_space<vmem>>, vector<2x384xf32>,
    %c0_110 = arith.constant 0 : index
    %c100_111 = arith.constant 100 : index
    %94 = vector.load %arg7[%c0_110, %c100_111] : memref<2x584xf32, #tpu.memory_space<vmem>>, vector<2x384xf32>
    %c80_112 = arith.constant 80 : index
    %c0_113 = arith.constant 0 : index
    %95 = vector.load %arg9[%c80_112, %c0_113] : memref<168x384xf32, #tpu.memory_space<vmem>>, vector<2x384xf32>
    tpu.vector_store %arg9[%c80_112, %c0_113], %94 {strides = array<i32>} : memref<168x384xf32, #tpu.memory_space<vmem>>, vector<2x384xf32>,
    %c0_114 = arith.constant 0 : index
    %c101 = arith.constant 101 : index
    %96 = vector.load %arg7[%c0_114, %c101] : memref<2x584xf32, #tpu.memory_space<vmem>>, vector<2x384xf32>
    %c82 = arith.constant 82 : index
    %c0_115 = arith.constant 0 : index
    %97 = vector.load %arg9[%c82, %c0_115] : memref<168x384xf32, #tpu.memory_space<vmem>>, vector<2x384xf32>
    tpu.vector_store %arg9[%c82, %c0_115], %96 {strides = array<i32>} : memref<168x384xf32, #tpu.memory_space<vmem>>, vector<2x384xf32>,
    %c0_116 = arith.constant 0 : index
    %c102 = arith.constant 102 : index
    %98 = vector.load %arg7[%c0_116, %c102] : memref<2x584xf32, #tpu.memory_space<vmem>>, vector<2x384xf32>
    %c84 = arith.constant 84 : index
    %c0_117 = arith.constant 0 : index
    %99 = vector.load %arg9[%c84, %c0_117] : memref<168x384xf32, #tpu.memory_space<vmem>>, vector<2x384xf32>
    tpu.vector_store %arg9[%c84, %c0_117], %98 {strides = array<i32>} : memref<168x384xf32, #tpu.memory_space<vmem>>, vector<2x384xf32>,
    %c0_118 = arith.constant 0 : index
    %c103 = arith.constant 103 : index
    %100 = vector.load %arg7[%c0_118, %c103] : memref<2x584xf32, #tpu.memory_space<vmem>>, vector<2x384xf32>
    %c86 = arith.constant 86 : index
    %c0_119 = arith.constant 0 : index
    %101 = vector.load %arg9[%c86, %c0_119] : memref<168x384xf32, #tpu.memory_space<vmem>>, vector<2x384xf32>
    tpu.vector_store %arg9[%c86, %c0_119], %100 {strides = array<i32>} : memref<168x384xf32, #tpu.memory_space<vmem>>, vector<2x384xf32>,
    %c0_120 = arith.constant 0 : index
    %c104 = arith.constant 104 : index
    %102 = vector.load %arg7[%c0_120, %c104] : memref<2x584xf32, #tpu.memory_space<vmem>>, vector<2x384xf32>
    %c88 = arith.constant 88 : index
    %c0_121 = arith.constant 0 : index
    %103 = vector.load %arg9[%c88, %c0_121] : memref<168x384xf32, #tpu.memory_space<vmem>>, vector<2x384xf32>
    tpu.vector_store %arg9[%c88, %c0_121], %102 {strides = array<i32>} : memref<168x384xf32, #tpu.memory_space<vmem>>, vector<2x384xf32>,
    %c0_122 = arith.constant 0 : index
    %c120 = arith.constant 120 : index
    %104 = vector.load %arg7[%c0_122, %c120] : memref<2x584xf32, #tpu.memory_space<vmem>>, vector<2x384xf32>
    %c90 = arith.constant 90 : index
    %c0_123 = arith.constant 0 : index
    %105 = vector.load %arg9[%c90, %c0_123] : memref<168x384xf32, #tpu.memory_space<vmem>>, vector<2x384xf32>
    tpu.vector_store %arg9[%c90, %c0_123], %104 {strides = array<i32>} : memref<168x384xf32, #tpu.memory_space<vmem>>, vector<2x384xf32>,
    %c0_124 = arith.constant 0 : index
    %c121 = arith.constant 121 : index
    %106 = vector.load %arg7[%c0_124, %c121] : memref<2x584xf32, #tpu.memory_space<vmem>>, vector<2x384xf32>
    %c92 = arith.constant 92 : index
    %c0_125 = arith.constant 0 : index
    %107 = vector.load %arg9[%c92, %c0_125] : memref<168x384xf32, #tpu.memory_space<vmem>>, vector<2x384xf32>
    tpu.vector_store %arg9[%c92, %c0_125], %106 {strides = array<i32>} : memref<168x384xf32, #tpu.memory_space<vmem>>, vector<2x384xf32>,
    %c0_126 = arith.constant 0 : index
    %c122 = arith.constant 122 : index
    %108 = vector.load %arg7[%c0_126, %c122] : memref<2x584xf32, #tpu.memory_space<vmem>>, vector<2x384xf32>
    %c94 = arith.constant 94 : index
    %c0_127 = arith.constant 0 : index
    %109 = vector.load %arg9[%c94, %c0_127] : memref<168x384xf32, #tpu.memory_space<vmem>>, vector<2x384xf32>
    tpu.vector_store %arg9[%c94, %c0_127], %108 {strides = array<i32>} : memref<168x384xf32, #tpu.memory_space<vmem>>, vector<2x384xf32>,
    %c0_128 = arith.constant 0 : index
    %c123 = arith.constant 123 : index
    %110 = vector.load %arg7[%c0_128, %c123] : memref<2x584xf32, #tpu.memory_space<vmem>>, vector<2x384xf32>
    %c96_129 = arith.constant 96 : index
    %c0_130 = arith.constant 0 : index
    %111 = vector.load %arg9[%c96_129, %c0_130] : memref<168x384xf32, #tpu.memory_space<vmem>>, vector<2x384xf32>
    tpu.vector_store %arg9[%c96_129, %c0_130], %110 {strides = array<i32>} : memref<168x384xf32, #tpu.memory_space<vmem>>, vector<2x384xf32>,
    %c0_131 = arith.constant 0 : index
    %c124 = arith.constant 124 : index
    %112 = vector.load %arg7[%c0_131, %c124] : memref<2x584xf32, #tpu.memory_space<vmem>>, vector<2x384xf32>
    %c98_132 = arith.constant 98 : index
    %c0_133 = arith.constant 0 : index
    %113 = vector.load %arg9[%c98_132, %c0_133] : memref<168x384xf32, #tpu.memory_space<vmem>>, vector<2x384xf32>
    tpu.vector_store %arg9[%c98_132, %c0_133], %112 {strides = array<i32>} : memref<168x384xf32, #tpu.memory_space<vmem>>, vector<2x384xf32>,
    %c0_134 = arith.constant 0 : index
    %c125 = arith.constant 125 : index
    %114 = vector.load %arg7[%c0_134, %c125] : memref<2x584xf32, #tpu.memory_space<vmem>>, vector<2x384xf32>
    %c100_135 = arith.constant 100 : index
    %c0_136 = arith.constant 0 : index
    %115 = vector.load %arg9[%c100_135, %c0_136] : memref<168x384xf32, #tpu.memory_space<vmem>>, vector<2x384xf32>
    tpu.vector_store %arg9[%c100_135, %c0_136], %114 {strides = array<i32>} : memref<168x384xf32, #tpu.memory_space<vmem>>, vector<2x384xf32>,
    %c0_137 = arith.constant 0 : index
    %c126 = arith.constant 126 : index
    %116 = vector.load %arg7[%c0_137, %c126] : memref<2x584xf32, #tpu.memory_space<vmem>>, vector<2x384xf32>
    %c102_138 = arith.constant 102 : index
    %c0_139 = arith.constant 0 : index
    %117 = vector.load %arg9[%c102_138, %c0_139] : memref<168x384xf32, #tpu.memory_space<vmem>>, vector<2x384xf32>
    tpu.vector_store %arg9[%c102_138, %c0_139], %116 {strides = array<i32>} : memref<168x384xf32, #tpu.memory_space<vmem>>, vector<2x384xf32>,
    %c0_140 = arith.constant 0 : index
    %c127 = arith.constant 127 : index
    %118 = vector.load %arg7[%c0_140, %c127] : memref<2x584xf32, #tpu.memory_space<vmem>>, vector<2x384xf32>
    %c104_141 = arith.constant 104 : index
    %c0_142 = arith.constant 0 : index
    %119 = vector.load %arg9[%c104_141, %c0_142] : memref<168x384xf32, #tpu.memory_space<vmem>>, vector<2x384xf32>
    tpu.vector_store %arg9[%c104_141, %c0_142], %118 {strides = array<i32>} : memref<168x384xf32, #tpu.memory_space<vmem>>, vector<2x384xf32>,
    %c0_143 = arith.constant 0 : index
    %c128 = arith.constant 128 : index
    %120 = vector.load %arg7[%c0_143, %c128] : memref<2x584xf32, #tpu.memory_space<vmem>>, vector<2x384xf32>
    %c106 = arith.constant 106 : index
    %c0_144 = arith.constant 0 : index
    %121 = vector.load %arg9[%c106, %c0_144] : memref<168x384xf32, #tpu.memory_space<vmem>>, vector<2x384xf32>
    tpu.vector_store %arg9[%c106, %c0_144], %120 {strides = array<i32>} : memref<168x384xf32, #tpu.memory_space<vmem>>, vector<2x384xf32>,
    %c0_145 = arith.constant 0 : index
    %c144 = arith.constant 144 : index
    %122 = vector.load %arg7[%c0_145, %c144] : memref<2x584xf32, #tpu.memory_space<vmem>>, vector<2x384xf32>
    %c108 = arith.constant 108 : index
    %c0_146 = arith.constant 0 : index
    %123 = vector.load %arg9[%c108, %c0_146] : memref<168x384xf32, #tpu.memory_space<vmem>>, vector<2x384xf32>
    tpu.vector_store %arg9[%c108, %c0_146], %122 {strides = array<i32>} : memref<168x384xf32, #tpu.memory_space<vmem>>, vector<2x384xf32>,
    %c0_147 = arith.constant 0 : index
    %c145 = arith.constant 145 : index
    %124 = vector.load %arg7[%c0_147, %c145] : memref<2x584xf32, #tpu.memory_space<vmem>>, vector<2x384xf32>
    %c110 = arith.constant 110 : index
    %c0_148 = arith.constant 0 : index
    %125 = vector.load %arg9[%c110, %c0_148] : memref<168x384xf32, #tpu.memory_space<vmem>>, vector<2x384xf32>
    tpu.vector_store %arg9[%c110, %c0_148], %124 {strides = array<i32>} : memref<168x384xf32, #tpu.memory_space<vmem>>, vector<2x384xf32>,
    %c0_149 = arith.constant 0 : index
    %c146 = arith.constant 146 : index
    %126 = vector.load %arg7[%c0_149, %c146] : memref<2x584xf32, #tpu.memory_space<vmem>>, vector<2x384xf32>
    %c112 = arith.constant 112 : index
    %c0_150 = arith.constant 0 : index
    %127 = vector.load %arg9[%c112, %c0_150] : memref<168x384xf32, #tpu.memory_space<vmem>>, vector<2x384xf32>
    tpu.vector_store %arg9[%c112, %c0_150], %126 {strides = array<i32>} : memref<168x384xf32, #tpu.memory_space<vmem>>, vector<2x384xf32>,
    %c0_151 = arith.constant 0 : index
    %c147 = arith.constant 147 : index
    %128 = vector.load %arg7[%c0_151, %c147] : memref<2x584xf32, #tpu.memory_space<vmem>>, vector<2x384xf32>
    %c114 = arith.constant 114 : index
    %c0_152 = arith.constant 0 : index
    %129 = vector.load %arg9[%c114, %c0_152] : memref<168x384xf32, #tpu.memory_space<vmem>>, vector<2x384xf32>
    tpu.vector_store %arg9[%c114, %c0_152], %128 {strides = array<i32>} : memref<168x384xf32, #tpu.memory_space<vmem>>, vector<2x384xf32>,
    %c0_153 = arith.constant 0 : index
    %c148 = arith.constant 148 : index
    %130 = vector.load %arg7[%c0_153, %c148] : memref<2x584xf32, #tpu.memory_space<vmem>>, vector<2x384xf32>
    %c116 = arith.constant 116 : index
    %c0_154 = arith.constant 0 : index
    %131 = vector.load %arg9[%c116, %c0_154] : memref<168x384xf32, #tpu.memory_space<vmem>>, vector<2x384xf32>
    tpu.vector_store %arg9[%c116, %c0_154], %130 {strides = array<i32>} : memref<168x384xf32, #tpu.memory_space<vmem>>, vector<2x384xf32>,
    %c0_155 = arith.constant 0 : index
    %c149 = arith.constant 149 : index
    %132 = vector.load %arg7[%c0_155, %c149] : memref<2x584xf32, #tpu.memory_space<vmem>>, vector<2x384xf32>
    %c118 = arith.constant 118 : index
    %c0_156 = arith.constant 0 : index
    %133 = vector.load %arg9[%c118, %c0_156] : memref<168x384xf32, #tpu.memory_space<vmem>>, vector<2x384xf32>
    tpu.vector_store %arg9[%c118, %c0_156], %132 {strides = array<i32>} : memref<168x384xf32, #tpu.memory_space<vmem>>, vector<2x384xf32>,
    %c0_157 = arith.constant 0 : index
    %c150 = arith.constant 150 : index
    %134 = vector.load %arg7[%c0_157, %c150] : memref<2x584xf32, #tpu.memory_space<vmem>>, vector<2x384xf32>
    %c120_158 = arith.constant 120 : index
    %c0_159 = arith.constant 0 : index
    %135 = vector.load %arg9[%c120_158, %c0_159] : memref<168x384xf32, #tpu.memory_space<vmem>>, vector<2x384xf32>
    tpu.vector_store %arg9[%c120_158, %c0_159], %134 {strides = array<i32>} : memref<168x384xf32, #tpu.memory_space<vmem>>, vector<2x384xf32>,
    %c0_160 = arith.constant 0 : index
    %c151 = arith.constant 151 : index
    %136 = vector.load %arg7[%c0_160, %c151] : memref<2x584xf32, #tpu.memory_space<vmem>>, vector<2x384xf32>
    %c122_161 = arith.constant 122 : index
    %c0_162 = arith.constant 0 : index
    %137 = vector.load %arg9[%c122_161, %c0_162] : memref<168x384xf32, #tpu.memory_space<vmem>>, vector<2x384xf32>
    tpu.vector_store %arg9[%c122_161, %c0_162], %136 {strides = array<i32>} : memref<168x384xf32, #tpu.memory_space<vmem>>, vector<2x384xf32>,
    %c0_163 = arith.constant 0 : index
    %c152 = arith.constant 152 : index
    %138 = vector.load %arg7[%c0_163, %c152] : memref<2x584xf32, #tpu.memory_space<vmem>>, vector<2x384xf32>
    %c124_164 = arith.constant 124 : index
    %c0_165 = arith.constant 0 : index
    %139 = vector.load %arg9[%c124_164, %c0_165] : memref<168x384xf32, #tpu.memory_space<vmem>>, vector<2x384xf32>
    tpu.vector_store %arg9[%c124_164, %c0_165], %138 {strides = array<i32>} : memref<168x384xf32, #tpu.memory_space<vmem>>, vector<2x384xf32>,
    %c0_166 = arith.constant 0 : index
    %c168 = arith.constant 168 : index
    %140 = vector.load %arg7[%c0_166, %c168] : memref<2x584xf32, #tpu.memory_space<vmem>>, vector<2x384xf32>
    %c126_167 = arith.constant 126 : index
    %c0_168 = arith.constant 0 : index
    %141 = vector.load %arg9[%c126_167, %c0_168] : memref<168x384xf32, #tpu.memory_space<vmem>>, vector<2x384xf32>
    tpu.vector_store %arg9[%c126_167, %c0_168], %140 {strides = array<i32>} : memref<168x384xf32, #tpu.memory_space<vmem>>, vector<2x384xf32>,
    %c0_169 = arith.constant 0 : index
    %c169 = arith.constant 169 : index
    %142 = vector.load %arg7[%c0_169, %c169] : memref<2x584xf32, #tpu.memory_space<vmem>>, vector<2x384xf32>
    %c128_170 = arith.constant 128 : index
    %c0_171 = arith.constant 0 : index
    %143 = vector.load %arg9[%c128_170, %c0_171] : memref<168x384xf32, #tpu.memory_space<vmem>>, vector<2x384xf32>
    tpu.vector_store %arg9[%c128_170, %c0_171], %142 {strides = array<i32>} : memref<168x384xf32, #tpu.memory_space<vmem>>, vector<2x384xf32>,
    %c0_172 = arith.constant 0 : index
    %c170 = arith.constant 170 : index
    %144 = vector.load %arg7[%c0_172, %c170] : memref<2x584xf32, #tpu.memory_space<vmem>>, vector<2x384xf32>
    %c130 = arith.constant 130 : index
    %c0_173 = arith.constant 0 : index
    %145 = vector.load %arg9[%c130, %c0_173] : memref<168x384xf32, #tpu.memory_space<vmem>>, vector<2x384xf32>
    tpu.vector_store %arg9[%c130, %c0_173], %144 {strides = array<i32>} : memref<168x384xf32, #tpu.memory_space<vmem>>, vector<2x384xf32>,
    %c0_174 = arith.constant 0 : index
    %c171 = arith.constant 171 : index
    %146 = vector.load %arg7[%c0_174, %c171] : memref<2x584xf32, #tpu.memory_space<vmem>>, vector<2x384xf32>
    %c132 = arith.constant 132 : index
    %c0_175 = arith.constant 0 : index
    %147 = vector.load %arg9[%c132, %c0_175] : memref<168x384xf32, #tpu.memory_space<vmem>>, vector<2x384xf32>
    tpu.vector_store %arg9[%c132, %c0_175], %146 {strides = array<i32>} : memref<168x384xf32, #tpu.memory_space<vmem>>, vector<2x384xf32>,
    %c0_176 = arith.constant 0 : index
    %c172 = arith.constant 172 : index
    %148 = vector.load %arg7[%c0_176, %c172] : memref<2x584xf32, #tpu.memory_space<vmem>>, vector<2x384xf32>
    %c134 = arith.constant 134 : index
    %c0_177 = arith.constant 0 : index
    %149 = vector.load %arg9[%c134, %c0_177] : memref<168x384xf32, #tpu.memory_space<vmem>>, vector<2x384xf32>
    tpu.vector_store %arg9[%c134, %c0_177], %148 {strides = array<i32>} : memref<168x384xf32, #tpu.memory_space<vmem>>, vector<2x384xf32>,
    %c0_178 = arith.constant 0 : index
    %c173 = arith.constant 173 : index
    %150 = vector.load %arg7[%c0_178, %c173] : memref<2x584xf32, #tpu.memory_space<vmem>>, vector<2x384xf32>
    %c136 = arith.constant 136 : index
    %c0_179 = arith.constant 0 : index
    %151 = vector.load %arg9[%c136, %c0_179] : memref<168x384xf32, #tpu.memory_space<vmem>>, vector<2x384xf32>
    tpu.vector_store %arg9[%c136, %c0_179], %150 {strides = array<i32>} : memref<168x384xf32, #tpu.memory_space<vmem>>, vector<2x384xf32>,
    %c0_180 = arith.constant 0 : index
    %c174 = arith.constant 174 : index
    %152 = vector.load %arg7[%c0_180, %c174] : memref<2x584xf32, #tpu.memory_space<vmem>>, vector<2x384xf32>
    %c138 = arith.constant 138 : index
    %c0_181 = arith.constant 0 : index
    %153 = vector.load %arg9[%c138, %c0_181] : memref<168x384xf32, #tpu.memory_space<vmem>>, vector<2x384xf32>
    tpu.vector_store %arg9[%c138, %c0_181], %152 {strides = array<i32>} : memref<168x384xf32, #tpu.memory_space<vmem>>, vector<2x384xf32>,
    %c0_182 = arith.constant 0 : index
    %c175 = arith.constant 175 : index
    %154 = vector.load %arg7[%c0_182, %c175] : memref<2x584xf32, #tpu.memory_space<vmem>>, vector<2x384xf32>
    %c140 = arith.constant 140 : index
    %c0_183 = arith.constant 0 : index
    %155 = vector.load %arg9[%c140, %c0_183] : memref<168x384xf32, #tpu.memory_space<vmem>>, vector<2x384xf32>
    tpu.vector_store %arg9[%c140, %c0_183], %154 {strides = array<i32>} : memref<168x384xf32, #tpu.memory_space<vmem>>, vector<2x384xf32>,
    %c0_184 = arith.constant 0 : index
    %c176 = arith.constant 176 : index
    %156 = vector.load %arg7[%c0_184, %c176] : memref<2x584xf32, #tpu.memory_space<vmem>>, vector<2x384xf32>
    %c142 = arith.constant 142 : index
    %c0_185 = arith.constant 0 : index
    %157 = vector.load %arg9[%c142, %c0_185] : memref<168x384xf32, #tpu.memory_space<vmem>>, vector<2x384xf32>
    tpu.vector_store %arg9[%c142, %c0_185], %156 {strides = array<i32>} : memref<168x384xf32, #tpu.memory_space<vmem>>, vector<2x384xf32>,
    %c0_186 = arith.constant 0 : index
    %c192 = arith.constant 192 : index
    %158 = vector.load %arg7[%c0_186, %c192] : memref<2x584xf32, #tpu.memory_space<vmem>>, vector<2x384xf32>
    %c144_187 = arith.constant 144 : index
    %c0_188 = arith.constant 0 : index
    %159 = vector.load %arg9[%c144_187, %c0_188] : memref<168x384xf32, #tpu.memory_space<vmem>>, vector<2x384xf32>
    tpu.vector_store %arg9[%c144_187, %c0_188], %158 {strides = array<i32>} : memref<168x384xf32, #tpu.memory_space<vmem>>, vector<2x384xf32>,
    %c0_189 = arith.constant 0 : index
    %c193 = arith.constant 193 : index
    %160 = vector.load %arg7[%c0_189, %c193] : memref<2x584xf32, #tpu.memory_space<vmem>>, vector<2x384xf32>
    %c146_190 = arith.constant 146 : index
    %c0_191 = arith.constant 0 : index
    %161 = vector.load %arg9[%c146_190, %c0_191] : memref<168x384xf32, #tpu.memory_space<vmem>>, vector<2x384xf32>
    tpu.vector_store %arg9[%c146_190, %c0_191], %160 {strides = array<i32>} : memref<168x384xf32, #tpu.memory_space<vmem>>, vector<2x384xf32>,
    %c0_192 = arith.constant 0 : index
    %c194 = arith.constant 194 : index
    %162 = vector.load %arg7[%c0_192, %c194] : memref<2x584xf32, #tpu.memory_space<vmem>>, vector<2x384xf32>
    %c148_193 = arith.constant 148 : index
    %c0_194 = arith.constant 0 : index
    %163 = vector.load %arg9[%c148_193, %c0_194] : memref<168x384xf32, #tpu.memory_space<vmem>>, vector<2x384xf32>
    tpu.vector_store %arg9[%c148_193, %c0_194], %162 {strides = array<i32>} : memref<168x384xf32, #tpu.memory_space<vmem>>, vector<2x384xf32>,
    %c0_195 = arith.constant 0 : index
    %c195 = arith.constant 195 : index
    %164 = vector.load %arg7[%c0_195, %c195] : memref<2x584xf32, #tpu.memory_space<vmem>>, vector<2x384xf32>
    %c150_196 = arith.constant 150 : index
    %c0_197 = arith.constant 0 : index
    %165 = vector.load %arg9[%c150_196, %c0_197] : memref<168x384xf32, #tpu.memory_space<vmem>>, vector<2x384xf32>
    tpu.vector_store %arg9[%c150_196, %c0_197], %164 {strides = array<i32>} : memref<168x384xf32, #tpu.memory_space<vmem>>, vector<2x384xf32>,
    %c0_198 = arith.constant 0 : index
    %c196 = arith.constant 196 : index
    %166 = vector.load %arg7[%c0_198, %c196] : memref<2x584xf32, #tpu.memory_space<vmem>>, vector<2x384xf32>
    %c152_199 = arith.constant 152 : index
    %c0_200 = arith.constant 0 : index
    %167 = vector.load %arg9[%c152_199, %c0_200] : memref<168x384xf32, #tpu.memory_space<vmem>>, vector<2x384xf32>
    tpu.vector_store %arg9[%c152_199, %c0_200], %166 {strides = array<i32>} : memref<168x384xf32, #tpu.memory_space<vmem>>, vector<2x384xf32>,
    %c0_201 = arith.constant 0 : index
    %c197 = arith.constant 197 : index
    %168 = vector.load %arg7[%c0_201, %c197] : memref<2x584xf32, #tpu.memory_space<vmem>>, vector<2x384xf32>
    %c154 = arith.constant 154 : index
    %c0_202 = arith.constant 0 : index
    %169 = vector.load %arg9[%c154, %c0_202] : memref<168x384xf32, #tpu.memory_space<vmem>>, vector<2x384xf32>
    tpu.vector_store %arg9[%c154, %c0_202], %168 {strides = array<i32>} : memref<168x384xf32, #tpu.memory_space<vmem>>, vector<2x384xf32>,
    %c0_203 = arith.constant 0 : index
    %c198 = arith.constant 198 : index
    %170 = vector.load %arg7[%c0_203, %c198] : memref<2x584xf32, #tpu.memory_space<vmem>>, vector<2x384xf32>
    %c156 = arith.constant 156 : index
    %c0_204 = arith.constant 0 : index
    %171 = vector.load %arg9[%c156, %c0_204] : memref<168x384xf32, #tpu.memory_space<vmem>>, vector<2x384xf32>
    tpu.vector_store %arg9[%c156, %c0_204], %170 {strides = array<i32>} : memref<168x384xf32, #tpu.memory_space<vmem>>, vector<2x384xf32>,
    %c0_205 = arith.constant 0 : index
    %c199 = arith.constant 199 : index
    %172 = vector.load %arg7[%c0_205, %c199] : memref<2x584xf32, #tpu.memory_space<vmem>>, vector<2x384xf32>
    %c158 = arith.constant 158 : index
    %c0_206 = arith.constant 0 : index
    %173 = vector.load %arg9[%c158, %c0_206] : memref<168x384xf32, #tpu.memory_space<vmem>>, vector<2x384xf32>
    tpu.vector_store %arg9[%c158, %c0_206], %172 {strides = array<i32>} : memref<168x384xf32, #tpu.memory_space<vmem>>, vector<2x384xf32>,
    %c0_207 = arith.constant 0 : index
    %c200 = arith.constant 200 : index
    %174 = vector.load %arg7[%c0_207, %c200] : memref<2x584xf32, #tpu.memory_space<vmem>>, vector<2x384xf32>
    %c160 = arith.constant 160 : index
    %c0_208 = arith.constant 0 : index
    %175 = vector.load %arg9[%c160, %c0_208] : memref<168x384xf32, #tpu.memory_space<vmem>>, vector<2x384xf32>
    tpu.vector_store %arg9[%c160, %c0_208], %174 {strides = array<i32>} : memref<168x384xf32, #tpu.memory_space<vmem>>, vector<2x384xf32>,
    %c0_209 = arith.constant 0 : index
    %c0_210 = arith.constant 0 : index
    %176 = vector.load %arg2[%c0_209, %c0_210] : memref<3x168xf32, #tpu.memory_space<vmem>>, vector<3x168xf32>
    %c0_211 = arith.constant 0 : index
    %c0_212 = arith.constant 0 : index
    %177 = vector.load %arg9[%c0_211, %c0_212] : memref<168x384xf32, #tpu.memory_space<vmem>>, vector<168x384xf32>
    %cst_213 = arith.constant dense<0.000000e+00> : vector<3x384xf32>
    %178 = tpu.matmul %176, %177, %cst_213 {dimension_numbers = #tpu.dot_dimension_numbers<[1], [0], [0], [1], [0, 0, 1, 1], [], []>} : vector<3x168xf32>, vector<168x384xf32>, vector<3x384xf32> -> vector<3x384xf32>
    %179 = arith.negf %178 : vector<3x384xf32>
    %180 = math.exp %179 : vector<3x384xf32>
    %cst_214 = arith.constant 1.000000e+00 : f32
    %181 = vector.broadcast %cst_214 : f32 to vector<3x384xf32>
    %182 = arith.addf %181, %180 : vector<3x384xf32>
    %183 = arith.divf %181, %182 : vector<3x384xf32>
    %cst_215 = arith.constant dense<0.000000e+00> : vector<384xf32>
    %184 = vector.multi_reduction <add>, %183, %cst_215 [0] : vector<3x384xf32> to vector<384xf32>
    %185 = vector.shape_cast %184 : vector<384xf32> to vector<1x384xf32>
    %186 = vector.broadcast %185 : vector<1x384xf32> to vector<4x384xf32>
    %187 = arith.mulf %1, %186 : vector<4x384xf32>
    %cst_216 = arith.constant 0.000000e+00 : f32
    %188 = vector.broadcast %cst_216 : f32 to vector<4x440xf32>
    %c0_217 = arith.constant 0 : index
    %c0_218 = arith.constant 0 : index
    %189 = vector.load %arg8[%c0_217, %c0_218] : memref<4x440xf32, #tpu.memory_space<vmem>>, vector<4x440xf32>
    tpu.vector_store %arg8[%c0_217, %c0_218], %188 {strides = array<i32>} : memref<4x440xf32, #tpu.memory_space<vmem>>, vector<4x440xf32>,
    %c0_219 = arith.constant 0 : index
    %c25_220 = arith.constant 25 : index
    %190 = vector.load %arg8[%c0_219, %c25_220] : memref<4x440xf32, #tpu.memory_space<vmem>>, vector<4x384xf32>
    tpu.vector_store %arg8[%c0_219, %c25_220], %187 {strides = array<i32>} : memref<4x440xf32, #tpu.memory_space<vmem>>, vector<4x384xf32>,
    %cst_221 = arith.constant 0.000000e+00 : f32
    %191 = vector.broadcast %cst_221 : f32 to vector<4x384xf32>
    %c36_222 = arith.constant 36 : index
    %c0_223 = arith.constant 0 : index
    %192 = vector.load %arg10[%c36_222, %c0_223] : memref<40x384xf32, #tpu.memory_space<vmem>>, vector<4x384xf32>
    tpu.vector_store %arg10[%c36_222, %c0_223], %191 {strides = array<i32>} : memref<40x384xf32, #tpu.memory_space<vmem>>, vector<4x384xf32>,
    %c0_224 = arith.constant 0 : index
    %c0_225 = arith.constant 0 : index
    %193 = vector.load %arg8[%c0_224, %c0_225] : memref<4x440xf32, #tpu.memory_space<vmem>>, vector<4x384xf32>
    %c0_226 = arith.constant 0 : index
    %c0_227 = arith.constant 0 : index
    %194 = vector.load %arg10[%c0_226, %c0_227] : memref<40x384xf32, #tpu.memory_space<vmem>>, vector<4x384xf32>
    tpu.vector_store %arg10[%c0_226, %c0_227], %193 {strides = array<i32>} : memref<40x384xf32, #tpu.memory_space<vmem>>, vector<4x384xf32>,
    %c0_228 = arith.constant 0 : index
    %c1_229 = arith.constant 1 : index
    %195 = vector.load %arg8[%c0_228, %c1_229] : memref<4x440xf32, #tpu.memory_space<vmem>>, vector<4x384xf32>
    %c4_230 = arith.constant 4 : index
    %c0_231 = arith.constant 0 : index
    %196 = vector.load %arg10[%c4_230, %c0_231] : memref<40x384xf32, #tpu.memory_space<vmem>>, vector<4x384xf32>
    tpu.vector_store %arg10[%c4_230, %c0_231], %195 {strides = array<i32>} : memref<40x384xf32, #tpu.memory_space<vmem>>, vector<4x384xf32>,
    %c0_232 = arith.constant 0 : index
    %c2_233 = arith.constant 2 : index
    %197 = vector.load %arg8[%c0_232, %c2_233] : memref<4x440xf32, #tpu.memory_space<vmem>>, vector<4x384xf32>
    %c8_234 = arith.constant 8 : index
    %c0_235 = arith.constant 0 : index
    %198 = vector.load %arg10[%c8_234, %c0_235] : memref<40x384xf32, #tpu.memory_space<vmem>>, vector<4x384xf32>
    tpu.vector_store %arg10[%c8_234, %c0_235], %197 {strides = array<i32>} : memref<40x384xf32, #tpu.memory_space<vmem>>, vector<4x384xf32>,
    %c0_236 = arith.constant 0 : index
    %c24_237 = arith.constant 24 : index
    %199 = vector.load %arg8[%c0_236, %c24_237] : memref<4x440xf32, #tpu.memory_space<vmem>>, vector<4x384xf32>
    %c12_238 = arith.constant 12 : index
    %c0_239 = arith.constant 0 : index
    %200 = vector.load %arg10[%c12_238, %c0_239] : memref<40x384xf32, #tpu.memory_space<vmem>>, vector<4x384xf32>
    tpu.vector_store %arg10[%c12_238, %c0_239], %199 {strides = array<i32>} : memref<40x384xf32, #tpu.memory_space<vmem>>, vector<4x384xf32>,
    %c0_240 = arith.constant 0 : index
    %c25_241 = arith.constant 25 : index
    %201 = vector.load %arg8[%c0_240, %c25_241] : memref<4x440xf32, #tpu.memory_space<vmem>>, vector<4x384xf32>
    %c16_242 = arith.constant 16 : index
    %c0_243 = arith.constant 0 : index
    %202 = vector.load %arg10[%c16_242, %c0_243] : memref<40x384xf32, #tpu.memory_space<vmem>>, vector<4x384xf32>
    tpu.vector_store %arg10[%c16_242, %c0_243], %201 {strides = array<i32>} : memref<40x384xf32, #tpu.memory_space<vmem>>, vector<4x384xf32>,
    %c0_244 = arith.constant 0 : index
    %c26_245 = arith.constant 26 : index
    %203 = vector.load %arg8[%c0_244, %c26_245] : memref<4x440xf32, #tpu.memory_space<vmem>>, vector<4x384xf32>
    %c20_246 = arith.constant 20 : index
    %c0_247 = arith.constant 0 : index
    %204 = vector.load %arg10[%c20_246, %c0_247] : memref<40x384xf32, #tpu.memory_space<vmem>>, vector<4x384xf32>
    tpu.vector_store %arg10[%c20_246, %c0_247], %203 {strides = array<i32>} : memref<40x384xf32, #tpu.memory_space<vmem>>, vector<4x384xf32>,
    %c0_248 = arith.constant 0 : index
    %c48_249 = arith.constant 48 : index
    %205 = vector.load %arg8[%c0_248, %c48_249] : memref<4x440xf32, #tpu.memory_space<vmem>>, vector<4x384xf32>
    %c24_250 = arith.constant 24 : index
    %c0_251 = arith.constant 0 : index
    %206 = vector.load %arg10[%c24_250, %c0_251] : memref<40x384xf32, #tpu.memory_space<vmem>>, vector<4x384xf32>
    tpu.vector_store %arg10[%c24_250, %c0_251], %205 {strides = array<i32>} : memref<40x384xf32, #tpu.memory_space<vmem>>, vector<4x384xf32>,
    %c0_252 = arith.constant 0 : index
    %c49_253 = arith.constant 49 : index
    %207 = vector.load %arg8[%c0_252, %c49_253] : memref<4x440xf32, #tpu.memory_space<vmem>>, vector<4x384xf32>
    %c28_254 = arith.constant 28 : index
    %c0_255 = arith.constant 0 : index
    %208 = vector.load %arg10[%c28_254, %c0_255] : memref<40x384xf32, #tpu.memory_space<vmem>>, vector<4x384xf32>
    tpu.vector_store %arg10[%c28_254, %c0_255], %207 {strides = array<i32>} : memref<40x384xf32, #tpu.memory_space<vmem>>, vector<4x384xf32>,
    %c0_256 = arith.constant 0 : index
    %c50_257 = arith.constant 50 : index
    %209 = vector.load %arg8[%c0_256, %c50_257] : memref<4x440xf32, #tpu.memory_space<vmem>>, vector<4x384xf32>
    %c32_258 = arith.constant 32 : index
    %c0_259 = arith.constant 0 : index
    %210 = vector.load %arg10[%c32_258, %c0_259] : memref<40x384xf32, #tpu.memory_space<vmem>>, vector<4x384xf32>
    tpu.vector_store %arg10[%c32_258, %c0_259], %209 {strides = array<i32>} : memref<40x384xf32, #tpu.memory_space<vmem>>, vector<4x384xf32>,
    %c0_260 = arith.constant 0 : index
    %c0_261 = arith.constant 0 : index
    %211 = vector.load %arg3[%c0_260, %c0_261] : memref<4x40xf32, #tpu.memory_space<vmem>>, vector<4x40xf32>
    %c0_262 = arith.constant 0 : index
    %c0_263 = arith.constant 0 : index
    %212 = vector.load %arg10[%c0_262, %c0_263] : memref<40x384xf32, #tpu.memory_space<vmem>>, vector<40x384xf32>
    %cst_264 = arith.constant dense<0.000000e+00> : vector<4x384xf32>
    %213 = tpu.matmul %211, %212, %cst_264 {dimension_numbers = #tpu.dot_dimension_numbers<[1], [0], [0], [1], [0, 0, 1, 1], [], []>} : vector<4x40xf32>, vector<40x384xf32>, vector<4x384xf32> -> vector<4x384xf32>
    %c0_265 = arith.constant 0 : index
    %c0_266 = arith.constant 0 : index
    %214 = vector.load %arg4[%c0_265, %c0_266] : memref<4x1xf32, #tpu.memory_space<vmem>>, vector<4x1xf32>
    %215 = vector.broadcast %214 : vector<4x1xf32> to vector<4x384xf32>
    %216 = arith.mulf %213, %215 : vector<4x384xf32>
    %c0_267 = arith.constant 0 : index
    %c0_268 = arith.constant 0 : index
    %217 = vector.load %arg5[%c0_267, %c0_268] : memref<4x1xf32, #tpu.memory_space<vmem>>, vector<4x1xf32>
    %218 = vector.broadcast %217 : vector<4x1xf32> to vector<4x384xf32>
    %219 = arith.addf %216, %218 : vector<4x384xf32>
    %cst_269 = arith.constant 0.000000e+00 : f32
    %220 = vector.broadcast %cst_269 : f32 to vector<4x384xf32>
    %221 = arith.maximumf %219, %220 : vector<4x384xf32>
    %c0_270 = arith.constant 0 : index
    %c0_271 = arith.constant 0 : index
    %c0_272 = arith.constant 0 : index
    %222 = vector.load %arg6[%c0_270, %c0_271, %c0_272] : memref<1x4x384xf32, #tpu.memory_space<vmem>>, vector<1x4x384xf32>
    %223 = vector.shape_cast %222 : vector<1x4x384xf32> to vector<4x384xf32>
    %224 = vector.shape_cast %221 : vector<4x384xf32> to vector<1x4x384xf32>
    tpu.vector_store %arg6[%c0_270, %c0_271, %c0_272], %224 {strides = array<i32>} : memref<1x4x384xf32, #tpu.memory_space<vmem>>, vector<1x4x384xf32>,
    return
  }
  func.func @transform_0(%arg0: i32) -> (i32, i32, i32) {
    %c0_i32 = arith.constant 0 : i32
    %c0_i32_0 = arith.constant 0 : i32
    %c0_i32_1 = arith.constant 0 : i32
    return %arg0, %c0_i32, %c0_i32_0 : i32, i32, i32
  }
  func.func @transform_1(%arg0: i32) -> (i32, i32) {
    %c0_i32 = arith.constant 0 : i32
    %c0_i32_0 = arith.constant 0 : i32
    %c0_i32_1 = arith.constant 0 : i32
    return %c0_i32, %c0_i32_0 : i32, i32
  }
  func.func @transform_2(%arg0: i32) -> (i32, i32) {
    %c0_i32 = arith.constant 0 : i32
    %c0_i32_0 = arith.constant 0 : i32
    %c0_i32_1 = arith.constant 0 : i32
    return %c0_i32, %c0_i32_0 : i32, i32
  }
  func.func @transform_3(%arg0: i32) -> (i32, i32) {
    %c0_i32 = arith.constant 0 : i32
    %c0_i32_0 = arith.constant 0 : i32
    %c0_i32_1 = arith.constant 0 : i32
    return %c0_i32, %c0_i32_0 : i32, i32
  }
  func.func @transform_4(%arg0: i32) -> (i32, i32) {
    %c0_i32 = arith.constant 0 : i32
    %c0_i32_0 = arith.constant 0 : i32
    %c0_i32_1 = arith.constant 0 : i32
    return %c0_i32, %c0_i32_0 : i32, i32
  }
  func.func @transform_5(%arg0: i32) -> (i32, i32, i32) {
    %c0_i32 = arith.constant 0 : i32
    %c0_i32_0 = arith.constant 0 : i32
    %c0_i32_1 = arith.constant 0 : i32
    return %arg0, %c0_i32, %c0_i32_0 : i32, i32, i32
  }
}

</mosaic_0001>

<llo_original>
// kernel: spatial_attention.1
$region0: #{spatial_attention.1}
  #allocation0 [shape = 'u32[]', space=smem, size = 0x4, offset = 0x4, fixed_abs, tag = 'smem constant byte address 0x4 - core index']
  #allocation1 [shape = 'u32[144,128]{1,0:T(1,128)}', space=vmem, size = 0x12000, scoped, tag = 'internal scratch']
  #allocation2 [shape = 'f32[2,584]{1,0:T(2,128)}', space=vmem, size = 0x1400, scoped, tag = 'scratch operand']
  #allocation3 [shape = 'f32[4,440]{1,0:T(4,128)}', space=vmem, size = 0x2000, scoped, tag = 'scratch operand']
  #allocation4 [shape = 'f32[168,384]{1,0:T(8,128)}', space=vmem, size = 0x3f000, scoped, tag = 'scratch operand']
  #allocation5 [shape = 'f32[40,384]{1,0:T(8,128)}', space=vmem, size = 0xf000, scoped, tag = 'scratch operand']
  %s0 = inlined_call_operand.vmem [shape: f32[2,4,384], index: 0, kind: input, shape index: {}]
  %s1 = inlined_call_operand.vmem [shape: f32[3,168], index: 1, kind: input, shape index: {}]
  %s2 = inlined_call_operand.vmem [shape: f32[4,40], index: 2, kind: input, shape index: {}]
  %s3 = inlined_call_operand.vmem [shape: f32[4,1], index: 3, kind: input, shape index: {}]
  %s4 = inlined_call_operand.vmem [shape: f32[4,1], index: 4, kind: input, shape index: {}]
  %s5 = inlined_call_operand.vmem [shape: f32[2,4,384], index: 5, kind: output, shape index: {}]
  %s6 = sld [smem:[#allocation0]]
  $region53: #{spatial_attention.1} parent=0
    _
  %s8 = ssub.s32 1, %s6
  %s9 = scalar_select 0, %s8, %s6
  loop: start=0, step=1, limit=4
  $region2: #{spatial_attention.1} parent=0 // loop_pre_header
    _
  $region3: #{spatial_attention.1} parent=0 // loop_header
    %s11 = sphi 0, %s15
    %p12 = scmp.ge.s32.totalorder %s11, 4
    %s21 = sphi 0, %s23
    %s24 = sphi 0, %s21
    %s25 = sphi 0, %s24
    %s41 = sphi 0, %s25
    %s45 = sphi 0, %s45
    %s47 = sphi 0, %s45
    %s48 = sphi 0, %s47
    %s62 = sphi 0, %s48
    %s66 = sphi 0, %s66
    %s68 = sphi 0, %s66
    %s69 = sphi 0, %s68
    %s83 = sphi 0, %s69
    %s87 = sphi 0, %s87
    %s89 = sphi 0, %s87
    %s90 = sphi 0, %s89
    %s104 = sphi 0, %s90
    %s108 = sphi 0, %s108
    %s110 = sphi 0, %s108
    %s111 = sphi 0, %s110
    %s125 = sphi 0, %s111
    %s131 = sphi 0, %s133
    %s134 = sphi 0, %s131
    %s135 = sphi 0, %s134
    %s151 = sphi 0, %s135
  $region4: #{spatial_attention.1} parent=0 // loop_header_branch
    %14 = sbr.rel (%p12) target = $region8
  $region5: #{spatial_attention.1} parent=0 // loop_body
    %s16 = ssub.s32 %s11, 1
    %s17 = ssub.s32 %s11, 2
    %s18 = sadd.s32 %s11, 1
    %s19 = ssub.s32 %s11, %s18
    %p20 = scmp.eq.s32.totalorder %s19, 0
    %s22 = sadd.s32 %s21, 1
    %s23 = scalar_select %p20, %s21, %s22
    %p26 = pneg %p20
    %p27 = scmp.eq.s32.totalorder %s11, 1
    %p28 = por %p26, %p27
    %p29 = scmp.ne.s32.totalorder %s21, %s24
    %p30 = scmp.eq.s32.totalorder %s11, 0
    %p31 = por %p29, %p30
    %p32 = scmp.ne.s32.totalorder %s21, %s24
    %p33 = scmp.eq.s32.totalorder %s16, 1
    %p34 = por %p32, %p33
    %p35 = scmp.ne.s32.totalorder %s24, %s25
    %p36 = scmp.eq.s32.totalorder %s16, 0
    %p37 = por %p35, %p36
    %p38 = scmp.ne.s32.totalorder %s24, %s25
    %p39 = scmp.eq.s32.totalorder %s17, 1
    %p40 = por %p38, %p39
    %p42 = scmp.ne.s32.totalorder %s25, %s41
    %p43 = scmp.eq.s32.totalorder %s17, 0
    %p44 = por %p42, %p43
    %s46 = sadd.s32 %s45, 1
    %p49 = scmp.eq.s32.totalorder %s11, 1
    %p50 = scmp.ne.s32.totalorder %s45, %s47
    %p51 = scmp.eq.s32.totalorder %s11, 0
    %p52 = por %p50, %p51
    %p53 = scmp.ne.s32.totalorder %s45, %s47
    %p54 = scmp.eq.s32.totalorder %s16, 1
    %p55 = por %p53, %p54
    %p56 = scmp.ne.s32.totalorder %s47, %s48
    %p57 = scmp.eq.s32.totalorder %s16, 0
    %p58 = por %p56, %p57
    %p59 = scmp.ne.s32.totalorder %s47, %s48
    %p60 = scmp.eq.s32.totalorder %s17, 1
    %p61 = por %p59, %p60
    %p63 = scmp.ne.s32.totalorder %s48, %s62
    %p64 = scmp.eq.s32.totalorder %s17, 0
    %p65 = por %p63, %p64
    %s67 = sadd.s32 %s66, 1
    %p70 = scmp.eq.s32.totalorder %s11, 1
    %p71 = scmp.ne.s32.totalorder %s66, %s68
    %p72 = scmp.eq.s32.totalorder %s11, 0
    %p73 = por %p71, %p72
    %p74 = scmp.ne.s32.totalorder %s66, %s68
    %p75 = scmp.eq.s32.totalorder %s16, 1
    %p76 = por %p74, %p75
    %p77 = scmp.ne.s32.totalorder %s68, %s69
    %p78 = scmp.eq.s32.totalorder %s16, 0
    %p79 = por %p77, %p78
    %p80 = scmp.ne.s32.totalorder %s68, %s69
    %p81 = scmp.eq.s32.totalorder %s17, 1
    %p82 = por %p80, %p81
    %p84 = scmp.ne.s32.totalorder %s69, %s83
    %p85 = scmp.eq.s32.totalorder %s17, 0
    %p86 = por %p84, %p85
    %s88 = sadd.s32 %s87, 1
    %p91 = scmp.eq.s32.totalorder %s11, 1
    %p92 = scmp.ne.s32.totalorder %s87, %s89
    %p93 = scmp.eq.s32.totalorder %s11, 0
    %p94 = por %p92, %p93
    %p95 = scmp.ne.s32.totalorder %s87, %s89
    %p96 = scmp.eq.s32.totalorder %s16, 1
    %p97 = por %p95, %p96
    %p98 = scmp.ne.s32.totalorder %s89, %s90
    %p99 = scmp.eq.s32.totalorder %s16, 0
    %p100 = por %p98, %p99
    %p101 = scmp.ne.s32.totalorder %s89, %s90
    %p102 = scmp.eq.s32.totalorder %s17, 1
    %p103 = por %p101, %p102
    %p105 = scmp.ne.s32.totalorder %s90, %s104
    %p106 = scmp.eq.s32.totalorder %s17, 0
    %p107 = por %p105, %p106
    %s109 = sadd.s32 %s108, 1
    %p112 = scmp.eq.s32.totalorder %s11, 1
    %p113 = scmp.ne.s32.totalorder %s108, %s110
    %p114 = scmp.eq.s32.totalorder %s11, 0
    %p115 = por %p113, %p114
    %p116 = scmp.ne.s32.totalorder %s108, %s110
    %p117 = scmp.eq.s32.totalorder %s16, 1
    %p118 = por %p116, %p117
    %p119 = scmp.ne.s32.totalorder %s110, %s111
    %p120 = scmp.eq.s32.totalorder %s16, 0
    %p121 = por %p119, %p120
    %p122 = scmp.ne.s32.totalorder %s110, %s111
    %p123 = scmp.eq.s32.totalorder %s17, 1
    %p124 = por %p122, %p123
    %p126 = scmp.ne.s32.totalorder %s111, %s125
    %p127 = scmp.eq.s32.totalorder %s17, 0
    %p128 = por %p126, %p127
    %s129 = ssub.s32 %s11, %s18
    %p130 = scmp.eq.s32.totalorder %s129, 0
    %s132 = sadd.s32 %s131, 1
    %s133 = scalar_select %p130, %s131, %s132
    %p136 = pneg %p130
    %p137 = scmp.eq.s32.totalorder %s11, 1
    %p138 = por %p136, %p137
    %p139 = scmp.ne.s32.totalorder %s131, %s134
    %p140 = scmp.eq.s32.totalorder %s11, 0
    %p141 = por %p139, %p140
    %p142 = scmp.ne.s32.totalorder %s131, %s134
    %p143 = scmp.eq.s32.totalorder %s16, 1
    %p144 = por %p142, %p143
    %p145 = scmp.ne.s32.totalorder %s134, %s135
    %p146 = scmp.eq.s32.totalorder %s16, 0
    %p147 = por %p145, %p146
    %p148 = scmp.ne.s32.totalorder %s134, %s135
    %p149 = scmp.eq.s32.totalorder %s17, 1
    %p150 = por %p148, %p149
    %p152 = scmp.ne.s32.totalorder %s135, %s151
    %p153 = scmp.eq.s32.totalorder %s17, 0
    %p154 = por %p152, %p153
    %p155 = scmp.le.s32.totalorder 1, %s11
    %p156 = scmp.lt.s32.totalorder %s11, 3
    %p157 = pnand %p155, %p156
    %p158 = pneg %p157
    // Predicated region
    $region9: #{spatial_attention.1} parent=5 // pred_check
      _
    $region10: #{spatial_attention.1} parent=5 // pred_check_branch
      %160 = sbr.rel (%p157) target = $region12
    $region11: #{spatial_attention.1} parent=5 // pred_region
      %s161 = ssub.s32 %s11, 1
      // Predicated region
      $region13: #{spatial_attention.1} parent=11 // pred_check
        %p162 = pneg %p58
      $region14: #{spatial_attention.1} parent=11 // pred_check_branch
        %164 = sbr.rel (%p162) target = $region16
      $region15: #{spatial_attention.1} parent=11 // pred_region
        _
      $region16: #{spatial_attention.1} parent=11 // pred_fallthru
        _
      // Predicated region
      $region17: #{spatial_attention.1} parent=11 // pred_check
        %p165 = pneg %p79
      $region18: #{spatial_attention.1} parent=11 // pred_check_branch
        %167 = sbr.rel (%p165) target = $region20
      $region19: #{spatial_attention.1} parent=11 // pred_region
        _
      $region20: #{spatial_attention.1} parent=11 // pred_fallthru
        _
      // Predicated region
      $region21: #{spatial_attention.1} parent=11 // pred_check
        %p168 = pneg %p100
      $region22: #{spatial_attention.1} parent=11 // pred_check_branch
        %170 = sbr.rel (%p168) target = $region24
      $region23: #{spatial_attention.1} parent=11 // pred_region
        _
      $region24: #{spatial_attention.1} parent=11 // pred_fallthru
        _
      // Predicated region
      $region25: #{spatial_attention.1} parent=11 // pred_check
        %p171 = pneg %p121
      $region26: #{spatial_attention.1} parent=11 // pred_check_branch
        %173 = sbr.rel (%p171) target = $region28
      $region27: #{spatial_attention.1} parent=11 // pred_region
        _
      $region28: #{spatial_attention.1} parent=11 // pred_fallthru
        _
    $region12: #{spatial_attention.1} parent=5 // pred_fallthru
      _
    %p174 = scmp.lt.s32.totalorder %s11, 2
    // Predicated region
    $region29: #{spatial_attention.1} parent=5 // pred_check
      %p175 = pneg %p174
    $region30: #{spatial_attention.1} parent=5 // pred_check_branch
      %177 = sbr.rel (%p175) target = $region32
    $region31: #{spatial_attention.1} parent=5 // pred_region
      // Predicated region
      $region33: #{spatial_attention.1} parent=31 // pred_check
        %p178 = pneg %p31
      $region34: #{spatial_attention.1} parent=31 // pred_check_branch
        %180 = sbr.rel (%p178) target = $region36
      $region35: #{spatial_attention.1} parent=31 // pred_region
        %p181 = scmp.lt.s32.totalorder %s11, 1
        %s182 = scalar_select %p181, %s11, 1
        %s183 = smul.addr %s182, 3
        %s184 = smul.addr %s183, 4
        %s185 = scalar_lea.vmem %s0, %s184
      $region36: #{spatial_attention.1} parent=31 // pred_fallthru
        _
    $region32: #{spatial_attention.1} parent=5 // pred_fallthru
      _
    %p186 = scmp.le.s32.totalorder 1, %s11
    %p187 = scmp.lt.s32.totalorder %s11, 3
    %p188 = pnand %p186, %p187
    %p189 = pneg %p188
    // Predicated region
    $region37: #{spatial_attention.1} parent=5 // pred_check
      _
    $region38: #{spatial_attention.1} parent=5 // pred_check_branch
      %191 = sbr.rel (%p188) target = $region40
    $region39: #{spatial_attention.1} parent=5 // pred_region
      %s192 = ssub.s32 %s11, 1
      %p193 = scmp.lt.s32.totalorder %s16, 1
      %s194 = scalar_select %p193, %s16, 1
      %s195 = smul.addr %s194, 3
      %s196 = smul.addr %s195, 4
      %s197 = scalar_lea.vmem %s0, %s196
      %p198 = pneg %p37
      %p199 = pneg %p34
      %p200 = pneg %p58
      %p201 = pneg %p55
      %p202 = pneg %p79
      %p203 = pneg %p76
      %p204 = pneg %p100
      %p205 = pneg %p97
      %p206 = pneg %p121
      %p207 = pneg %p118
      %p208 = pneg %p147
      %p209 = pneg %p144
      %p210 = scmp.lt.s32.totalorder %s16, 1
      %s211 = scalar_select %p210, %s16, 1
      %s212 = smul.addr %s211, 3
      %s213 = smul.addr %s212, 4
      %s214 = scalar_lea.vmem %s5, %s213
      %p215 = scmp.lt.s32.totalorder %s16, 1
      %s216 = scalar_select %p215, %s16, 1
      %s217 = smul.addr %s216, 3
      %s218 = smul.addr %s217, 4
      %s219 = scalar_lea.vmem %s0, %s218
      %p220 = scmp.lt.s32.totalorder %s16, 1
      %s221 = scalar_select %p220, %s16, 1
      %s222 = smul.addr %s221, 3
      %s223 = smul.addr %s222, 4
      %s224 = scalar_lea.vmem %s5, %s223
      %v225 = vld [vmem:[%s219] sm:$0xff]
      %v226 = vld [vmem:[%s219 + $0x8] sm:$0xf]
      %v228 = vcombine.high %v225, %v225
      %vm230 = vcmask 1043456
      %v231 = vsel %vm230, %v225, 0.0
      %v232 = vrot.slane %v231, 4
      %v233 = vadd.f32 %v231, %v232
      %v234 = vrot.slane %v233, 2
      %v235 = vadd.f32 %v233, %v234
      %v236 = vrot.slane %v235, 1
      %v237 = vadd.f32 %v235, %v236
      %v238 = vsel %vm230, %v228, 0.0
      %v239 = vrot.slane %v238, 4
      %v240 = vadd.f32 %v238, %v239
      %v241 = vrot.slane %v240, 2
      %v242 = vadd.f32 %v240, %v241
      %v243 = vrot.slane %v242, 1
      %v244 = vadd.f32 %v242, %v243
      %v245 = vsel %vm230, %v226, 0.0
      %v246 = vrot.slane %v245, 4
      %v247 = vadd.f32 %v245, %v246
      %v248 = vrot.slane %v247, 2
      %v249 = vadd.f32 %v247, %v248
      %v250 = vrot.slane %v249, 1
      %v251 = vadd.f32 %v249, %v250
      %v252 = vrcp.pop 4.0
      %v253 = vmul.f32 %v237, %v252
      %v254 = vmul.f32 %v244, %v252
      %v255 = vmul.f32 %v251, %v252
      %v256 = vsel %vm230, %v225, -inf
      %v257 = vrot.slane %v256, 4
      %v258 = vmax.f32 %v256, %v257
      %v259 = vrot.slane %v258, 2
      %v260 = vmax.f32 %v258, %v259
      %v261 = vrot.slane %v260, 1
      %v262 = vmax.f32 %v260, %v261
      %v263 = vsel %vm230, %v228, -inf
      %v264 = vrot.slane %v263, 4
      %v265 = vmax.f32 %v263, %v264
      %v266 = vrot.slane %v265, 2
      %v267 = vmax.f32 %v265, %v266
      %v268 = vrot.slane %v267, 1
      %v269 = vmax.f32 %v267, %v268
      %v270 = vsel %vm230, %v226, -inf
      %v271 = vrot.slane %v270, 4
      %v272 = vmax.f32 %v270, %v271
      %v273 = vrot.slane %v272, 2
      %v274 = vmax.f32 %v272, %v273
      %v275 = vrot.slane %v274, 1
      %v276 = vmax.f32 %v274, %v275
      %vm277 = vcmask 1040384
      %v278 = vsel %vm277, %v253, %v262
      %v279 = vsel %vm277, %v254, %v269
      %v280 = vsel %vm277, %v255, %v276
      %281 = vst [vmem:[#allocation2] sm:$0xff] 0.0
      %vm282 = vcmask 582656
      %283 = vst.msk [vmem:[#allocation2 + $0x8] sm:$0x3] %vm282, 0.0
      %v287 = vcombine.low %v278, %v279
      %v289 = vunpack.c.l.s4 1983009808
      %v290 = vunpack.c.0.s8 %v289
      %v291 = vlaneseq
      %v292 = vshrl.u32 %v291, 7
      %v293 = vsub.s32 %v290, %v292
      %v294 = vrot.slane %v287, %v293
      %v296 = vunpack.c.l.s4 1983009808
      %v297 = vunpack.c.0.s8 %v296
      %v298 = vlaneseq
      %v299 = vshrl.u32 %v298, 7
      %v300 = vsub.s32 %v297, %v299
      %v301 = vrot.slane %v280, %v300
      %v302 = vcombine.low %v294, %v301
      %303 = vrot.lane.b32.xlu0 %v302, 100
      %v304 = vpop.permute.xlu0 %303
      %v305 = vrot.slane %v304, 6
      %vm306 = vcmask 818176
      %v307 = vsel %vm306, %v305, %v304
      %vm309 = vcmask 1042208
      %vm310 = vcmask 1043458
      %vm311 = vmor %vm310, %vm309
      %vm312 = vcmask 1045508
      %vm313 = vmor %vm312, %vm311
      %vm314 = vcmask 818182
      %vm315 = vmor %vm314, %vm313
      %316 = vst.msk [vmem:[#allocation2] sm:$0xff] %vm315, %v307
      %317 = vst [vmem:[#allocation4 + $0x1e0] sm:$0xfc] 0.0
      %318 = vst [vmem:[#allocation4 + $0x1e8] sm:$0xfc] 0.0
      %319 = vst [vmem:[#allocation4 + $0x1f0] sm:$0xfc] 0.0
      %v320 = vld [vmem:[#allocation2] sm:$0x3f]
      %v322 = vcombine.high %v320, %v320
      %v324 = vunpack.c.l.s4 1983009808
      %v325 = vunpack.c.0.s8 %v324
      %v326 = vlaneseq
      %v327 = vshrl.u32 %v326, 7
      %v328 = vsub.s32 %v325, %v327
      %v329 = vrot.slane %v320, %v328
      %v331 = vunpack.c.l.s4 1983009808
      %v332 = vunpack.c.0.s8 %v331
      %v333 = vlaneseq
      %v334 = vshrl.u32 %v333, 7
      %v335 = vsub.s32 %v332, %v334
      %v336 = vrot.slane %v322, %v335
      %v337 = vcombine.high %v329, %v329
      %341 = vst [vmem:[#allocation4] sm:$0x3] %v329
      %342 = vst [vmem:[#allocation4 + $0x8] sm:$0x3] %v337
      %343 = vst [vmem:[#allocation4 + $0x10] sm:$0x3] %v336
      %v344 = vld [vmem:[#allocation2] sm:$0xff]
      %v346 = vcombine.low %v344, %v344
      %v348 = vunpack.c.l.s4 1983009808
      %v349 = vunpack.c.0.s8 %v348
      %v350 = vlaneseq
      %v351 = vshrl.u32 %v350, 7
      %v352 = vsub.s32 %v349, %v351
      %v353 = vrot.slane %v346, %v352
      %v355 = vunpack.c.l.s4 1983009808
      %v356 = vunpack.c.0.s8 %v355
      %v357 = vlaneseq
      %v358 = vshrl.u32 %v357, 7
      %v359 = vsub.s32 %v356, %v358
      %v360 = vrot.slane %v344, %v359
      %v361 = vcombine.high %v353, %v353
      %v362 = vcombine.high %v360, %v360
      %363 = vrot.lane.b32.xlu0 %v353, 127
      %v364 = vpop.permute.xlu0 %363
      %365 = vrot.lane.b32.xlu0 %v361, 127
      %v366 = vpop.permute.xlu0 %365
      %367 = vrot.lane.b32.xlu0 %v360, 127
      %v368 = vpop.permute.xlu0 %367
      %369 = vrot.lane.b32.xlu0 %v362, 127
      %v370 = vpop.permute.xlu0 %369
      %vm371 = vcmask 1039360
      %v372 = vsel %vm371, %v364, %v366
      %v373 = vsel %vm371, %v366, %v368
      %v374 = vsel %vm371, %v368, %v370
      %378 = vst [vmem:[#allocation4] sm:$0xc] %v372
      %379 = vst [vmem:[#allocation4 + $0x8] sm:$0xc] %v373
      %380 = vst [vmem:[#allocation4 + $0x10] sm:$0xc] %v374
      %v381 = vld [vmem:[#allocation2] sm:$0xff]
      %v383 = vcombine.high %v381, %v381
      %v385 = vunpack.c.l.s4 1983009808
      %v386 = vunpack.c.0.s8 %v385
      %v387 = vlaneseq
      %v388 = vshrl.u32 %v387, 7
      %v389 = vsub.s32 %v386, %v388
      %v390 = vrot.slane %v381, %v389
      %v392 = vunpack.c.l.s4 1983009808
      %v393 = vunpack.c.0.s8 %v392
      %v394 = vlaneseq
      %v395 = vshrl.u32 %v394, 7
      %v396 = vsub.s32 %v393, %v395
      %v397 = vrot.slane %v383, %v396
      %v398 = vcombine.low %v390, %v390
      %v399 = vcombine.low %v397, %v397
      %400 = vrot.lane.b32.xlu0 %v398, 126
      %v401 = vpop.permute.xlu0 %400
      %402 = vrot.lane.b32.xlu0 %v390, 126
      %v403 = vpop.permute.xlu0 %402
      %404 = vrot.lane.b32.xlu0 %v399, 126
      %v405 = vpop.permute.xlu0 %404
      %406 = vrot.lane.b32.xlu0 %v397, 126
      %v407 = vpop.permute.xlu0 %406
      %vm408 = vcmask 1031168
      %v409 = vsel %vm408, %v401, %v403
      %v410 = vsel %vm408, %v403, %v405
      %v411 = vsel %vm408, %v405, %v407
      %415 = vst [vmem:[#allocation4] sm:$0x30] %v409
      %416 = vst [vmem:[#allocation4 + $0x8] sm:$0x30] %v410
      %417 = vst [vmem:[#allocation4 + $0x10] sm:$0x30] %v411
      %v418 = vld [vmem:[#allocation2] sm:$0xff]
      %v420 = vcombine.low %v418, %v418
      %v422 = vunpack.c.l.s4 1983009808
      %v423 = vunpack.c.0.s8 %v422
      %v424 = vlaneseq
      %v425 = vshrl.u32 %v424, 7
      %v426 = vsub.s32 %v423, %v425
      %v427 = vrot.slane %v420, %v426
      %v429 = vunpack.c.l.s4 1983009808
      %v430 = vunpack.c.0.s8 %v429
      %v431 = vlaneseq
      %v432 = vshrl.u32 %v431, 7
      %v433 = vsub.s32 %v430, %v432
      %v434 = vrot.slane %v418, %v433
      %v435 = vcombine.low %v427, %v427
      %v436 = vcombine.low %v434, %v434
      %437 = vrot.lane.b32.xlu0 %v435, 125
      %v438 = vpop.permute.xlu0 %437
      %439 = vrot.lane.b32.xlu0 %v427, 125
      %v440 = vpop.permute.xlu0 %439
      %441 = vrot.lane.b32.xlu0 %v436, 125
      %v442 = vpop.permute.xlu0 %441
      %443 = vrot.lane.b32.xlu0 %v434, 125
      %v444 = vpop.permute.xlu0 %443
      %vm445 = vcmask 1022976
      %v446 = vsel %vm445, %v438, %v440
      %v447 = vsel %vm445, %v440, %v442
      %v448 = vsel %vm445, %v442, %v444
      %452 = vst [vmem:[#allocation4] sm:$0xc0] %v446
      %453 = vst [vmem:[#allocation4 + $0x8] sm:$0xc0] %v447
      %454 = vst [vmem:[#allocation4 + $0x10] sm:$0xc0] %v448
      %v455 = vld [vmem:[#allocation2] sm:$0xff]
      %v457 = vcombine.high %v455, %v455
      %v459 = vunpack.c.l.s4 1983009808
      %v460 = vunpack.c.0.s8 %v459
      %v461 = vlaneseq
      %v462 = vshrl.u32 %v461, 7
      %v463 = vsub.s32 %v460, %v462
      %v464 = vrot.slane %v455, %v463
      %v466 = vunpack.c.l.s4 1983009808
      %v467 = vunpack.c.0.s8 %v466
      %v468 = vlaneseq
      %v469 = vshrl.u32 %v468, 7
      %v470 = vsub.s32 %v467, %v469
      %v471 = vrot.slane %v457, %v470
      %v472 = vcombine.high %v464, %v464
      %v473 = vcombine.high %v471, %v471
      %474 = vrot.lane.b32.xlu0 %v464, 124
      %v475 = vpop.permute.xlu0 %474
      %476 = vrot.lane.b32.xlu0 %v472, 124
      %v477 = vpop.permute.xlu0 %476
      %478 = vrot.lane.b32.xlu0 %v471, 124
      %v479 = vpop.permute.xlu0 %478
      %480 = vrot.lane.b32.xlu0 %v473, 124
      %v481 = vpop.permute.xlu0 %480
      %vm482 = vcmask 1014784
      %v483 = vsel %vm482, %v475, %v477
      %v484 = vsel %vm482, %v477, %v479
      %v485 = vsel %vm482, %v479, %v481
      %489 = vst [vmem:[#allocation4 + $0x18] sm:$0x3] %v483
      %490 = vst [vmem:[#allocation4 + $0x20] sm:$0x3] %v484
      %491 = vst [vmem:[#allocation4 + $0x28] sm:$0x3] %v485
      %v492 = vld [vmem:[#allocation2] sm:$0xff]
      %v494 = vcombine.low %v492, %v492
      %v496 = vunpack.c.l.s4 1983009808
      %v497 = vunpack.c.0.s8 %v496
      %v498 = vlaneseq
      %v499 = vshrl.u32 %v498, 7
      %v500 = vsub.s32 %v497, %v499
      %v501 = vrot.slane %v494, %v500
      %v503 = vunpack.c.l.s4 1983009808
      %v504 = vunpack.c.0.s8 %v503
      %v505 = vlaneseq
      %v506 = vshrl.u32 %v505, 7
      %v507 = vsub.s32 %v504, %v506
      %v508 = vrot.slane %v492, %v507
      %v509 = vcombine.high %v501, %v501
      %v510 = vcombine.high %v508, %v508
      %511 = vrot.lane.b32.xlu0 %v501, 123
      %v512 = vpop.permute.xlu0 %511
      %513 = vrot.lane.b32.xlu0 %v509, 123
      %v514 = vpop.permute.xlu0 %513
      %515 = vrot.lane.b32.xlu0 %v508, 123
      %v516 = vpop.permute.xlu0 %515
      %517 = vrot.lane.b32.xlu0 %v510, 123
      %v518 = vpop.permute.xlu0 %517
      %vm519 = vcmask 1006592
      %v520 = vsel %vm519, %v512, %v514
      %v521 = vsel %vm519, %v514, %v516
      %v522 = vsel %vm519, %v516, %v518
      %526 = vst [vmem:[#allocation4 + $0x18] sm:$0xc] %v520
      %527 = vst [vmem:[#allocation4 + $0x20] sm:$0xc] %v521
      %528 = vst [vmem:[#allocation4 + $0x28] sm:$0xc] %v522
      %v529 = vld [vmem:[#allocation2] sm:$0xff]
      %v531 = vcombine.high %v529, %v529
      %v533 = vunpack.c.l.s4 1983009808
      %v534 = vunpack.c.0.s8 %v533
      %v535 = vlaneseq
      %v536 = vshrl.u32 %v535, 7
      %v537 = vsub.s32 %v534, %v536
      %v538 = vrot.slane %v529, %v537
      %v540 = vunpack.c.l.s4 1983009808
      %v541 = vunpack.c.0.s8 %v540
      %v542 = vlaneseq
      %v543 = vshrl.u32 %v542, 7
      %v544 = vsub.s32 %v541, %v543
      %v545 = vrot.slane %v531, %v544
      %v546 = vcombine.low %v538, %v538
      %v547 = vcombine.low %v545, %v545
      %548 = vrot.lane.b32.xlu0 %v546, 122
      %v549 = vpop.permute.xlu0 %548
      %550 = vrot.lane.b32.xlu0 %v538, 122
      %v551 = vpop.permute.xlu0 %550
      %552 = vrot.lane.b32.xlu0 %v547, 122
      %v553 = vpop.permute.xlu0 %552
      %554 = vrot.lane.b32.xlu0 %v545, 122
      %v555 = vpop.permute.xlu0 %554
      %vm556 = vcmask 998400
      %v557 = vsel %vm556, %v549, %v551
      %v558 = vsel %vm556, %v551, %v553
      %v559 = vsel %vm556, %v553, %v555
      %563 = vst [vmem:[#allocation4 + $0x18] sm:$0x30] %v557
      %564 = vst [vmem:[#allocation4 + $0x20] sm:$0x30] %v558
      %565 = vst [vmem:[#allocation4 + $0x28] sm:$0x30] %v559
      %v566 = vld [vmem:[#allocation2] sm:$0xff]
      %v568 = vcombine.low %v566, %v566
      %v570 = vunpack.c.l.s4 1983009808
      %v571 = vunpack.c.0.s8 %v570
      %v572 = vlaneseq
      %v573 = vshrl.u32 %v572, 7
      %v574 = vsub.s32 %v571, %v573
      %v575 = vrot.slane %v568, %v574
      %v577 = vunpack.c.l.s4 1983009808
      %v578 = vunpack.c.0.s8 %v577
      %v579 = vlaneseq
      %v580 = vshrl.u32 %v579, 7
      %v581 = vsub.s32 %v578, %v580
      %v582 = vrot.slane %v566, %v581
      %v583 = vcombine.low %v575, %v575
      %v584 = vcombine.low %v582, %v582
      %585 = vrot.lane.b32.xlu0 %v583, 121
      %v586 = vpop.permute.xlu0 %585
      %587 = vrot.lane.b32.xlu0 %v575, 121
      %v588 = vpop.permute.xlu0 %587
      %589 = vrot.lane.b32.xlu0 %v584, 121
      %v590 = vpop.permute.xlu0 %589
      %591 = vrot.lane.b32.xlu0 %v582, 121
      %v592 = vpop.permute.xlu0 %591
      %vm593 = vcmask 990208
      %v594 = vsel %vm593, %v586, %v588
      %v595 = vsel %vm593, %v588, %v590
      %v596 = vsel %vm593, %v590, %v592
      %600 = vst [vmem:[#allocation4 + $0x18] sm:$0xc0] %v594
      %601 = vst [vmem:[#allocation4 + $0x20] sm:$0xc0] %v595
      %602 = vst [vmem:[#allocation4 + $0x28] sm:$0xc0] %v596
      %v603 = vld [vmem:[#allocation2] sm:$0xff]
      %v605 = vcombine.high %v603, %v603
      %v607 = vunpack.c.l.s4 1983009808
      %v608 = vunpack.c.0.s8 %v607
      %v609 = vlaneseq
      %v610 = vshrl.u32 %v609, 7
      %v611 = vsub.s32 %v608, %v610
      %v612 = vrot.slane %v603, %v611
      %v614 = vunpack.c.l.s4 1983009808
      %v615 = vunpack.c.0.s8 %v614
      %v616 = vlaneseq
      %v617 = vshrl.u32 %v616, 7
      %v618 = vsub.s32 %v615, %v617
      %v619 = vrot.slane %v605, %v618
      %v620 = vcombine.high %v612, %v612
      %v621 = vcombine.high %v619, %v619
      %622 = vrot.lane.b32.xlu0 %v612, 120
      %v623 = vpop.permute.xlu0 %622
      %624 = vrot.lane.b32.xlu0 %v620, 120
      %v625 = vpop.permute.xlu0 %624
      %626 = vrot.lane.b32.xlu0 %v619, 120
      %v627 = vpop.permute.xlu0 %626
      %628 = vrot.lane.b32.xlu0 %v621, 120
      %v629 = vpop.permute.xlu0 %628
      %vm630 = vcmask 982016
      %v631 = vsel %vm630, %v623, %v625
      %v632 = vsel %vm630, %v625, %v627
      %v633 = vsel %vm630, %v627, %v629
      %637 = vst [vmem:[#allocation4 + $0x30] sm:$0x3] %v631
      %638 = vst [vmem:[#allocation4 + $0x38] sm:$0x3] %v632
      %639 = vst [vmem:[#allocation4 + $0x40] sm:$0x3] %v633
      %v640 = vld [vmem:[#allocation2] sm:$0xff]
      %v642 = vcombine.low %v640, %v640
      %v644 = vunpack.c.l.s4 1983009808
      %v645 = vunpack.c.0.s8 %v644
      %v646 = vlaneseq
      %v647 = vshrl.u32 %v646, 7
      %v648 = vsub.s32 %v645, %v647
      %v649 = vrot.slane %v642, %v648
      %v651 = vunpack.c.l.s4 1983009808
      %v652 = vunpack.c.0.s8 %v651
      %v653 = vlaneseq
      %v654 = vshrl.u32 %v653, 7
      %v655 = vsub.s32 %v652, %v654
      %v656 = vrot.slane %v640, %v655
      %v657 = vcombine.high %v649, %v649
      %v658 = vcombine.high %v656, %v656
      %659 = vrot.lane.b32.xlu0 %v649, 104
      %v660 = vpop.permute.xlu0 %659
      %661 = vrot.lane.b32.xlu0 %v657, 104
      %v662 = vpop.permute.xlu0 %661
      %663 = vrot.lane.b32.xlu0 %v656, 104
      %v664 = vpop.permute.xlu0 %663
      %665 = vrot.lane.b32.xlu0 %v658, 104
      %v666 = vpop.permute.xlu0 %665
      %vm667 = vcmask 850944
      %v668 = vsel %vm667, %v660, %v662
      %v669 = vsel %vm667, %v662, %v664
      %v670 = vsel %vm667, %v664, %v666
      %674 = vst [vmem:[#allocation4 + $0x30] sm:$0xc] %v668
      %675 = vst [vmem:[#allocation4 + $0x38] sm:$0xc] %v669
      %676 = vst [vmem:[#allocation4 + $0x40] sm:$0xc] %v670
      %v677 = vld [vmem:[#allocation2] sm:$0xff]
      %v679 = vcombine.high %v677, %v677
      %v681 = vunpack.c.l.s4 1983009808
      %v682 = vunpack.c.0.s8 %v681
      %v683 = vlaneseq
      %v684 = vshrl.u32 %v683, 7
      %v685 = vsub.s32 %v682, %v684
      %v686 = vrot.slane %v677, %v685
      %v688 = vunpack.c.l.s4 1983009808
      %v689 = vunpack.c.0.s8 %v688
      %v690 = vlaneseq
      %v691 = vshrl.u32 %v690, 7
      %v692 = vsub.s32 %v689, %v691
      %v693 = vrot.slane %v679, %v692
      %v694 = vcombine.low %v686, %v686
      %v695 = vcombine.low %v693, %v693
      %696 = vrot.lane.b32.xlu0 %v694, 103
      %v697 = vpop.permute.xlu0 %696
      %698 = vrot.lane.b32.xlu0 %v686, 103
      %v699 = vpop.permute.xlu0 %698
      %700 = vrot.lane.b32.xlu0 %v695, 103
      %v701 = vpop.permute.xlu0 %700
      %702 = vrot.lane.b32.xlu0 %v693, 103
      %v703 = vpop.permute.xlu0 %702
      %vm704 = vcmask 842752
      %v705 = vsel %vm704, %v697, %v699
      %v706 = vsel %vm704, %v699, %v701
      %v707 = vsel %vm704, %v701, %v703
      %711 = vst [vmem:[#allocation4 + $0x30] sm:$0x30] %v705
      %712 = vst [vmem:[#allocation4 + $0x38] sm:$0x30] %v706
      %713 = vst [vmem:[#allocation4 + $0x40] sm:$0x30] %v707
      %v714 = vld [vmem:[#allocation2] sm:$0xff]
      %v716 = vcombine.low %v714, %v714
      %v718 = vunpack.c.l.s4 1983009808
      %v719 = vunpack.c.0.s8 %v718
      %v720 = vlaneseq
      %v721 = vshrl.u32 %v720, 7
      %v722 = vsub.s32 %v719, %v721
      %v723 = vrot.slane %v716, %v722
      %v725 = vunpack.c.l.s4 1983009808
      %v726 = vunpack.c.0.s8 %v725
      %v727 = vlaneseq
      %v728 = vshrl.u32 %v727, 7
      %v729 = vsub.s32 %v726, %v728
      %v730 = vrot.slane %v714, %v729
      %v731 = vcombine.low %v723, %v723
      %v732 = vcombine.low %v730, %v730
      %733 = vrot.lane.b32.xlu0 %v731, 102
      %v734 = vpop.permute.xlu0 %733
      %735 = vrot.lane.b32.xlu0 %v723, 102
      %v736 = vpop.permute.xlu0 %735
      %737 = vrot.lane.b32.xlu0 %v732, 102
      %v738 = vpop.permute.xlu0 %737
      %739 = vrot.lane.b32.xlu0 %v730, 102
      %v740 = vpop.permute.xlu0 %739
      %vm741 = vcmask 834560
      %v742 = vsel %vm741, %v734, %v736
      %v743 = vsel %vm741, %v736, %v738
      %v744 = vsel %vm741, %v738, %v740
      %748 = vst [vmem:[#allocation4 + $0x30] sm:$0xc0] %v742
      %749 = vst [vmem:[#allocation4 + $0x38] sm:$0xc0] %v743
      %750 = vst [vmem:[#allocation4 + $0x40] sm:$0xc0] %v744
      %v751 = vld [vmem:[#allocation2] sm:$0xff]
      %v753 = vcombine.high %v751, %v751
      %v755 = vunpack.c.l.s4 1983009808
      %v756 = vunpack.c.0.s8 %v755
      %v757 = vlaneseq
      %v758 = vshrl.u32 %v757, 7
      %v759 = vsub.s32 %v756, %v758
      %v760 = vrot.slane %v751, %v759
      %v762 = vunpack.c.l.s4 1983009808
      %v763 = vunpack.c.0.s8 %v762
      %v764 = vlaneseq
      %v765 = vshrl.u32 %v764, 7
      %v766 = vsub.s32 %v763, %v765
      %v767 = vrot.slane %v753, %v766
      %v768 = vcombine.high %v760, %v760
      %v769 = vcombine.high %v767, %v767
      %770 = vrot.lane.b32.xlu0 %v760, 101
      %v771 = vpop.permute.xlu0 %770
      %772 = vrot.lane.b32.xlu0 %v768, 101
      %v773 = vpop.permute.xlu0 %772
      %774 = vrot.lane.b32.xlu0 %v767, 101
      %v775 = vpop.permute.xlu0 %774
      %776 = vrot.lane.b32.xlu0 %v769, 101
      %v777 = vpop.permute.xlu0 %776
      %vm778 = vcmask 826368
      %v779 = vsel %vm778, %v771, %v773
      %v780 = vsel %vm778, %v773, %v775
      %v781 = vsel %vm778, %v775, %v777
      %785 = vst [vmem:[#allocation4 + $0x48] sm:$0x3] %v779
      %786 = vst [vmem:[#allocation4 + $0x50] sm:$0x3] %v780
      %787 = vst [vmem:[#allocation4 + $0x58] sm:$0x3] %v781
      %v788 = vld [vmem:[#allocation2] sm:$0xff]
      %v790 = vcombine.low %v788, %v788
      %v792 = vunpack.c.l.s4 1983009808
      %v793 = vunpack.c.0.s8 %v792
      %v794 = vlaneseq
      %v795 = vshrl.u32 %v794, 7
      %v796 = vsub.s32 %v793, %v795
      %v797 = vrot.slane %v790, %v796
      %v799 = vunpack.c.l.s4 1983009808
      %v800 = vunpack.c.0.s8 %v799
      %v801 = vlaneseq
      %v802 = vshrl.u32 %v801, 7
      %v803 = vsub.s32 %v800, %v802
      %v804 = vrot.slane %v788, %v803
      %v805 = vcombine.high %v797, %v797
      %v806 = vcombine.high %v804, %v804
      %807 = vrot.lane.b32.xlu0 %v797, 100
      %v808 = vpop.permute.xlu0 %807
      %809 = vrot.lane.b32.xlu0 %v805, 100
      %v810 = vpop.permute.xlu0 %809
      %811 = vrot.lane.b32.xlu0 %v804, 100
      %v812 = vpop.permute.xlu0 %811
      %813 = vrot.lane.b32.xlu0 %v806, 100
      %v814 = vpop.permute.xlu0 %813
      %v815 = vsel %vm306, %v808, %v810
      %v816 = vsel %vm306, %v810, %v812
      %v817 = vsel %vm306, %v812, %v814
      %821 = vst [vmem:[#allocation4 + $0x48] sm:$0xc] %v815
      %822 = vst [vmem:[#allocation4 + $0x50] sm:$0xc] %v816
      %823 = vst [vmem:[#allocation4 + $0x58] sm:$0xc] %v817
      %v824 = vld [vmem:[#allocation2] sm:$0xff]
      %v826 = vcombine.high %v824, %v824
      %v828 = vunpack.c.l.s4 1983009808
      %v829 = vunpack.c.0.s8 %v828
      %v830 = vlaneseq
      %v831 = vshrl.u32 %v830, 7
      %v832 = vsub.s32 %v829, %v831
      %v833 = vrot.slane %v824, %v832
      %v835 = vunpack.c.l.s4 1983009808
      %v836 = vunpack.c.0.s8 %v835
      %v837 = vlaneseq
      %v838 = vshrl.u32 %v837, 7
      %v839 = vsub.s32 %v836, %v838
      %v840 = vrot.slane %v826, %v839
      %v841 = vcombine.low %v833, %v833
      %v842 = vcombine.low %v840, %v840
      %843 = vrot.lane.b32.xlu0 %v841, 99
      %v844 = vpop.permute.xlu0 %843
      %845 = vrot.lane.b32.xlu0 %v833, 99
      %v846 = vpop.permute.xlu0 %845
      %847 = vrot.lane.b32.xlu0 %v842, 99
      %v848 = vpop.permute.xlu0 %847
      %849 = vrot.lane.b32.xlu0 %v840, 99
      %v850 = vpop.permute.xlu0 %849
      %vm851 = vcmask 809984
      %v852 = vsel %vm851, %v844, %v846
      %v853 = vsel %vm851, %v846, %v848
      %v854 = vsel %vm851, %v848, %v850
      %858 = vst [vmem:[#allocation4 + $0x48] sm:$0x30] %v852
      %859 = vst [vmem:[#allocation4 + $0x50] sm:$0x30] %v853
      %860 = vst [vmem:[#allocation4 + $0x58] sm:$0x30] %v854
      %v861 = vld [vmem:[#allocation2] sm:$0xff]
      %v863 = vcombine.low %v861, %v861
      %v865 = vunpack.c.l.s4 1983009808
      %v866 = vunpack.c.0.s8 %v865
      %v867 = vlaneseq
      %v868 = vshrl.u32 %v867, 7
      %v869 = vsub.s32 %v866, %v868
      %v870 = vrot.slane %v863, %v869
      %v872 = vunpack.c.l.s4 1983009808
      %v873 = vunpack.c.0.s8 %v872
      %v874 = vlaneseq
      %v875 = vshrl.u32 %v874, 7
      %v876 = vsub.s32 %v873, %v875
      %v877 = vrot.slane %v861, %v876
      %v878 = vcombine.low %v870, %v870
      %v879 = vcombine.low %v877, %v877
      %880 = vrot.lane.b32.xlu0 %v878, 98
      %v881 = vpop.permute.xlu0 %880
      %882 = vrot.lane.b32.xlu0 %v870, 98
      %v883 = vpop.permute.xlu0 %882
      %884 = vrot.lane.b32.xlu0 %v879, 98
      %v885 = vpop.permute.xlu0 %884
      %886 = vrot.lane.b32.xlu0 %v877, 98
      %v887 = vpop.permute.xlu0 %886
      %vm888 = vcmask 801792
      %v889 = vsel %vm888, %v881, %v883
      %v890 = vsel %vm888, %v883, %v885
      %v891 = vsel %vm888, %v885, %v887
      %895 = vst [vmem:[#allocation4 + $0x48] sm:$0xc0] %v889
      %896 = vst [vmem:[#allocation4 + $0x50] sm:$0xc0] %v890
      %897 = vst [vmem:[#allocation4 + $0x58] sm:$0xc0] %v891
      %v898 = vld [vmem:[#allocation2] sm:$0xff]
      %v900 = vcombine.high %v898, %v898
      %v902 = vunpack.c.l.s4 1983009808
      %v903 = vunpack.c.0.s8 %v902
      %v904 = vlaneseq
      %v905 = vshrl.u32 %v904, 7
      %v906 = vsub.s32 %v903, %v905
      %v907 = vrot.slane %v898, %v906
      %v909 = vunpack.c.l.s4 1983009808
      %v910 = vunpack.c.0.s8 %v909
      %v911 = vlaneseq
      %v912 = vshrl.u32 %v911, 7
      %v913 = vsub.s32 %v910, %v912
      %v914 = vrot.slane %v900, %v913
      %v915 = vcombine.high %v907, %v907
      %v916 = vcombine.high %v914, %v914
      %917 = vrot.lane.b32.xlu0 %v907, 97
      %v918 = vpop.permute.xlu0 %917
      %919 = vrot.lane.b32.xlu0 %v915, 97
      %v920 = vpop.permute.xlu0 %919
      %921 = vrot.lane.b32.xlu0 %v914, 97
      %v922 = vpop.permute.xlu0 %921
      %923 = vrot.lane.b32.xlu0 %v916, 97
      %v924 = vpop.permute.xlu0 %923
      %vm925 = vcmask 793600
      %v926 = vsel %vm925, %v918, %v920
      %v927 = vsel %vm925, %v920, %v922
      %v928 = vsel %vm925, %v922, %v924
      %932 = vst [vmem:[#allocation4 + $0x60] sm:$0x3] %v926
      %933 = vst [vmem:[#allocation4 + $0x68] sm:$0x3] %v927
      %934 = vst [vmem:[#allocation4 + $0x70] sm:$0x3] %v928
      %v935 = vld [vmem:[#allocation2] sm:$0xff]
      %v937 = vcombine.low %v935, %v935
      %v939 = vunpack.c.l.s4 1983009808
      %v940 = vunpack.c.0.s8 %v939
      %v941 = vlaneseq
      %v942 = vshrl.u32 %v941, 7
      %v943 = vsub.s32 %v940, %v942
      %v944 = vrot.slane %v937, %v943
      %v946 = vunpack.c.l.s4 1983009808
      %v947 = vunpack.c.0.s8 %v946
      %v948 = vlaneseq
      %v949 = vshrl.u32 %v948, 7
      %v950 = vsub.s32 %v947, %v949
      %v951 = vrot.slane %v935, %v950
      %v952 = vcombine.high %v944, %v944
      %v953 = vcombine.high %v951, %v951
      %954 = vrot.lane.b32.xlu0 %v944, 96
      %v955 = vpop.permute.xlu0 %954
      %956 = vrot.lane.b32.xlu0 %v952, 96
      %v957 = vpop.permute.xlu0 %956
      %958 = vrot.lane.b32.xlu0 %v951, 96
      %v959 = vpop.permute.xlu0 %958
      %960 = vrot.lane.b32.xlu0 %v953, 96
      %v961 = vpop.permute.xlu0 %960
      %vm962 = vcmask 785408
      %v963 = vsel %vm962, %v955, %v957
      %v964 = vsel %vm962, %v957, %v959
      %v965 = vsel %vm962, %v959, %v961
      %969 = vst [vmem:[#allocation4 + $0x60] sm:$0xc] %v963
      %970 = vst [vmem:[#allocation4 + $0x68] sm:$0xc] %v964
      %971 = vst [vmem:[#allocation4 + $0x70] sm:$0xc] %v965
      %v972 = vld [vmem:[#allocation2] sm:$0xff]
      %v974 = vcombine.high %v972, %v972
      %v976 = vunpack.c.l.s4 1983009808
      %v977 = vunpack.c.0.s8 %v976
      %v978 = vlaneseq
      %v979 = vshrl.u32 %v978, 7
      %v980 = vsub.s32 %v977, %v979
      %v981 = vrot.slane %v972, %v980
      %v983 = vunpack.c.l.s4 1983009808
      %v984 = vunpack.c.0.s8 %v983
      %v985 = vlaneseq
      %v986 = vshrl.u32 %v985, 7
      %v987 = vsub.s32 %v984, %v986
      %v988 = vrot.slane %v974, %v987
      %v989 = vcombine.low %v981, %v981
      %v990 = vcombine.low %v988, %v988
      %991 = vrot.lane.b32.xlu0 %v989, 80
      %v992 = vpop.permute.xlu0 %991
      %993 = vrot.lane.b32.xlu0 %v981, 80
      %v994 = vpop.permute.xlu0 %993
      %995 = vrot.lane.b32.xlu0 %v990, 80
      %v996 = vpop.permute.xlu0 %995
      %997 = vrot.lane.b32.xlu0 %v988, 80
      %v998 = vpop.permute.xlu0 %997
      %vm999 = vcmask 654336
      %v1000 = vsel %vm999, %v992, %v994
      %v1001 = vsel %vm999, %v994, %v996
      %v1002 = vsel %vm999, %v996, %v998
      %1006 = vst [vmem:[#allocation4 + $0x60] sm:$0x30] %v1000
      %1007 = vst [vmem:[#allocation4 + $0x68] sm:$0x30] %v1001
      %1008 = vst [vmem:[#allocation4 + $0x70] sm:$0x30] %v1002
      %v1009 = vld [vmem:[#allocation2] sm:$0xff]
      %v1011 = vcombine.low %v1009, %v1009
      %v1013 = vunpack.c.l.s4 1983009808
      %v1014 = vunpack.c.0.s8 %v1013
      %v1015 = vlaneseq
      %v1016 = vshrl.u32 %v1015, 7
      %v1017 = vsub.s32 %v1014, %v1016
      %v1018 = vrot.slane %v1011, %v1017
      %v1020 = vunpack.c.l.s4 1983009808
      %v1021 = vunpack.c.0.s8 %v1020
      %v1022 = vlaneseq
      %v1023 = vshrl.u32 %v1022, 7
      %v1024 = vsub.s32 %v1021, %v1023
      %v1025 = vrot.slane %v1009, %v1024
      %v1026 = vcombine.low %v1018, %v1018
      %v1027 = vcombine.low %v1025, %v1025
      %1028 = vrot.lane.b32.xlu0 %v1026, 79
      %v1029 = vpop.permute.xlu0 %1028
      %1030 = vrot.lane.b32.xlu0 %v1018, 79
      %v1031 = vpop.permute.xlu0 %1030
      %1032 = vrot.lane.b32.xlu0 %v1027, 79
      %v1033 = vpop.permute.xlu0 %1032
      %1034 = vrot.lane.b32.xlu0 %v1025, 79
      %v1035 = vpop.permute.xlu0 %1034
      %vm1036 = vcmask 646144
      %v1037 = vsel %vm1036, %v1029, %v1031
      %v1038 = vsel %vm1036, %v1031, %v1033
      %v1039 = vsel %vm1036, %v1033, %v1035
      %1043 = vst [vmem:[#allocation4 + $0x60] sm:$0xc0] %v1037
      %1044 = vst [vmem:[#allocation4 + $0x68] sm:$0xc0] %v1038
      %1045 = vst [vmem:[#allocation4 + $0x70] sm:$0xc0] %v1039
      %v1046 = vld [vmem:[#allocation2] sm:$0xff]
      %v1048 = vcombine.high %v1046, %v1046
      %v1050 = vunpack.c.l.s4 1983009808
      %v1051 = vunpack.c.0.s8 %v1050
      %v1052 = vlaneseq
      %v1053 = vshrl.u32 %v1052, 7
      %v1054 = vsub.s32 %v1051, %v1053
      %v1055 = vrot.slane %v1046, %v1054
      %v1057 = vunpack.c.l.s4 1983009808
      %v1058 = vunpack.c.0.s8 %v1057
      %v1059 = vlaneseq
      %v1060 = vshrl.u32 %v1059, 7
      %v1061 = vsub.s32 %v1058, %v1060
      %v1062 = vrot.slane %v1048, %v1061
      %v1063 = vcombine.high %v1055, %v1055
      %v1064 = vcombine.high %v1062, %v1062
      %1065 = vrot.lane.b32.xlu0 %v1055, 78
      %v1066 = vpop.permute.xlu0 %1065
      %1067 = vrot.lane.b32.xlu0 %v1063, 78
      %v1068 = vpop.permute.xlu0 %1067
      %1069 = vrot.lane.b32.xlu0 %v1062, 78
      %v1070 = vpop.permute.xlu0 %1069
      %1071 = vrot.lane.b32.xlu0 %v1064, 78
      %v1072 = vpop.permute.xlu0 %1071
      %vm1073 = vcmask 637952
      %v1074 = vsel %vm1073, %v1066, %v1068
      %v1075 = vsel %vm1073, %v1068, %v1070
      %v1076 = vsel %vm1073, %v1070, %v1072
      %1080 = vst [vmem:[#allocation4 + $0x78] sm:$0x3] %v1074
      %1081 = vst [vmem:[#allocation4 + $0x80] sm:$0x3] %v1075
      %1082 = vst [vmem:[#allocation4 + $0x88] sm:$0x3] %v1076
      %v1083 = vld [vmem:[#allocation2] sm:$0xff]
      %v1085 = vcombine.low %v1083, %v1083
      %v1087 = vunpack.c.l.s4 1983009808
      %v1088 = vunpack.c.0.s8 %v1087
      %v1089 = vlaneseq
      %v1090 = vshrl.u32 %v1089, 7
      %v1091 = vsub.s32 %v1088, %v1090
      %v1092 = vrot.slane %v1085, %v1091
      %v1094 = vunpack.c.l.s4 1983009808
      %v1095 = vunpack.c.0.s8 %v1094
      %v1096 = vlaneseq
      %v1097 = vshrl.u32 %v1096, 7
      %v1098 = vsub.s32 %v1095, %v1097
      %v1099 = vrot.slane %v1083, %v1098
      %v1100 = vcombine.high %v1092, %v1092
      %v1101 = vcombine.high %v1099, %v1099
      %1102 = vrot.lane.b32.xlu0 %v1092, 77
      %v1103 = vpop.permute.xlu0 %1102
      %1104 = vrot.lane.b32.xlu0 %v1100, 77
      %v1105 = vpop.permute.xlu0 %1104
      %1106 = vrot.lane.b32.xlu0 %v1099, 77
      %v1107 = vpop.permute.xlu0 %1106
      %1108 = vrot.lane.b32.xlu0 %v1101, 77
      %v1109 = vpop.permute.xlu0 %1108
      %vm1110 = vcmask 629760
      %v1111 = vsel %vm1110, %v1103, %v1105
      %v1112 = vsel %vm1110, %v1105, %v1107
      %v1113 = vsel %vm1110, %v1107, %v1109
      %1117 = vst [vmem:[#allocation4 + $0x78] sm:$0xc] %v1111
      %1118 = vst [vmem:[#allocation4 + $0x80] sm:$0xc] %v1112
      %1119 = vst [vmem:[#allocation4 + $0x88] sm:$0xc] %v1113
      %v1120 = vld [vmem:[#allocation2] sm:$0xff]
      %v1122 = vcombine.high %v1120, %v1120
      %v1124 = vunpack.c.l.s4 1983009808
      %v1125 = vunpack.c.0.s8 %v1124
      %v1126 = vlaneseq
      %v1127 = vshrl.u32 %v1126, 7
      %v1128 = vsub.s32 %v1125, %v1127
      %v1129 = vrot.slane %v1120, %v1128
      %v1131 = vunpack.c.l.s4 1983009808
      %v1132 = vunpack.c.0.s8 %v1131
      %v1133 = vlaneseq
      %v1134 = vshrl.u32 %v1133, 7
      %v1135 = vsub.s32 %v1132, %v1134
      %v1136 = vrot.slane %v1122, %v1135
      %v1137 = vcombine.low %v1129, %v1129
      %v1138 = vcombine.low %v1136, %v1136
      %1139 = vrot.lane.b32.xlu0 %v1137, 76
      %v1140 = vpop.permute.xlu0 %1139
      %1141 = vrot.lane.b32.xlu0 %v1129, 76
      %v1142 = vpop.permute.xlu0 %1141
      %1143 = vrot.lane.b32.xlu0 %v1138, 76
      %v1144 = vpop.permute.xlu0 %1143
      %1145 = vrot.lane.b32.xlu0 %v1136, 76
      %v1146 = vpop.permute.xlu0 %1145
      %vm1147 = vcmask 621568
      %v1148 = vsel %vm1147, %v1140, %v1142
      %v1149 = vsel %vm1147, %v1142, %v1144
      %v1150 = vsel %vm1147, %v1144, %v1146
      %1154 = vst [vmem:[#allocation4 + $0x78] sm:$0x30] %v1148
      %1155 = vst [vmem:[#allocation4 + $0x80] sm:$0x30] %v1149
      %1156 = vst [vmem:[#allocation4 + $0x88] sm:$0x30] %v1150
      %v1157 = vld [vmem:[#allocation2] sm:$0xff]
      %v1159 = vcombine.low %v1157, %v1157
      %v1161 = vunpack.c.l.s4 1983009808
      %v1162 = vunpack.c.0.s8 %v1161
      %v1163 = vlaneseq
      %v1164 = vshrl.u32 %v1163, 7
      %v1165 = vsub.s32 %v1162, %v1164
      %v1166 = vrot.slane %v1159, %v1165
      %v1168 = vunpack.c.l.s4 1983009808
      %v1169 = vunpack.c.0.s8 %v1168
      %v1170 = vlaneseq
      %v1171 = vshrl.u32 %v1170, 7
      %v1172 = vsub.s32 %v1169, %v1171
      %v1173 = vrot.slane %v1157, %v1172
      %v1174 = vcombine.low %v1166, %v1166
      %v1175 = vcombine.low %v1173, %v1173
      %1176 = vrot.lane.b32.xlu0 %v1174, 75
      %v1177 = vpop.permute.xlu0 %1176
      %1178 = vrot.lane.b32.xlu0 %v1166, 75
      %v1179 = vpop.permute.xlu0 %1178
      %1180 = vrot.lane.b32.xlu0 %v1175, 75
      %v1181 = vpop.permute.xlu0 %1180
      %1182 = vrot.lane.b32.xlu0 %v1173, 75
      %v1183 = vpop.permute.xlu0 %1182
      %vm1184 = vcmask 613376
      %v1185 = vsel %vm1184, %v1177, %v1179
      %v1186 = vsel %vm1184, %v1179, %v1181
      %v1187 = vsel %vm1184, %v1181, %v1183
      %1191 = vst [vmem:[#allocation4 + $0x78] sm:$0xc0] %v1185
      %1192 = vst [vmem:[#allocation4 + $0x80] sm:$0xc0] %v1186
      %1193 = vst [vmem:[#allocation4 + $0x88] sm:$0xc0] %v1187
      %v1194 = vld [vmem:[#allocation2] sm:$0xff]
      %v1196 = vcombine.high %v1194, %v1194
      %v1198 = vunpack.c.l.s4 1983009808
      %v1199 = vunpack.c.0.s8 %v1198
      %v1200 = vlaneseq
      %v1201 = vshrl.u32 %v1200, 7
      %v1202 = vsub.s32 %v1199, %v1201
      %v1203 = vrot.slane %v1194, %v1202
      %v1205 = vunpack.c.l.s4 1983009808
      %v1206 = vunpack.c.0.s8 %v1205
      %v1207 = vlaneseq
      %v1208 = vshrl.u32 %v1207, 7
      %v1209 = vsub.s32 %v1206, %v1208
      %v1210 = vrot.slane %v1196, %v1209
      %v1211 = vcombine.high %v1203, %v1203
      %v1212 = vcombine.high %v1210, %v1210
      %1213 = vrot.lane.b32.xlu0 %v1203, 74
      %v1214 = vpop.permute.xlu0 %1213
      %1215 = vrot.lane.b32.xlu0 %v1211, 74
      %v1216 = vpop.permute.xlu0 %1215
      %1217 = vrot.lane.b32.xlu0 %v1210, 74
      %v1218 = vpop.permute.xlu0 %1217
      %1219 = vrot.lane.b32.xlu0 %v1212, 74
      %v1220 = vpop.permute.xlu0 %1219
      %vm1221 = vcmask 605184
      %v1222 = vsel %vm1221, %v1214, %v1216
      %v1223 = vsel %vm1221, %v1216, %v1218
      %v1224 = vsel %vm1221, %v1218, %v1220
      %1228 = vst [vmem:[#allocation4 + $0x90] sm:$0x3] %v1222
      %1229 = vst [vmem:[#allocation4 + $0x98] sm:$0x3] %v1223
      %1230 = vst [vmem:[#allocation4 + $0xa0] sm:$0x3] %v1224
      %v1231 = vld [vmem:[#allocation2] sm:$0xff]
      %v1233 = vcombine.low %v1231, %v1231
      %v1235 = vunpack.c.l.s4 1983009808
      %v1236 = vunpack.c.0.s8 %v1235
      %v1237 = vlaneseq
      %v1238 = vshrl.u32 %v1237, 7
      %v1239 = vsub.s32 %v1236, %v1238
      %v1240 = vrot.slane %v1233, %v1239
      %v1242 = vunpack.c.l.s4 1983009808
      %v1243 = vunpack.c.0.s8 %v1242
      %v1244 = vlaneseq
      %v1245 = vshrl.u32 %v1244, 7
      %v1246 = vsub.s32 %v1243, %v1245
      %v1247 = vrot.slane %v1231, %v1246
      %v1248 = vcombine.high %v1240, %v1240
      %v1249 = vcombine.high %v1247, %v1247
      %1250 = vrot.lane.b32.xlu0 %v1240, 73
      %v1251 = vpop.permute.xlu0 %1250
      %1252 = vrot.lane.b32.xlu0 %v1248, 73
      %v1253 = vpop.permute.xlu0 %1252
      %1254 = vrot.lane.b32.xlu0 %v1247, 73
      %v1255 = vpop.permute.xlu0 %1254
      %1256 = vrot.lane.b32.xlu0 %v1249, 73
      %v1257 = vpop.permute.xlu0 %1256
      %vm1258 = vcmask 596992
      %v1259 = vsel %vm1258, %v1251, %v1253
      %v1260 = vsel %vm1258, %v1253, %v1255
      %v1261 = vsel %vm1258, %v1255, %v1257
      %1265 = vst [vmem:[#allocation4 + $0x90] sm:$0xc] %v1259
      %1266 = vst [vmem:[#allocation4 + $0x98] sm:$0xc] %v1260
      %1267 = vst [vmem:[#allocation4 + $0xa0] sm:$0xc] %v1261
      %v1268 = vld [vmem:[#allocation2] sm:$0xff]
      %v1270 = vcombine.high %v1268, %v1268
      %v1272 = vunpack.c.l.s4 1983009808
      %v1273 = vunpack.c.0.s8 %v1272
      %v1274 = vlaneseq
      %v1275 = vshrl.u32 %v1274, 7
      %v1276 = vsub.s32 %v1273, %v1275
      %v1277 = vrot.slane %v1268, %v1276
      %v1279 = vunpack.c.l.s4 1983009808
      %v1280 = vunpack.c.0.s8 %v1279
      %v1281 = vlaneseq
      %v1282 = vshrl.u32 %v1281, 7
      %v1283 = vsub.s32 %v1280, %v1282
      %v1284 = vrot.slane %v1270, %v1283
      %v1285 = vcombine.low %v1277, %v1277
      %v1286 = vcombine.low %v1284, %v1284
      %1287 = vrot.lane.b32.xlu0 %v1285, 72
      %v1288 = vpop.permute.xlu0 %1287
      %1289 = vrot.lane.b32.xlu0 %v1277, 72
      %v1290 = vpop.permute.xlu0 %1289
      %1291 = vrot.lane.b32.xlu0 %v1286, 72
      %v1292 = vpop.permute.xlu0 %1291
      %1293 = vrot.lane.b32.xlu0 %v1284, 72
      %v1294 = vpop.permute.xlu0 %1293
      %vm1295 = vcmask 588800
      %v1296 = vsel %vm1295, %v1288, %v1290
      %v1297 = vsel %vm1295, %v1290, %v1292
      %v1298 = vsel %vm1295, %v1292, %v1294
      %1302 = vst [vmem:[#allocation4 + $0x90] sm:$0x30] %v1296
      %1303 = vst [vmem:[#allocation4 + $0x98] sm:$0x30] %v1297
      %1304 = vst [vmem:[#allocation4 + $0xa0] sm:$0x30] %v1298
      %v1305 = vld [vmem:[#allocation2] sm:$0xff]
      %v1307 = vcombine.low %v1305, %v1305
      %v1309 = vunpack.c.l.s4 1983009808
      %v1310 = vunpack.c.0.s8 %v1309
      %v1311 = vlaneseq
      %v1312 = vshrl.u32 %v1311, 7
      %v1313 = vsub.s32 %v1310, %v1312
      %v1314 = vrot.slane %v1307, %v1313
      %v1316 = vunpack.c.l.s4 1983009808
      %v1317 = vunpack.c.0.s8 %v1316
      %v1318 = vlaneseq
      %v1319 = vshrl.u32 %v1318, 7
      %v1320 = vsub.s32 %v1317, %v1319
      %v1321 = vrot.slane %v1305, %v1320
      %v1322 = vcombine.low %v1314, %v1314
      %v1323 = vcombine.low %v1321, %v1321
      %1324 = vrot.lane.b32.xlu0 %v1322, 56
      %v1325 = vpop.permute.xlu0 %1324
      %1326 = vrot.lane.b32.xlu0 %v1314, 56
      %v1327 = vpop.permute.xlu0 %1326
      %1328 = vrot.lane.b32.xlu0 %v1323, 56
      %v1329 = vpop.permute.xlu0 %1328
      %1330 = vrot.lane.b32.xlu0 %v1321, 56
      %v1331 = vpop.permute.xlu0 %1330
      %vm1332 = vcmask 457728
      %v1333 = vsel %vm1332, %v1325, %v1327
      %v1334 = vsel %vm1332, %v1327, %v1329
      %v1335 = vsel %vm1332, %v1329, %v1331
      %1339 = vst [vmem:[#allocation4 + $0x90] sm:$0xc0] %v1333
      %1340 = vst [vmem:[#allocation4 + $0x98] sm:$0xc0] %v1334
      %1341 = vst [vmem:[#allocation4 + $0xa0] sm:$0xc0] %v1335
      %v1342 = vld [vmem:[#allocation2] sm:$0xff]
      %v1344 = vcombine.high %v1342, %v1342
      %v1346 = vunpack.c.l.s4 1983009808
      %v1347 = vunpack.c.0.s8 %v1346
      %v1348 = vlaneseq
      %v1349 = vshrl.u32 %v1348, 7
      %v1350 = vsub.s32 %v1347, %v1349
      %v1351 = vrot.slane %v1342, %v1350
      %v1353 = vunpack.c.l.s4 1983009808
      %v1354 = vunpack.c.0.s8 %v1353
      %v1355 = vlaneseq
      %v1356 = vshrl.u32 %v1355, 7
      %v1357 = vsub.s32 %v1354, %v1356
      %v1358 = vrot.slane %v1344, %v1357
      %v1359 = vcombine.high %v1351, %v1351
      %v1360 = vcombine.high %v1358, %v1358
      %1361 = vrot.lane.b32.xlu0 %v1351, 55
      %v1362 = vpop.permute.xlu0 %1361
      %1363 = vrot.lane.b32.xlu0 %v1359, 55
      %v1364 = vpop.permute.xlu0 %1363
      %1365 = vrot.lane.b32.xlu0 %v1358, 55
      %v1366 = vpop.permute.xlu0 %1365
      %1367 = vrot.lane.b32.xlu0 %v1360, 55
      %v1368 = vpop.permute.xlu0 %1367
      %vm1369 = vcmask 449536
      %v1370 = vsel %vm1369, %v1362, %v1364
      %v1371 = vsel %vm1369, %v1364, %v1366
      %v1372 = vsel %vm1369, %v1366, %v1368
      %1376 = vst [vmem:[#allocation4 + $0xa8] sm:$0x3] %v1370
      %1377 = vst [vmem:[#allocation4 + $0xb0] sm:$0x3] %v1371
      %1378 = vst [vmem:[#allocation4 + $0xb8] sm:$0x3] %v1372
      %v1379 = vld [vmem:[#allocation2] sm:$0xff]
      %v1381 = vcombine.low %v1379, %v1379
      %v1383 = vunpack.c.l.s4 1983009808
      %v1384 = vunpack.c.0.s8 %v1383
      %v1385 = vlaneseq
      %v1386 = vshrl.u32 %v1385, 7
      %v1387 = vsub.s32 %v1384, %v1386
      %v1388 = vrot.slane %v1381, %v1387
      %v1390 = vunpack.c.l.s4 1983009808
      %v1391 = vunpack.c.0.s8 %v1390
      %v1392 = vlaneseq
      %v1393 = vshrl.u32 %v1392, 7
      %v1394 = vsub.s32 %v1391, %v1393
      %v1395 = vrot.slane %v1379, %v1394
      %v1396 = vcombine.high %v1388, %v1388
      %v1397 = vcombine.high %v1395, %v1395
      %1398 = vrot.lane.b32.xlu0 %v1388, 54
      %v1399 = vpop.permute.xlu0 %1398
      %1400 = vrot.lane.b32.xlu0 %v1396, 54
      %v1401 = vpop.permute.xlu0 %1400
      %1402 = vrot.lane.b32.xlu0 %v1395, 54
      %v1403 = vpop.permute.xlu0 %1402
      %1404 = vrot.lane.b32.xlu0 %v1397, 54
      %v1405 = vpop.permute.xlu0 %1404
      %vm1406 = vcmask 441344
      %v1407 = vsel %vm1406, %v1399, %v1401
      %v1408 = vsel %vm1406, %v1401, %v1403
      %v1409 = vsel %vm1406, %v1403, %v1405
      %1413 = vst [vmem:[#allocation4 + $0xa8] sm:$0xc] %v1407
      %1414 = vst [vmem:[#allocation4 + $0xb0] sm:$0xc] %v1408
      %1415 = vst [vmem:[#allocation4 + $0xb8] sm:$0xc] %v1409
      %v1416 = vld [vmem:[#allocation2] sm:$0xff]
      %v1418 = vcombine.high %v1416, %v1416
      %v1420 = vunpack.c.l.s4 1983009808
      %v1421 = vunpack.c.0.s8 %v1420
      %v1422 = vlaneseq
      %v1423 = vshrl.u32 %v1422, 7
      %v1424 = vsub.s32 %v1421, %v1423
      %v1425 = vrot.slane %v1416, %v1424
      %v1427 = vunpack.c.l.s4 1983009808
      %v1428 = vunpack.c.0.s8 %v1427
      %v1429 = vlaneseq
      %v1430 = vshrl.u32 %v1429, 7
      %v1431 = vsub.s32 %v1428, %v1430
      %v1432 = vrot.slane %v1418, %v1431
      %v1433 = vcombine.low %v1425, %v1425
      %v1434 = vcombine.low %v1432, %v1432
      %1435 = vrot.lane.b32.xlu0 %v1433, 53
      %v1436 = vpop.permute.xlu0 %1435
      %1437 = vrot.lane.b32.xlu0 %v1425, 53
      %v1438 = vpop.permute.xlu0 %1437
      %1439 = vrot.lane.b32.xlu0 %v1434, 53
      %v1440 = vpop.permute.xlu0 %1439
      %1441 = vrot.lane.b32.xlu0 %v1432, 53
      %v1442 = vpop.permute.xlu0 %1441
      %vm1443 = vcmask 433152
      %v1444 = vsel %vm1443, %v1436, %v1438
      %v1445 = vsel %vm1443, %v1438, %v1440
      %v1446 = vsel %vm1443, %v1440, %v1442
      %1450 = vst [vmem:[#allocation4 + $0xa8] sm:$0x30] %v1444
      %1451 = vst [vmem:[#allocation4 + $0xb0] sm:$0x30] %v1445
      %1452 = vst [vmem:[#allocation4 + $0xb8] sm:$0x30] %v1446
      %v1453 = vld [vmem:[#allocation2] sm:$0xff]
      %v1455 = vcombine.low %v1453, %v1453
      %v1457 = vunpack.c.l.s4 1983009808
      %v1458 = vunpack.c.0.s8 %v1457
      %v1459 = vlaneseq
      %v1460 = vshrl.u32 %v1459, 7
      %v1461 = vsub.s32 %v1458, %v1460
      %v1462 = vrot.slane %v1455, %v1461
      %v1464 = vunpack.c.l.s4 1983009808
      %v1465 = vunpack.c.0.s8 %v1464
      %v1466 = vlaneseq
      %v1467 = vshrl.u32 %v1466, 7
      %v1468 = vsub.s32 %v1465, %v1467
      %v1469 = vrot.slane %v1453, %v1468
      %v1470 = vcombine.low %v1462, %v1462
      %v1471 = vcombine.low %v1469, %v1469
      %1472 = vrot.lane.b32.xlu0 %v1470, 52
      %v1473 = vpop.permute.xlu0 %1472
      %1474 = vrot.lane.b32.xlu0 %v1462, 52
      %v1475 = vpop.permute.xlu0 %1474
      %1476 = vrot.lane.b32.xlu0 %v1471, 52
      %v1477 = vpop.permute.xlu0 %1476
      %1478 = vrot.lane.b32.xlu0 %v1469, 52
      %v1479 = vpop.permute.xlu0 %1478
      %vm1480 = vcmask 424960
      %v1481 = vsel %vm1480, %v1473, %v1475
      %v1482 = vsel %vm1480, %v1475, %v1477
      %v1483 = vsel %vm1480, %v1477, %v1479
      %1487 = vst [vmem:[#allocation4 + $0xa8] sm:$0xc0] %v1481
      %1488 = vst [vmem:[#allocation4 + $0xb0] sm:$0xc0] %v1482
      %1489 = vst [vmem:[#allocation4 + $0xb8] sm:$0xc0] %v1483
      %v1490 = vld [vmem:[#allocation2] sm:$0xff]
      %v1492 = vcombine.high %v1490, %v1490
      %v1494 = vunpack.c.l.s4 1983009808
      %v1495 = vunpack.c.0.s8 %v1494
      %v1496 = vlaneseq
      %v1497 = vshrl.u32 %v1496, 7
      %v1498 = vsub.s32 %v1495, %v1497
      %v1499 = vrot.slane %v1490, %v1498
      %v1501 = vunpack.c.l.s4 1983009808
      %v1502 = vunpack.c.0.s8 %v1501
      %v1503 = vlaneseq
      %v1504 = vshrl.u32 %v1503, 7
      %v1505 = vsub.s32 %v1502, %v1504
      %v1506 = vrot.slane %v1492, %v1505
      %v1507 = vcombine.high %v1499, %v1499
      %v1508 = vcombine.high %v1506, %v1506
      %1509 = vrot.lane.b32.xlu0 %v1499, 51
      %v1510 = vpop.permute.xlu0 %1509
      %1511 = vrot.lane.b32.xlu0 %v1507, 51
      %v1512 = vpop.permute.xlu0 %1511
      %1513 = vrot.lane.b32.xlu0 %v1506, 51
      %v1514 = vpop.permute.xlu0 %1513
      %1515 = vrot.lane.b32.xlu0 %v1508, 51
      %v1516 = vpop.permute.xlu0 %1515
      %vm1517 = vcmask 416768
      %v1518 = vsel %vm1517, %v1510, %v1512
      %v1519 = vsel %vm1517, %v1512, %v1514
      %v1520 = vsel %vm1517, %v1514, %v1516
      %1524 = vst [vmem:[#allocation4 + $0xc0] sm:$0x3] %v1518
      %1525 = vst [vmem:[#allocation4 + $0xc8] sm:$0x3] %v1519
      %1526 = vst [vmem:[#allocation4 + $0xd0] sm:$0x3] %v1520
      %v1527 = vld [vmem:[#allocation2] sm:$0xff]
      %v1529 = vcombine.low %v1527, %v1527
      %v1531 = vunpack.c.l.s4 1983009808
      %v1532 = vunpack.c.0.s8 %v1531
      %v1533 = vlaneseq
      %v1534 = vshrl.u32 %v1533, 7
      %v1535 = vsub.s32 %v1532, %v1534
      %v1536 = vrot.slane %v1529, %v1535
      %v1538 = vunpack.c.l.s4 1983009808
      %v1539 = vunpack.c.0.s8 %v1538
      %v1540 = vlaneseq
      %v1541 = vshrl.u32 %v1540, 7
      %v1542 = vsub.s32 %v1539, %v1541
      %v1543 = vrot.slane %v1527, %v1542
      %v1544 = vcombine.high %v1536, %v1536
      %v1545 = vcombine.high %v1543, %v1543
      %1546 = vrot.lane.b32.xlu0 %v1536, 50
      %v1547 = vpop.permute.xlu0 %1546
      %1548 = vrot.lane.b32.xlu0 %v1544, 50
      %v1549 = vpop.permute.xlu0 %1548
      %1550 = vrot.lane.b32.xlu0 %v1543, 50
      %v1551 = vpop.permute.xlu0 %1550
      %1552 = vrot.lane.b32.xlu0 %v1545, 50
      %v1553 = vpop.permute.xlu0 %1552
      %vm1554 = vcmask 408576
      %v1555 = vsel %vm1554, %v1547, %v1549
      %v1556 = vsel %vm1554, %v1549, %v1551
      %v1557 = vsel %vm1554, %v1551, %v1553
      %1561 = vst [vmem:[#allocation4 + $0xc0] sm:$0xc] %v1555
      %1562 = vst [vmem:[#allocation4 + $0xc8] sm:$0xc] %v1556
      %1563 = vst [vmem:[#allocation4 + $0xd0] sm:$0xc] %v1557
      %v1564 = vld [vmem:[#allocation2] sm:$0xff]
      %v1566 = vcombine.high %v1564, %v1564
      %v1568 = vunpack.c.l.s4 1983009808
      %v1569 = vunpack.c.0.s8 %v1568
      %v1570 = vlaneseq
      %v1571 = vshrl.u32 %v1570, 7
      %v1572 = vsub.s32 %v1569, %v1571
      %v1573 = vrot.slane %v1564, %v1572
      %v1575 = vunpack.c.l.s4 1983009808
      %v1576 = vunpack.c.0.s8 %v1575
      %v1577 = vlaneseq
      %v1578 = vshrl.u32 %v1577, 7
      %v1579 = vsub.s32 %v1576, %v1578
      %v1580 = vrot.slane %v1566, %v1579
      %v1581 = vcombine.low %v1573, %v1573
      %v1582 = vcombine.low %v1580, %v1580
      %1583 = vrot.lane.b32.xlu0 %v1581, 49
      %v1584 = vpop.permute.xlu0 %1583
      %1585 = vrot.lane.b32.xlu0 %v1573, 49
      %v1586 = vpop.permute.xlu0 %1585
      %1587 = vrot.lane.b32.xlu0 %v1582, 49
      %v1588 = vpop.permute.xlu0 %1587
      %1589 = vrot.lane.b32.xlu0 %v1580, 49
      %v1590 = vpop.permute.xlu0 %1589
      %vm1591 = vcmask 400384
      %v1592 = vsel %vm1591, %v1584, %v1586
      %v1593 = vsel %vm1591, %v1586, %v1588
      %v1594 = vsel %vm1591, %v1588, %v1590
      %1598 = vst [vmem:[#allocation4 + $0xc0] sm:$0x30] %v1592
      %1599 = vst [vmem:[#allocation4 + $0xc8] sm:$0x30] %v1593
      %1600 = vst [vmem:[#allocation4 + $0xd0] sm:$0x30] %v1594
      %v1601 = vld [vmem:[#allocation2] sm:$0xff]
      %v1603 = vcombine.low %v1601, %v1601
      %v1605 = vunpack.c.l.s4 1983009808
      %v1606 = vunpack.c.0.s8 %v1605
      %v1607 = vlaneseq
      %v1608 = vshrl.u32 %v1607, 7
      %v1609 = vsub.s32 %v1606, %v1608
      %v1610 = vrot.slane %v1603, %v1609
      %v1612 = vunpack.c.l.s4 1983009808
      %v1613 = vunpack.c.0.s8 %v1612
      %v1614 = vlaneseq
      %v1615 = vshrl.u32 %v1614, 7
      %v1616 = vsub.s32 %v1613, %v1615
      %v1617 = vrot.slane %v1601, %v1616
      %v1618 = vcombine.low %v1610, %v1610
      %v1619 = vcombine.low %v1617, %v1617
      %1620 = vrot.lane.b32.xlu0 %v1618, 48
      %v1621 = vpop.permute.xlu0 %1620
      %1622 = vrot.lane.b32.xlu0 %v1610, 48
      %v1623 = vpop.permute.xlu0 %1622
      %1624 = vrot.lane.b32.xlu0 %v1619, 48
      %v1625 = vpop.permute.xlu0 %1624
      %1626 = vrot.lane.b32.xlu0 %v1617, 48
      %v1627 = vpop.permute.xlu0 %1626
      %vm1628 = vcmask 392192
      %v1629 = vsel %vm1628, %v1621, %v1623
      %v1630 = vsel %vm1628, %v1623, %v1625
      %v1631 = vsel %vm1628, %v1625, %v1627
      %1635 = vst [vmem:[#allocation4 + $0xc0] sm:$0xc0] %v1629
      %1636 = vst [vmem:[#allocation4 + $0xc8] sm:$0xc0] %v1630
      %1637 = vst [vmem:[#allocation4 + $0xd0] sm:$0xc0] %v1631
      %v1638 = vld [vmem:[#allocation2] sm:$0xff]
      %v1640 = vcombine.high %v1638, %v1638
      %v1642 = vunpack.c.l.s4 1983009808
      %v1643 = vunpack.c.0.s8 %v1642
      %v1644 = vlaneseq
      %v1645 = vshrl.u32 %v1644, 7
      %v1646 = vsub.s32 %v1643, %v1645
      %v1647 = vrot.slane %v1638, %v1646
      %v1649 = vunpack.c.l.s4 1983009808
      %v1650 = vunpack.c.0.s8 %v1649
      %v1651 = vlaneseq
      %v1652 = vshrl.u32 %v1651, 7
      %v1653 = vsub.s32 %v1650, %v1652
      %v1654 = vrot.slane %v1640, %v1653
      %v1655 = vcombine.high %v1647, %v1647
      %v1656 = vcombine.high %v1654, %v1654
      %1657 = vrot.lane.b32.xlu0 %v1647, 32
      %v1658 = vpop.permute.xlu0 %1657
      %1659 = vrot.lane.b32.xlu0 %v1655, 32
      %v1660 = vpop.permute.xlu0 %1659
      %1661 = vrot.lane.b32.xlu0 %v1654, 32
      %v1662 = vpop.permute.xlu0 %1661
      %1663 = vrot.lane.b32.xlu0 %v1656, 32
      %v1664 = vpop.permute.xlu0 %1663
      %vm1665 = vcmask 261120
      %v1666 = vsel %vm1665, %v1658, %v1660
      %v1667 = vsel %vm1665, %v1660, %v1662
      %v1668 = vsel %vm1665, %v1662, %v1664
      %1672 = vst [vmem:[#allocation4 + $0xd8] sm:$0x3] %v1666
      %1673 = vst [vmem:[#allocation4 + $0xe0] sm:$0x3] %v1667
      %1674 = vst [vmem:[#allocation4 + $0xe8] sm:$0x3] %v1668
      %v1675 = vld [vmem:[#allocation2] sm:$0xff]
      %v1677 = vcombine.low %v1675, %v1675
      %v1679 = vunpack.c.l.s4 1983009808
      %v1680 = vunpack.c.0.s8 %v1679
      %v1681 = vlaneseq
      %v1682 = vshrl.u32 %v1681, 7
      %v1683 = vsub.s32 %v1680, %v1682
      %v1684 = vrot.slane %v1677, %v1683
      %v1686 = vunpack.c.l.s4 1983009808
      %v1687 = vunpack.c.0.s8 %v1686
      %v1688 = vlaneseq
      %v1689 = vshrl.u32 %v1688, 7
      %v1690 = vsub.s32 %v1687, %v1689
      %v1691 = vrot.slane %v1675, %v1690
      %v1692 = vcombine.high %v1684, %v1684
      %v1693 = vcombine.high %v1691, %v1691
      %1694 = vrot.lane.b32.xlu0 %v1684, 31
      %v1695 = vpop.permute.xlu0 %1694
      %1696 = vrot.lane.b32.xlu0 %v1692, 31
      %v1697 = vpop.permute.xlu0 %1696
      %1698 = vrot.lane.b32.xlu0 %v1691, 31
      %v1699 = vpop.permute.xlu0 %1698
      %1700 = vrot.lane.b32.xlu0 %v1693, 31
      %v1701 = vpop.permute.xlu0 %1700
      %vm1702 = vcmask 252928
      %v1703 = vsel %vm1702, %v1695, %v1697
      %v1704 = vsel %vm1702, %v1697, %v1699
      %v1705 = vsel %vm1702, %v1699, %v1701
      %1709 = vst [vmem:[#allocation4 + $0xd8] sm:$0xc] %v1703
      %1710 = vst [vmem:[#allocation4 + $0xe0] sm:$0xc] %v1704
      %1711 = vst [vmem:[#allocation4 + $0xe8] sm:$0xc] %v1705
      %v1712 = vld [vmem:[#allocation2] sm:$0xff]
      %v1714 = vcombine.high %v1712, %v1712
      %v1716 = vunpack.c.l.s4 1983009808
      %v1717 = vunpack.c.0.s8 %v1716
      %v1718 = vlaneseq
      %v1719 = vshrl.u32 %v1718, 7
      %v1720 = vsub.s32 %v1717, %v1719
      %v1721 = vrot.slane %v1712, %v1720
      %v1723 = vunpack.c.l.s4 1983009808
      %v1724 = vunpack.c.0.s8 %v1723
      %v1725 = vlaneseq
      %v1726 = vshrl.u32 %v1725, 7
      %v1727 = vsub.s32 %v1724, %v1726
      %v1728 = vrot.slane %v1714, %v1727
      %v1729 = vcombine.low %v1721, %v1721
      %v1730 = vcombine.low %v1728, %v1728
      %1731 = vrot.lane.b32.xlu0 %v1729, 30
      %v1732 = vpop.permute.xlu0 %1731
      %1733 = vrot.lane.b32.xlu0 %v1721, 30
      %v1734 = vpop.permute.xlu0 %1733
      %1735 = vrot.lane.b32.xlu0 %v1730, 30
      %v1736 = vpop.permute.xlu0 %1735
      %1737 = vrot.lane.b32.xlu0 %v1728, 30
      %v1738 = vpop.permute.xlu0 %1737
      %vm1739 = vcmask 244736
      %v1740 = vsel %vm1739, %v1732, %v1734
      %v1741 = vsel %vm1739, %v1734, %v1736
      %v1742 = vsel %vm1739, %v1736, %v1738
      %1746 = vst [vmem:[#allocation4 + $0xd8] sm:$0x30] %v1740
      %1747 = vst [vmem:[#allocation4 + $0xe0] sm:$0x30] %v1741
      %1748 = vst [vmem:[#allocation4 + $0xe8] sm:$0x30] %v1742
      %v1749 = vld [vmem:[#allocation2] sm:$0xff]
      %v1751 = vcombine.low %v1749, %v1749
      %v1753 = vunpack.c.l.s4 1983009808
      %v1754 = vunpack.c.0.s8 %v1753
      %v1755 = vlaneseq
      %v1756 = vshrl.u32 %v1755, 7
      %v1757 = vsub.s32 %v1754, %v1756
      %v1758 = vrot.slane %v1751, %v1757
      %v1760 = vunpack.c.l.s4 1983009808
      %v1761 = vunpack.c.0.s8 %v1760
      %v1762 = vlaneseq
      %v1763 = vshrl.u32 %v1762, 7
      %v1764 = vsub.s32 %v1761, %v1763
      %v1765 = vrot.slane %v1749, %v1764
      %v1766 = vcombine.low %v1758, %v1758
      %v1767 = vcombine.low %v1765, %v1765
      %1768 = vrot.lane.b32.xlu0 %v1766, 29
      %v1769 = vpop.permute.xlu0 %1768
      %1770 = vrot.lane.b32.xlu0 %v1758, 29
      %v1771 = vpop.permute.xlu0 %1770
      %1772 = vrot.lane.b32.xlu0 %v1767, 29
      %v1773 = vpop.permute.xlu0 %1772
      %1774 = vrot.lane.b32.xlu0 %v1765, 29
      %v1775 = vpop.permute.xlu0 %1774
      %vm1776 = vcmask 236544
      %v1777 = vsel %vm1776, %v1769, %v1771
      %v1778 = vsel %vm1776, %v1771, %v1773
      %v1779 = vsel %vm1776, %v1773, %v1775
      %1783 = vst [vmem:[#allocation4 + $0xd8] sm:$0xc0] %v1777
      %1784 = vst [vmem:[#allocation4 + $0xe0] sm:$0xc0] %v1778
      %1785 = vst [vmem:[#allocation4 + $0xe8] sm:$0xc0] %v1779
      %v1786 = vld [vmem:[#allocation2] sm:$0xff]
      %v1788 = vcombine.high %v1786, %v1786
      %v1790 = vunpack.c.l.s4 1983009808
      %v1791 = vunpack.c.0.s8 %v1790
      %v1792 = vlaneseq
      %v1793 = vshrl.u32 %v1792, 7
      %v1794 = vsub.s32 %v1791, %v1793
      %v1795 = vrot.slane %v1786, %v1794
      %v1797 = vunpack.c.l.s4 1983009808
      %v1798 = vunpack.c.0.s8 %v1797
      %v1799 = vlaneseq
      %v1800 = vshrl.u32 %v1799, 7
      %v1801 = vsub.s32 %v1798, %v1800
      %v1802 = vrot.slane %v1788, %v1801
      %v1803 = vcombine.high %v1795, %v1795
      %v1804 = vcombine.high %v1802, %v1802
      %1805 = vrot.lane.b32.xlu0 %v1795, 28
      %v1806 = vpop.permute.xlu0 %1805
      %1807 = vrot.lane.b32.xlu0 %v1803, 28
      %v1808 = vpop.permute.xlu0 %1807
      %1809 = vrot.lane.b32.xlu0 %v1802, 28
      %v1810 = vpop.permute.xlu0 %1809
      %1811 = vrot.lane.b32.xlu0 %v1804, 28
      %v1812 = vpop.permute.xlu0 %1811
      %vm1813 = vcmask 228352
      %v1814 = vsel %vm1813, %v1806, %v1808
      %v1815 = vsel %vm1813, %v1808, %v1810
      %v1816 = vsel %vm1813, %v1810, %v1812
      %1820 = vst [vmem:[#allocation4 + $0xf0] sm:$0x3] %v1814
      %1821 = vst [vmem:[#allocation4 + $0xf8] sm:$0x3] %v1815
      %1822 = vst [vmem:[#allocation4 + $0x100] sm:$0x3] %v1816
      %v1823 = vld [vmem:[#allocation2] sm:$0xff]
      %v1825 = vcombine.low %v1823, %v1823
      %v1827 = vunpack.c.l.s4 1983009808
      %v1828 = vunpack.c.0.s8 %v1827
      %v1829 = vlaneseq
      %v1830 = vshrl.u32 %v1829, 7
      %v1831 = vsub.s32 %v1828, %v1830
      %v1832 = vrot.slane %v1825, %v1831
      %v1834 = vunpack.c.l.s4 1983009808
      %v1835 = vunpack.c.0.s8 %v1834
      %v1836 = vlaneseq
      %v1837 = vshrl.u32 %v1836, 7
      %v1838 = vsub.s32 %v1835, %v1837
      %v1839 = vrot.slane %v1823, %v1838
      %v1840 = vcombine.high %v1832, %v1832
      %v1841 = vcombine.high %v1839, %v1839
      %1842 = vrot.lane.b32.xlu0 %v1832, 27
      %v1843 = vpop.permute.xlu0 %1842
      %1844 = vrot.lane.b32.xlu0 %v1840, 27
      %v1845 = vpop.permute.xlu0 %1844
      %1846 = vrot.lane.b32.xlu0 %v1839, 27
      %v1847 = vpop.permute.xlu0 %1846
      %1848 = vrot.lane.b32.xlu0 %v1841, 27
      %v1849 = vpop.permute.xlu0 %1848
      %vm1850 = vcmask 220160
      %v1851 = vsel %vm1850, %v1843, %v1845
      %v1852 = vsel %vm1850, %v1845, %v1847
      %v1853 = vsel %vm1850, %v1847, %v1849
      %1857 = vst [vmem:[#allocation4 + $0xf0] sm:$0xc] %v1851
      %1858 = vst [vmem:[#allocation4 + $0xf8] sm:$0xc] %v1852
      %1859 = vst [vmem:[#allocation4 + $0x100] sm:$0xc] %v1853
      %v1860 = vld [vmem:[#allocation2] sm:$0xff]
      %v1862 = vcombine.high %v1860, %v1860
      %v1864 = vunpack.c.l.s4 1983009808
      %v1865 = vunpack.c.0.s8 %v1864
      %v1866 = vlaneseq
      %v1867 = vshrl.u32 %v1866, 7
      %v1868 = vsub.s32 %v1865, %v1867
      %v1869 = vrot.slane %v1860, %v1868
      %v1871 = vunpack.c.l.s4 1983009808
      %v1872 = vunpack.c.0.s8 %v1871
      %v1873 = vlaneseq
      %v1874 = vshrl.u32 %v1873, 7
      %v1875 = vsub.s32 %v1872, %v1874
      %v1876 = vrot.slane %v1862, %v1875
      %v1877 = vcombine.low %v1869, %v1869
      %v1878 = vcombine.low %v1876, %v1876
      %1879 = vrot.lane.b32.xlu0 %v1877, 26
      %v1880 = vpop.permute.xlu0 %1879
      %1881 = vrot.lane.b32.xlu0 %v1869, 26
      %v1882 = vpop.permute.xlu0 %1881
      %1883 = vrot.lane.b32.xlu0 %v1878, 26
      %v1884 = vpop.permute.xlu0 %1883
      %1885 = vrot.lane.b32.xlu0 %v1876, 26
      %v1886 = vpop.permute.xlu0 %1885
      %vm1887 = vcmask 211968
      %v1888 = vsel %vm1887, %v1880, %v1882
      %v1889 = vsel %vm1887, %v1882, %v1884
      %v1890 = vsel %vm1887, %v1884, %v1886
      %1894 = vst [vmem:[#allocation4 + $0xf0] sm:$0x30] %v1888
      %1895 = vst [vmem:[#allocation4 + $0xf8] sm:$0x30] %v1889
      %1896 = vst [vmem:[#allocation4 + $0x100] sm:$0x30] %v1890
      %v1897 = vld [vmem:[#allocation2] sm:$0xff]
      %v1899 = vcombine.low %v1897, %v1897
      %v1901 = vunpack.c.l.s4 1983009808
      %v1902 = vunpack.c.0.s8 %v1901
      %v1903 = vlaneseq
      %v1904 = vshrl.u32 %v1903, 7
      %v1905 = vsub.s32 %v1902, %v1904
      %v1906 = vrot.slane %v1899, %v1905
      %v1908 = vunpack.c.l.s4 1983009808
      %v1909 = vunpack.c.0.s8 %v1908
      %v1910 = vlaneseq
      %v1911 = vshrl.u32 %v1910, 7
      %v1912 = vsub.s32 %v1909, %v1911
      %v1913 = vrot.slane %v1897, %v1912
      %v1914 = vcombine.low %v1906, %v1906
      %v1915 = vcombine.low %v1913, %v1913
      %1916 = vrot.lane.b32.xlu0 %v1914, 25
      %v1917 = vpop.permute.xlu0 %1916
      %1918 = vrot.lane.b32.xlu0 %v1906, 25
      %v1919 = vpop.permute.xlu0 %1918
      %1920 = vrot.lane.b32.xlu0 %v1915, 25
      %v1921 = vpop.permute.xlu0 %1920
      %1922 = vrot.lane.b32.xlu0 %v1913, 25
      %v1923 = vpop.permute.xlu0 %1922
      %vm1924 = vcmask 203776
      %v1925 = vsel %vm1924, %v1917, %v1919
      %v1926 = vsel %vm1924, %v1919, %v1921
      %v1927 = vsel %vm1924, %v1921, %v1923
      %1931 = vst [vmem:[#allocation4 + $0xf0] sm:$0xc0] %v1925
      %1932 = vst [vmem:[#allocation4 + $0xf8] sm:$0xc0] %v1926
      %1933 = vst [vmem:[#allocation4 + $0x100] sm:$0xc0] %v1927
      %v1934 = vld [vmem:[#allocation2] sm:$0xff]
      %v1936 = vcombine.high %v1934, %v1934
      %v1938 = vunpack.c.l.s4 1983009808
      %v1939 = vunpack.c.0.s8 %v1938
      %v1940 = vlaneseq
      %v1941 = vshrl.u32 %v1940, 7
      %v1942 = vsub.s32 %v1939, %v1941
      %v1943 = vrot.slane %v1934, %v1942
      %v1945 = vunpack.c.l.s4 1983009808
      %v1946 = vunpack.c.0.s8 %v1945
      %v1947 = vlaneseq
      %v1948 = vshrl.u32 %v1947, 7
      %v1949 = vsub.s32 %v1946, %v1948
      %v1950 = vrot.slane %v1936, %v1949
      %v1951 = vcombine.high %v1943, %v1943
      %v1952 = vcombine.high %v1950, %v1950
      %1953 = vrot.lane.b32.xlu0 %v1943, 24
      %v1954 = vpop.permute.xlu0 %1953
      %1955 = vrot.lane.b32.xlu0 %v1951, 24
      %v1956 = vpop.permute.xlu0 %1955
      %1957 = vrot.lane.b32.xlu0 %v1950, 24
      %v1958 = vpop.permute.xlu0 %1957
      %1959 = vrot.lane.b32.xlu0 %v1952, 24
      %v1960 = vpop.permute.xlu0 %1959
      %vm1961 = vcmask 195584
      %v1962 = vsel %vm1961, %v1954, %v1956
      %v1963 = vsel %vm1961, %v1956, %v1958
      %v1964 = vsel %vm1961, %v1958, %v1960
      %1968 = vst [vmem:[#allocation4 + $0x108] sm:$0x3] %v1962
      %1969 = vst [vmem:[#allocation4 + $0x110] sm:$0x3] %v1963
      %1970 = vst [vmem:[#allocation4 + $0x118] sm:$0x3] %v1964
      %v1971 = vld [vmem:[#allocation2] sm:$0xff]
      %v1973 = vcombine.low %v1971, %v1971
      %v1975 = vunpack.c.l.s4 1983009808
      %v1976 = vunpack.c.0.s8 %v1975
      %v1977 = vlaneseq
      %v1978 = vshrl.u32 %v1977, 7
      %v1979 = vsub.s32 %v1976, %v1978
      %v1980 = vrot.slane %v1973, %v1979
      %v1982 = vunpack.c.l.s4 1983009808
      %v1983 = vunpack.c.0.s8 %v1982
      %v1984 = vlaneseq
      %v1985 = vshrl.u32 %v1984, 7
      %v1986 = vsub.s32 %v1983, %v1985
      %v1987 = vrot.slane %v1971, %v1986
      %v1988 = vcombine.high %v1980, %v1980
      %v1989 = vcombine.high %v1987, %v1987
      %1990 = vrot.lane.b32.xlu0 %v1980, 8
      %v1991 = vpop.permute.xlu0 %1990
      %1992 = vrot.lane.b32.xlu0 %v1988, 8
      %v1993 = vpop.permute.xlu0 %1992
      %1994 = vrot.lane.b32.xlu0 %v1987, 8
      %v1995 = vpop.permute.xlu0 %1994
      %1996 = vrot.lane.b32.xlu0 %v1989, 8
      %v1997 = vpop.permute.xlu0 %1996
      %vm1998 = vcmask 64512
      %v1999 = vsel %vm1998, %v1991, %v1993
      %v2000 = vsel %vm1998, %v1993, %v1995
      %v2001 = vsel %vm1998, %v1995, %v1997
      %2005 = vst [vmem:[#allocation4 + $0x108] sm:$0xc] %v1999
      %2006 = vst [vmem:[#allocation4 + $0x110] sm:$0xc] %v2000
      %2007 = vst [vmem:[#allocation4 + $0x118] sm:$0xc] %v2001
      %v2008 = vld [vmem:[#allocation2] sm:$0xff]
      %v2010 = vcombine.high %v2008, %v2008
      %v2012 = vunpack.c.l.s4 1983009808
      %v2013 = vunpack.c.0.s8 %v2012
      %v2014 = vlaneseq
      %v2015 = vshrl.u32 %v2014, 7
      %v2016 = vsub.s32 %v2013, %v2015
      %v2017 = vrot.slane %v2008, %v2016
      %v2019 = vunpack.c.l.s4 1983009808
      %v2020 = vunpack.c.0.s8 %v2019
      %v2021 = vlaneseq
      %v2022 = vshrl.u32 %v2021, 7
      %v2023 = vsub.s32 %v2020, %v2022
      %v2024 = vrot.slane %v2010, %v2023
      %v2025 = vcombine.low %v2017, %v2017
      %v2026 = vcombine.low %v2024, %v2024
      %2027 = vrot.lane.b32.xlu0 %v2025, 7
      %v2028 = vpop.permute.xlu0 %2027
      %2029 = vrot.lane.b32.xlu0 %v2017, 7
      %v2030 = vpop.permute.xlu0 %2029
      %2031 = vrot.lane.b32.xlu0 %v2026, 7
      %v2032 = vpop.permute.xlu0 %2031
      %2033 = vrot.lane.b32.xlu0 %v2024, 7
      %v2034 = vpop.permute.xlu0 %2033
      %vm2035 = vcmask 56320
      %v2036 = vsel %vm2035, %v2028, %v2030
      %v2037 = vsel %vm2035, %v2030, %v2032
      %v2038 = vsel %vm2035, %v2032, %v2034
      %2042 = vst [vmem:[#allocation4 + $0x108] sm:$0x30] %v2036
      %2043 = vst [vmem:[#allocation4 + $0x110] sm:$0x30] %v2037
      %2044 = vst [vmem:[#allocation4 + $0x118] sm:$0x30] %v2038
      %v2045 = vld [vmem:[#allocation2] sm:$0xff]
      %v2047 = vcombine.low %v2045, %v2045
      %v2049 = vunpack.c.l.s4 1983009808
      %v2050 = vunpack.c.0.s8 %v2049
      %v2051 = vlaneseq
      %v2052 = vshrl.u32 %v2051, 7
      %v2053 = vsub.s32 %v2050, %v2052
      %v2054 = vrot.slane %v2047, %v2053
      %v2056 = vunpack.c.l.s4 1983009808
      %v2057 = vunpack.c.0.s8 %v2056
      %v2058 = vlaneseq
      %v2059 = vshrl.u32 %v2058, 7
      %v2060 = vsub.s32 %v2057, %v2059
      %v2061 = vrot.slane %v2045, %v2060
      %v2062 = vcombine.low %v2054, %v2054
      %v2063 = vcombine.low %v2061, %v2061
      %2064 = vrot.lane.b32.xlu0 %v2062, 6
      %v2065 = vpop.permute.xlu0 %2064
      %2066 = vrot.lane.b32.xlu0 %v2054, 6
      %v2067 = vpop.permute.xlu0 %2066
      %2068 = vrot.lane.b32.xlu0 %v2063, 6
      %v2069 = vpop.permute.xlu0 %2068
      %2070 = vrot.lane.b32.xlu0 %v2061, 6
      %v2071 = vpop.permute.xlu0 %2070
      %vm2072 = vcmask 48128
      %v2073 = vsel %vm2072, %v2065, %v2067
      %v2074 = vsel %vm2072, %v2067, %v2069
      %v2075 = vsel %vm2072, %v2069, %v2071
      %2079 = vst [vmem:[#allocation4 + $0x108] sm:$0xc0] %v2073
      %2080 = vst [vmem:[#allocation4 + $0x110] sm:$0xc0] %v2074
      %2081 = vst [vmem:[#allocation4 + $0x118] sm:$0xc0] %v2075
      %v2082 = vld [vmem:[#allocation2] sm:$0xff]
      %v2084 = vcombine.high %v2082, %v2082
      %v2086 = vunpack.c.l.s4 1983009808
      %v2087 = vunpack.c.0.s8 %v2086
      %v2088 = vlaneseq
      %v2089 = vshrl.u32 %v2088, 7
      %v2090 = vsub.s32 %v2087, %v2089
      %v2091 = vrot.slane %v2082, %v2090
      %v2093 = vunpack.c.l.s4 1983009808
      %v2094 = vunpack.c.0.s8 %v2093
      %v2095 = vlaneseq
      %v2096 = vshrl.u32 %v2095, 7
      %v2097 = vsub.s32 %v2094, %v2096
      %v2098 = vrot.slane %v2084, %v2097
      %v2099 = vcombine.high %v2091, %v2091
      %v2100 = vcombine.high %v2098, %v2098
      %2101 = vrot.lane.b32.xlu0 %v2091, 5
      %v2102 = vpop.permute.xlu0 %2101
      %2103 = vrot.lane.b32.xlu0 %v2099, 5
      %v2104 = vpop.permute.xlu0 %2103
      %2105 = vrot.lane.b32.xlu0 %v2098, 5
      %v2106 = vpop.permute.xlu0 %2105
      %2107 = vrot.lane.b32.xlu0 %v2100, 5
      %v2108 = vpop.permute.xlu0 %2107
      %vm2109 = vcmask 39936
      %v2110 = vsel %vm2109, %v2102, %v2104
      %v2111 = vsel %vm2109, %v2104, %v2106
      %v2112 = vsel %vm2109, %v2106, %v2108
      %2116 = vst [vmem:[#allocation4 + $0x120] sm:$0x3] %v2110
      %2117 = vst [vmem:[#allocation4 + $0x128] sm:$0x3] %v2111
      %2118 = vst [vmem:[#allocation4 + $0x130] sm:$0x3] %v2112
      %v2119 = vld [vmem:[#allocation2] sm:$0xff]
      %v2121 = vcombine.low %v2119, %v2119
      %v2123 = vunpack.c.l.s4 1983009808
      %v2124 = vunpack.c.0.s8 %v2123
      %v2125 = vlaneseq
      %v2126 = vshrl.u32 %v2125, 7
      %v2127 = vsub.s32 %v2124, %v2126
      %v2128 = vrot.slane %v2121, %v2127
      %v2130 = vunpack.c.l.s4 1983009808
      %v2131 = vunpack.c.0.s8 %v2130
      %v2132 = vlaneseq
      %v2133 = vshrl.u32 %v2132, 7
      %v2134 = vsub.s32 %v2131, %v2133
      %v2135 = vrot.slane %v2119, %v2134
      %v2136 = vcombine.high %v2128, %v2128
      %v2137 = vcombine.high %v2135, %v2135
      %2138 = vrot.lane.b32.xlu0 %v2128, 4
      %v2139 = vpop.permute.xlu0 %2138
      %2140 = vrot.lane.b32.xlu0 %v2136, 4
      %v2141 = vpop.permute.xlu0 %2140
      %2142 = vrot.lane.b32.xlu0 %v2135, 4
      %v2143 = vpop.permute.xlu0 %2142
      %2144 = vrot.lane.b32.xlu0 %v2137, 4
      %v2145 = vpop.permute.xlu0 %2144
      %vm2146 = vcmask 31744
      %v2147 = vsel %vm2146, %v2139, %v2141
      %v2148 = vsel %vm2146, %v2141, %v2143
      %v2149 = vsel %vm2146, %v2143, %v2145
      %2153 = vst [vmem:[#allocation4 + $0x120] sm:$0xc] %v2147
      %2154 = vst [vmem:[#allocation4 + $0x128] sm:$0xc] %v2148
      %2155 = vst [vmem:[#allocation4 + $0x130] sm:$0xc] %v2149
      %v2156 = vld [vmem:[#allocation2] sm:$0xff]
      %v2158 = vcombine.high %v2156, %v2156
      %v2160 = vunpack.c.l.s4 1983009808
      %v2161 = vunpack.c.0.s8 %v2160
      %v2162 = vlaneseq
      %v2163 = vshrl.u32 %v2162, 7
      %v2164 = vsub.s32 %v2161, %v2163
      %v2165 = vrot.slane %v2156, %v2164
      %v2167 = vunpack.c.l.s4 1983009808
      %v2168 = vunpack.c.0.s8 %v2167
      %v2169 = vlaneseq
      %v2170 = vshrl.u32 %v2169, 7
      %v2171 = vsub.s32 %v2168, %v2170
      %v2172 = vrot.slane %v2158, %v2171
      %v2173 = vcombine.low %v2165, %v2165
      %v2174 = vcombine.low %v2172, %v2172
      %2175 = vrot.lane.b32.xlu0 %v2173, 3
      %v2176 = vpop.permute.xlu0 %2175
      %2177 = vrot.lane.b32.xlu0 %v2165, 3
      %v2178 = vpop.permute.xlu0 %2177
      %2179 = vrot.lane.b32.xlu0 %v2174, 3
      %v2180 = vpop.permute.xlu0 %2179
      %2181 = vrot.lane.b32.xlu0 %v2172, 3
      %v2182 = vpop.permute.xlu0 %2181
      %vm2183 = vcmask 23552
      %v2184 = vsel %vm2183, %v2176, %v2178
      %v2185 = vsel %vm2183, %v2178, %v2180
      %v2186 = vsel %vm2183, %v2180, %v2182
      %2190 = vst [vmem:[#allocation4 + $0x120] sm:$0x30] %v2184
      %2191 = vst [vmem:[#allocation4 + $0x128] sm:$0x30] %v2185
      %2192 = vst [vmem:[#allocation4 + $0x130] sm:$0x30] %v2186
      %v2193 = vld [vmem:[#allocation2] sm:$0xff]
      %v2195 = vcombine.low %v2193, %v2193
      %v2197 = vunpack.c.l.s4 1983009808
      %v2198 = vunpack.c.0.s8 %v2197
      %v2199 = vlaneseq
      %v2200 = vshrl.u32 %v2199, 7
      %v2201 = vsub.s32 %v2198, %v2200
      %v2202 = vrot.slane %v2195, %v2201
      %v2204 = vunpack.c.l.s4 1983009808
      %v2205 = vunpack.c.0.s8 %v2204
      %v2206 = vlaneseq
      %v2207 = vshrl.u32 %v2206, 7
      %v2208 = vsub.s32 %v2205, %v2207
      %v2209 = vrot.slane %v2193, %v2208
      %v2210 = vcombine.low %v2202, %v2202
      %v2211 = vcombine.low %v2209, %v2209
      %2212 = vrot.lane.b32.xlu0 %v2210, 2
      %v2213 = vpop.permute.xlu0 %2212
      %2214 = vrot.lane.b32.xlu0 %v2202, 2
      %v2215 = vpop.permute.xlu0 %2214
      %2216 = vrot.lane.b32.xlu0 %v2211, 2
      %v2217 = vpop.permute.xlu0 %2216
      %2218 = vrot.lane.b32.xlu0 %v2209, 2
      %v2219 = vpop.permute.xlu0 %2218
      %vm2220 = vcmask 15360
      %v2221 = vsel %vm2220, %v2213, %v2215
      %v2222 = vsel %vm2220, %v2215, %v2217
      %v2223 = vsel %vm2220, %v2217, %v2219
      %2227 = vst [vmem:[#allocation4 + $0x120] sm:$0xc0] %v2221
      %2228 = vst [vmem:[#allocation4 + $0x128] sm:$0xc0] %v2222
      %2229 = vst [vmem:[#allocation4 + $0x130] sm:$0xc0] %v2223
      %v2230 = vld [vmem:[#allocation2] sm:$0xff]
      %v2232 = vcombine.high %v2230, %v2230
      %v2234 = vunpack.c.l.s4 1983009808
      %v2235 = vunpack.c.0.s8 %v2234
      %v2236 = vlaneseq
      %v2237 = vshrl.u32 %v2236, 7
      %v2238 = vsub.s32 %v2235, %v2237
      %v2239 = vrot.slane %v2230, %v2238
      %v2241 = vunpack.c.l.s4 1983009808
      %v2242 = vunpack.c.0.s8 %v2241
      %v2243 = vlaneseq
      %v2244 = vshrl.u32 %v2243, 7
      %v2245 = vsub.s32 %v2242, %v2244
      %v2246 = vrot.slane %v2232, %v2245
      %v2247 = vcombine.high %v2239, %v2239
      %v2248 = vcombine.high %v2246, %v2246
      %2249 = vrot.lane.b32.xlu0 %v2239, 1
      %v2250 = vpop.permute.xlu0 %2249
      %2251 = vrot.lane.b32.xlu0 %v2247, 1
      %v2252 = vpop.permute.xlu0 %2251
      %2253 = vrot.lane.b32.xlu0 %v2246, 1
      %v2254 = vpop.permute.xlu0 %2253
      %2255 = vrot.lane.b32.xlu0 %v2248, 1
      %v2256 = vpop.permute.xlu0 %2255
      %vm2257 = vcmask 7168
      %v2258 = vsel %vm2257, %v2250, %v2252
      %v2259 = vsel %vm2257, %v2252, %v2254
      %v2260 = vsel %vm2257, %v2254, %v2256
      %2264 = vst [vmem:[#allocation4 + $0x138] sm:$0x3] %v2258
      %2265 = vst [vmem:[#allocation4 + $0x140] sm:$0x3] %v2259
      %2266 = vst [vmem:[#allocation4 + $0x148] sm:$0x3] %v2260
      %v2267 = vld [vmem:[#allocation2 + $0x2] sm:$0x3f]
      %v2269 = vcombine.low %v2267, %v2267
      %v2271 = vunpack.c.l.s4 1983009808
      %v2272 = vunpack.c.0.s8 %v2271
      %v2273 = vlaneseq
      %v2274 = vshrl.u32 %v2273, 7
      %v2275 = vsub.s32 %v2272, %v2274
      %v2276 = vrot.slane %v2269, %v2275
      %v2278 = vunpack.c.l.s4 1983009808
      %v2279 = vunpack.c.0.s8 %v2278
      %v2280 = vlaneseq
      %v2281 = vshrl.u32 %v2280, 7
      %v2282 = vsub.s32 %v2279, %v2281
      %v2283 = vrot.slane %v2267, %v2282
      %v2284 = vcombine.high %v2276, %v2276
      %2288 = vst [vmem:[#allocation4 + $0x138] sm:$0xc] %v2276
      %2289 = vst [vmem:[#allocation4 + $0x140] sm:$0xc] %v2284
      %2290 = vst [vmem:[#allocation4 + $0x148] sm:$0xc] %v2283
      %v2291 = vld [vmem:[#allocation2 + $0x2] sm:$0xff]
      %v2293 = vcombine.high %v2291, %v2291
      %v2295 = vunpack.c.l.s4 1983009808
      %v2296 = vunpack.c.0.s8 %v2295
      %v2297 = vlaneseq
      %v2298 = vshrl.u32 %v2297, 7
      %v2299 = vsub.s32 %v2296, %v2298
      %v2300 = vrot.slane %v2291, %v2299
      %v2302 = vunpack.c.l.s4 1983009808
      %v2303 = vunpack.c.0.s8 %v2302
      %v2304 = vlaneseq
      %v2305 = vshrl.u32 %v2304, 7
      %v2306 = vsub.s32 %v2303, %v2305
      %v2307 = vrot.slane %v2293, %v2306
      %v2308 = vcombine.low %v2300, %v2300
      %v2309 = vcombine.low %v2307, %v2307
      %2310 = vrot.lane.b32.xlu0 %v2308, 112
      %v2311 = vpop.permute.xlu0 %2310
      %2312 = vrot.lane.b32.xlu0 %v2300, 112
      %v2313 = vpop.permute.xlu0 %2312
      %2314 = vrot.lane.b32.xlu0 %v2309, 112
      %v2315 = vpop.permute.xlu0 %2314
      %2316 = vrot.lane.b32.xlu0 %v2307, 112
      %v2317 = vpop.permute.xlu0 %2316
      %vm2318 = vcmask 916480
      %v2319 = vsel %vm2318, %v2311, %v2313
      %v2320 = vsel %vm2318, %v2313, %v2315
      %v2321 = vsel %vm2318, %v2315, %v2317
      %2325 = vst [vmem:[#allocation4 + $0x138] sm:$0x30] %v2319
      %2326 = vst [vmem:[#allocation4 + $0x140] sm:$0x30] %v2320
      %2327 = vst [vmem:[#allocation4 + $0x148] sm:$0x30] %v2321
      %v2328 = vld [vmem:[#allocation2 + $0x2] sm:$0xff]
      %v2330 = vcombine.low %v2328, %v2328
      %v2332 = vunpack.c.l.s4 1983009808
      %v2333 = vunpack.c.0.s8 %v2332
      %v2334 = vlaneseq
      %v2335 = vshrl.u32 %v2334, 7
      %v2336 = vsub.s32 %v2333, %v2335
      %v2337 = vrot.slane %v2330, %v2336
      %v2339 = vunpack.c.l.s4 1983009808
      %v2340 = vunpack.c.0.s8 %v2339
      %v2341 = vlaneseq
      %v2342 = vshrl.u32 %v2341, 7
      %v2343 = vsub.s32 %v2340, %v2342
      %v2344 = vrot.slane %v2328, %v2343
      %v2345 = vcombine.low %v2337, %v2337
      %v2346 = vcombine.low %v2344, %v2344
      %2347 = vrot.lane.b32.xlu0 %v2345, 111
      %v2348 = vpop.permute.xlu0 %2347
      %2349 = vrot.lane.b32.xlu0 %v2337, 111
      %v2350 = vpop.permute.xlu0 %2349
      %2351 = vrot.lane.b32.xlu0 %v2346, 111
      %v2352 = vpop.permute.xlu0 %2351
      %2353 = vrot.lane.b32.xlu0 %v2344, 111
      %v2354 = vpop.permute.xlu0 %2353
      %vm2355 = vcmask 908288
      %v2356 = vsel %vm2355, %v2348, %v2350
      %v2357 = vsel %vm2355, %v2350, %v2352
      %v2358 = vsel %vm2355, %v2352, %v2354
      %2362 = vst [vmem:[#allocation4 + $0x138] sm:$0xc0] %v2356
      %2363 = vst [vmem:[#allocation4 + $0x140] sm:$0xc0] %v2357
      %2364 = vst [vmem:[#allocation4 + $0x148] sm:$0xc0] %v2358
      %v2365 = vld [vmem:[#allocation2 + $0x2] sm:$0xff]
      %v2367 = vcombine.high %v2365, %v2365
      %v2369 = vunpack.c.l.s4 1983009808
      %v2370 = vunpack.c.0.s8 %v2369
      %v2371 = vlaneseq
      %v2372 = vshrl.u32 %v2371, 7
      %v2373 = vsub.s32 %v2370, %v2372
      %v2374 = vrot.slane %v2365, %v2373
      %v2376 = vunpack.c.l.s4 1983009808
      %v2377 = vunpack.c.0.s8 %v2376
      %v2378 = vlaneseq
      %v2379 = vshrl.u32 %v2378, 7
      %v2380 = vsub.s32 %v2377, %v2379
      %v2381 = vrot.slane %v2367, %v2380
      %v2382 = vcombine.high %v2374, %v2374
      %v2383 = vcombine.high %v2381, %v2381
      %2384 = vrot.lane.b32.xlu0 %v2374, 110
      %v2385 = vpop.permute.xlu0 %2384
      %2386 = vrot.lane.b32.xlu0 %v2382, 110
      %v2387 = vpop.permute.xlu0 %2386
      %2388 = vrot.lane.b32.xlu0 %v2381, 110
      %v2389 = vpop.permute.xlu0 %2388
      %2390 = vrot.lane.b32.xlu0 %v2383, 110
      %v2391 = vpop.permute.xlu0 %2390
      %vm2392 = vcmask 900096
      %v2393 = vsel %vm2392, %v2385, %v2387
      %v2394 = vsel %vm2392, %v2387, %v2389
      %v2395 = vsel %vm2392, %v2389, %v2391
      %2399 = vst [vmem:[#allocation4 + $0x150] sm:$0x3] %v2393
      %2400 = vst [vmem:[#allocation4 + $0x158] sm:$0x3] %v2394
      %2401 = vst [vmem:[#allocation4 + $0x160] sm:$0x3] %v2395
      %v2402 = vld [vmem:[#allocation2 + $0x2] sm:$0xff]
      %v2404 = vcombine.low %v2402, %v2402
      %v2406 = vunpack.c.l.s4 1983009808
      %v2407 = vunpack.c.0.s8 %v2406
      %v2408 = vlaneseq
      %v2409 = vshrl.u32 %v2408, 7
      %v2410 = vsub.s32 %v2407, %v2409
      %v2411 = vrot.slane %v2404, %v2410
      %v2413 = vunpack.c.l.s4 1983009808
      %v2414 = vunpack.c.0.s8 %v2413
      %v2415 = vlaneseq
      %v2416 = vshrl.u32 %v2415, 7
      %v2417 = vsub.s32 %v2414, %v2416
      %v2418 = vrot.slane %v2402, %v2417
      %v2419 = vcombine.high %v2411, %v2411
      %v2420 = vcombine.high %v2418, %v2418
      %2421 = vrot.lane.b32.xlu0 %v2411, 109
      %v2422 = vpop.permute.xlu0 %2421
      %2423 = vrot.lane.b32.xlu0 %v2419, 109
      %v2424 = vpop.permute.xlu0 %2423
      %2425 = vrot.lane.b32.xlu0 %v2418, 109
      %v2426 = vpop.permute.xlu0 %2425
      %2427 = vrot.lane.b32.xlu0 %v2420, 109
      %v2428 = vpop.permute.xlu0 %2427
      %vm2429 = vcmask 891904
      %v2430 = vsel %vm2429, %v2422, %v2424
      %v2431 = vsel %vm2429, %v2424, %v2426
      %v2432 = vsel %vm2429, %v2426, %v2428
      %2436 = vst [vmem:[#allocation4 + $0x150] sm:$0xc] %v2430
      %2437 = vst [vmem:[#allocation4 + $0x158] sm:$0xc] %v2431
      %2438 = vst [vmem:[#allocation4 + $0x160] sm:$0xc] %v2432
      %v2439 = vld [vmem:[#allocation2 + $0x2] sm:$0xff]
      %v2441 = vcombine.high %v2439, %v2439
      %v2443 = vunpack.c.l.s4 1983009808
      %v2444 = vunpack.c.0.s8 %v2443
      %v2445 = vlaneseq
      %v2446 = vshrl.u32 %v2445, 7
      %v2447 = vsub.s32 %v2444, %v2446
      %v2448 = vrot.slane %v2439, %v2447
      %v2450 = vunpack.c.l.s4 1983009808
      %v2451 = vunpack.c.0.s8 %v2450
      %v2452 = vlaneseq
      %v2453 = vshrl.u32 %v2452, 7
      %v2454 = vsub.s32 %v2451, %v2453
      %v2455 = vrot.slane %v2441, %v2454
      %v2456 = vcombine.low %v2448, %v2448
      %v2457 = vcombine.low %v2455, %v2455
      %2458 = vrot.lane.b32.xlu0 %v2456, 108
      %v2459 = vpop.permute.xlu0 %2458
      %2460 = vrot.lane.b32.xlu0 %v2448, 108
      %v2461 = vpop.permute.xlu0 %2460
      %2462 = vrot.lane.b32.xlu0 %v2457, 108
      %v2463 = vpop.permute.xlu0 %2462
      %2464 = vrot.lane.b32.xlu0 %v2455, 108
      %v2465 = vpop.permute.xlu0 %2464
      %vm2466 = vcmask 883712
      %v2467 = vsel %vm2466, %v2459, %v2461
      %v2468 = vsel %vm2466, %v2461, %v2463
      %v2469 = vsel %vm2466, %v2463, %v2465
      %2473 = vst [vmem:[#allocation4 + $0x150] sm:$0x30] %v2467
      %2474 = vst [vmem:[#allocation4 + $0x158] sm:$0x30] %v2468
      %2475 = vst [vmem:[#allocation4 + $0x160] sm:$0x30] %v2469
      %v2476 = vld [vmem:[#allocation2 + $0x2] sm:$0xff]
      %v2478 = vcombine.low %v2476, %v2476
      %v2480 = vunpack.c.l.s4 1983009808
      %v2481 = vunpack.c.0.s8 %v2480
      %v2482 = vlaneseq
      %v2483 = vshrl.u32 %v2482, 7
      %v2484 = vsub.s32 %v2481, %v2483
      %v2485 = vrot.slane %v2478, %v2484
      %v2487 = vunpack.c.l.s4 1983009808
      %v2488 = vunpack.c.0.s8 %v2487
      %v2489 = vlaneseq
      %v2490 = vshrl.u32 %v2489, 7
      %v2491 = vsub.s32 %v2488, %v2490
      %v2492 = vrot.slane %v2476, %v2491
      %v2493 = vcombine.low %v2485, %v2485
      %v2494 = vcombine.low %v2492, %v2492
      %2495 = vrot.lane.b32.xlu0 %v2493, 107
      %v2496 = vpop.permute.xlu0 %2495
      %2497 = vrot.lane.b32.xlu0 %v2485, 107
      %v2498 = vpop.permute.xlu0 %2497
      %2499 = vrot.lane.b32.xlu0 %v2494, 107
      %v2500 = vpop.permute.xlu0 %2499
      %2501 = vrot.lane.b32.xlu0 %v2492, 107
      %v2502 = vpop.permute.xlu0 %2501
      %vm2503 = vcmask 875520
      %v2504 = vsel %vm2503, %v2496, %v2498
      %v2505 = vsel %vm2503, %v2498, %v2500
      %v2506 = vsel %vm2503, %v2500, %v2502
      %2510 = vst [vmem:[#allocation4 + $0x150] sm:$0xc0] %v2504
      %2511 = vst [vmem:[#allocation4 + $0x158] sm:$0xc0] %v2505
      %2512 = vst [vmem:[#allocation4 + $0x160] sm:$0xc0] %v2506
      %v2513 = vld [vmem:[#allocation2 + $0x2] sm:$0xff]
      %v2515 = vcombine.high %v2513, %v2513
      %v2517 = vunpack.c.l.s4 1983009808
      %v2518 = vunpack.c.0.s8 %v2517
      %v2519 = vlaneseq
      %v2520 = vshrl.u32 %v2519, 7
      %v2521 = vsub.s32 %v2518, %v2520
      %v2522 = vrot.slane %v2513, %v2521
      %v2524 = vunpack.c.l.s4 1983009808
      %v2525 = vunpack.c.0.s8 %v2524
      %v2526 = vlaneseq
      %v2527 = vshrl.u32 %v2526, 7
      %v2528 = vsub.s32 %v2525, %v2527
      %v2529 = vrot.slane %v2515, %v2528
      %v2530 = vcombine.high %v2522, %v2522
      %v2531 = vcombine.high %v2529, %v2529
      %2532 = vrot.lane.b32.xlu0 %v2522, 106
      %v2533 = vpop.permute.xlu0 %2532
      %2534 = vrot.lane.b32.xlu0 %v2530, 106
      %v2535 = vpop.permute.xlu0 %2534
      %2536 = vrot.lane.b32.xlu0 %v2529, 106
      %v2537 = vpop.permute.xlu0 %2536
      %2538 = vrot.lane.b32.xlu0 %v2531, 106
      %v2539 = vpop.permute.xlu0 %2538
      %vm2540 = vcmask 867328
      %v2541 = vsel %vm2540, %v2533, %v2535
      %v2542 = vsel %vm2540, %v2535, %v2537
      %v2543 = vsel %vm2540, %v2537, %v2539
      %2547 = vst [vmem:[#allocation4 + $0x168] sm:$0x3] %v2541
      %2548 = vst [vmem:[#allocation4 + $0x170] sm:$0x3] %v2542
      %2549 = vst [vmem:[#allocation4 + $0x178] sm:$0x3] %v2543
      %v2550 = vld [vmem:[#allocation2 + $0x2] sm:$0xff]
      %v2552 = vcombine.low %v2550, %v2550
      %v2554 = vunpack.c.l.s4 1983009808
      %v2555 = vunpack.c.0.s8 %v2554
      %v2556 = vlaneseq
      %v2557 = vshrl.u32 %v2556, 7
      %v2558 = vsub.s32 %v2555, %v2557
      %v2559 = vrot.slane %v2552, %v2558
      %v2561 = vunpack.c.l.s4 1983009808
      %v2562 = vunpack.c.0.s8 %v2561
      %v2563 = vlaneseq
      %v2564 = vshrl.u32 %v2563, 7
      %v2565 = vsub.s32 %v2562, %v2564
      %v2566 = vrot.slane %v2550, %v2565
      %v2567 = vcombine.high %v2559, %v2559
      %v2568 = vcombine.high %v2566, %v2566
      %2569 = vrot.lane.b32.xlu0 %v2559, 105
      %v2570 = vpop.permute.xlu0 %2569
      %2571 = vrot.lane.b32.xlu0 %v2567, 105
      %v2572 = vpop.permute.xlu0 %2571
      %2573 = vrot.lane.b32.xlu0 %v2566, 105
      %v2574 = vpop.permute.xlu0 %2573
      %2575 = vrot.lane.b32.xlu0 %v2568, 105
      %v2576 = vpop.permute.xlu0 %2575
      %vm2577 = vcmask 859136
      %v2578 = vsel %vm2577, %v2570, %v2572
      %v2579 = vsel %vm2577, %v2572, %v2574
      %v2580 = vsel %vm2577, %v2574, %v2576
      %2584 = vst [vmem:[#allocation4 + $0x168] sm:$0xc] %v2578
      %2585 = vst [vmem:[#allocation4 + $0x170] sm:$0xc] %v2579
      %2586 = vst [vmem:[#allocation4 + $0x178] sm:$0xc] %v2580
      %v2587 = vld [vmem:[#allocation2 + $0x2] sm:$0xff]
      %v2589 = vcombine.high %v2587, %v2587
      %v2591 = vunpack.c.l.s4 1983009808
      %v2592 = vunpack.c.0.s8 %v2591
      %v2593 = vlaneseq
      %v2594 = vshrl.u32 %v2593, 7
      %v2595 = vsub.s32 %v2592, %v2594
      %v2596 = vrot.slane %v2587, %v2595
      %v2598 = vunpack.c.l.s4 1983009808
      %v2599 = vunpack.c.0.s8 %v2598
      %v2600 = vlaneseq
      %v2601 = vshrl.u32 %v2600, 7
      %v2602 = vsub.s32 %v2599, %v2601
      %v2603 = vrot.slane %v2589, %v2602
      %v2604 = vcombine.low %v2596, %v2596
      %v2605 = vcombine.low %v2603, %v2603
      %2606 = vrot.lane.b32.xlu0 %v2604, 104
      %v2607 = vpop.permute.xlu0 %2606
      %2608 = vrot.lane.b32.xlu0 %v2596, 104
      %v2609 = vpop.permute.xlu0 %2608
      %2610 = vrot.lane.b32.xlu0 %v2605, 104
      %v2611 = vpop.permute.xlu0 %2610
      %2612 = vrot.lane.b32.xlu0 %v2603, 104
      %v2613 = vpop.permute.xlu0 %2612
      %v2614 = vsel %vm667, %v2607, %v2609
      %v2615 = vsel %vm667, %v2609, %v2611
      %v2616 = vsel %vm667, %v2611, %v2613
      %2620 = vst [vmem:[#allocation4 + $0x168] sm:$0x30] %v2614
      %2621 = vst [vmem:[#allocation4 + $0x170] sm:$0x30] %v2615
      %2622 = vst [vmem:[#allocation4 + $0x178] sm:$0x30] %v2616
      %v2623 = vld [vmem:[#allocation2 + $0x2] sm:$0xff]
      %v2625 = vcombine.low %v2623, %v2623
      %v2627 = vunpack.c.l.s4 1983009808
      %v2628 = vunpack.c.0.s8 %v2627
      %v2629 = vlaneseq
      %v2630 = vshrl.u32 %v2629, 7
      %v2631 = vsub.s32 %v2628, %v2630
      %v2632 = vrot.slane %v2625, %v2631
      %v2634 = vunpack.c.l.s4 1983009808
      %v2635 = vunpack.c.0.s8 %v2634
      %v2636 = vlaneseq
      %v2637 = vshrl.u32 %v2636, 7
      %v2638 = vsub.s32 %v2635, %v2637
      %v2639 = vrot.slane %v2623, %v2638
      %v2640 = vcombine.low %v2632, %v2632
      %v2641 = vcombine.low %v2639, %v2639
      %2642 = vrot.lane.b32.xlu0 %v2640, 88
      %v2643 = vpop.permute.xlu0 %2642
      %2644 = vrot.lane.b32.xlu0 %v2632, 88
      %v2645 = vpop.permute.xlu0 %2644
      %2646 = vrot.lane.b32.xlu0 %v2641, 88
      %v2647 = vpop.permute.xlu0 %2646
      %2648 = vrot.lane.b32.xlu0 %v2639, 88
      %v2649 = vpop.permute.xlu0 %2648
      %vm2650 = vcmask 719872
      %v2651 = vsel %vm2650, %v2643, %v2645
      %v2652 = vsel %vm2650, %v2645, %v2647
      %v2653 = vsel %vm2650, %v2647, %v2649
      %2657 = vst [vmem:[#allocation4 + $0x168] sm:$0xc0] %v2651
      %2658 = vst [vmem:[#allocation4 + $0x170] sm:$0xc0] %v2652
      %2659 = vst [vmem:[#allocation4 + $0x178] sm:$0xc0] %v2653
      %v2660 = vld [vmem:[#allocation2 + $0x2] sm:$0xff]
      %v2662 = vcombine.high %v2660, %v2660
      %v2664 = vunpack.c.l.s4 1983009808
      %v2665 = vunpack.c.0.s8 %v2664
      %v2666 = vlaneseq
      %v2667 = vshrl.u32 %v2666, 7
      %v2668 = vsub.s32 %v2665, %v2667
      %v2669 = vrot.slane %v2660, %v2668
      %v2671 = vunpack.c.l.s4 1983009808
      %v2672 = vunpack.c.0.s8 %v2671
      %v2673 = vlaneseq
      %v2674 = vshrl.u32 %v2673, 7
      %v2675 = vsub.s32 %v2672, %v2674
      %v2676 = vrot.slane %v2662, %v2675
      %v2677 = vcombine.high %v2669, %v2669
      %v2678 = vcombine.high %v2676, %v2676
      %2679 = vrot.lane.b32.xlu0 %v2669, 87
      %v2680 = vpop.permute.xlu0 %2679
      %2681 = vrot.lane.b32.xlu0 %v2677, 87
      %v2682 = vpop.permute.xlu0 %2681
      %2683 = vrot.lane.b32.xlu0 %v2676, 87
      %v2684 = vpop.permute.xlu0 %2683
      %2685 = vrot.lane.b32.xlu0 %v2678, 87
      %v2686 = vpop.permute.xlu0 %2685
      %vm2687 = vcmask 711680
      %v2688 = vsel %vm2687, %v2680, %v2682
      %v2689 = vsel %vm2687, %v2682, %v2684
      %v2690 = vsel %vm2687, %v2684, %v2686
      %2694 = vst [vmem:[#allocation4 + $0x180] sm:$0x3] %v2688
      %2695 = vst [vmem:[#allocation4 + $0x188] sm:$0x3] %v2689
      %2696 = vst [vmem:[#allocation4 + $0x190] sm:$0x3] %v2690
      %v2697 = vld [vmem:[#allocation2 + $0x2] sm:$0xff]
      %v2699 = vcombine.low %v2697, %v2697
      %v2701 = vunpack.c.l.s4 1983009808
      %v2702 = vunpack.c.0.s8 %v2701
      %v2703 = vlaneseq
      %v2704 = vshrl.u32 %v2703, 7
      %v2705 = vsub.s32 %v2702, %v2704
      %v2706 = vrot.slane %v2699, %v2705
      %v2708 = vunpack.c.l.s4 1983009808
      %v2709 = vunpack.c.0.s8 %v2708
      %v2710 = vlaneseq
      %v2711 = vshrl.u32 %v2710, 7
      %v2712 = vsub.s32 %v2709, %v2711
      %v2713 = vrot.slane %v2697, %v2712
      %v2714 = vcombine.high %v2706, %v2706
      %v2715 = vcombine.high %v2713, %v2713
      %2716 = vrot.lane.b32.xlu0 %v2706, 86
      %v2717 = vpop.permute.xlu0 %2716
      %2718 = vrot.lane.b32.xlu0 %v2714, 86
      %v2719 = vpop.permute.xlu0 %2718
      %2720 = vrot.lane.b32.xlu0 %v2713, 86
      %v2721 = vpop.permute.xlu0 %2720
      %2722 = vrot.lane.b32.xlu0 %v2715, 86
      %v2723 = vpop.permute.xlu0 %2722
      %vm2724 = vcmask 703488
      %v2725 = vsel %vm2724, %v2717, %v2719
      %v2726 = vsel %vm2724, %v2719, %v2721
      %v2727 = vsel %vm2724, %v2721, %v2723
      %2731 = vst [vmem:[#allocation4 + $0x180] sm:$0xc] %v2725
      %2732 = vst [vmem:[#allocation4 + $0x188] sm:$0xc] %v2726
      %2733 = vst [vmem:[#allocation4 + $0x190] sm:$0xc] %v2727
      %v2734 = vld [vmem:[#allocation2 + $0x2] sm:$0xff]
      %v2736 = vcombine.high %v2734, %v2734
      %v2738 = vunpack.c.l.s4 1983009808
      %v2739 = vunpack.c.0.s8 %v2738
      %v2740 = vlaneseq
      %v2741 = vshrl.u32 %v2740, 7
      %v2742 = vsub.s32 %v2739, %v2741
      %v2743 = vrot.slane %v2734, %v2742
      %v2745 = vunpack.c.l.s4 1983009808
      %v2746 = vunpack.c.0.s8 %v2745
      %v2747 = vlaneseq
      %v2748 = vshrl.u32 %v2747, 7
      %v2749 = vsub.s32 %v2746, %v2748
      %v2750 = vrot.slane %v2736, %v2749
      %v2751 = vcombine.low %v2743, %v2743
      %v2752 = vcombine.low %v2750, %v2750
      %2753 = vrot.lane.b32.xlu0 %v2751, 85
      %v2754 = vpop.permute.xlu0 %2753
      %2755 = vrot.lane.b32.xlu0 %v2743, 85
      %v2756 = vpop.permute.xlu0 %2755
      %2757 = vrot.lane.b32.xlu0 %v2752, 85
      %v2758 = vpop.permute.xlu0 %2757
      %2759 = vrot.lane.b32.xlu0 %v2750, 85
      %v2760 = vpop.permute.xlu0 %2759
      %vm2761 = vcmask 695296
      %v2762 = vsel %vm2761, %v2754, %v2756
      %v2763 = vsel %vm2761, %v2756, %v2758
      %v2764 = vsel %vm2761, %v2758, %v2760
      %2768 = vst [vmem:[#allocation4 + $0x180] sm:$0x30] %v2762
      %2769 = vst [vmem:[#allocation4 + $0x188] sm:$0x30] %v2763
      %2770 = vst [vmem:[#allocation4 + $0x190] sm:$0x30] %v2764
      %v2771 = vld [vmem:[#allocation2 + $0x2] sm:$0xff]
      %v2773 = vcombine.low %v2771, %v2771
      %v2775 = vunpack.c.l.s4 1983009808
      %v2776 = vunpack.c.0.s8 %v2775
      %v2777 = vlaneseq
      %v2778 = vshrl.u32 %v2777, 7
      %v2779 = vsub.s32 %v2776, %v2778
      %v2780 = vrot.slane %v2773, %v2779
      %v2782 = vunpack.c.l.s4 1983009808
      %v2783 = vunpack.c.0.s8 %v2782
      %v2784 = vlaneseq
      %v2785 = vshrl.u32 %v2784, 7
      %v2786 = vsub.s32 %v2783, %v2785
      %v2787 = vrot.slane %v2771, %v2786
      %v2788 = vcombine.low %v2780, %v2780
      %v2789 = vcombine.low %v2787, %v2787
      %2790 = vrot.lane.b32.xlu0 %v2788, 84
      %v2791 = vpop.permute.xlu0 %2790
      %2792 = vrot.lane.b32.xlu0 %v2780, 84
      %v2793 = vpop.permute.xlu0 %2792
      %2794 = vrot.lane.b32.xlu0 %v2789, 84
      %v2795 = vpop.permute.xlu0 %2794
      %2796 = vrot.lane.b32.xlu0 %v2787, 84
      %v2797 = vpop.permute.xlu0 %2796
      %vm2798 = vcmask 687104
      %v2799 = vsel %vm2798, %v2791, %v2793
      %v2800 = vsel %vm2798, %v2793, %v2795
      %v2801 = vsel %vm2798, %v2795, %v2797
      %2805 = vst [vmem:[#allocation4 + $0x180] sm:$0xc0] %v2799
      %2806 = vst [vmem:[#allocation4 + $0x188] sm:$0xc0] %v2800
      %2807 = vst [vmem:[#allocation4 + $0x190] sm:$0xc0] %v2801
      %v2808 = vld [vmem:[#allocation2 + $0x2] sm:$0xff]
      %v2810 = vcombine.high %v2808, %v2808
      %v2812 = vunpack.c.l.s4 1983009808
      %v2813 = vunpack.c.0.s8 %v2812
      %v2814 = vlaneseq
      %v2815 = vshrl.u32 %v2814, 7
      %v2816 = vsub.s32 %v2813, %v2815
      %v2817 = vrot.slane %v2808, %v2816
      %v2819 = vunpack.c.l.s4 1983009808
      %v2820 = vunpack.c.0.s8 %v2819
      %v2821 = vlaneseq
      %v2822 = vshrl.u32 %v2821, 7
      %v2823 = vsub.s32 %v2820, %v2822
      %v2824 = vrot.slane %v2810, %v2823
      %v2825 = vcombine.high %v2817, %v2817
      %v2826 = vcombine.high %v2824, %v2824
      %2827 = vrot.lane.b32.xlu0 %v2817, 83
      %v2828 = vpop.permute.xlu0 %2827
      %2829 = vrot.lane.b32.xlu0 %v2825, 83
      %v2830 = vpop.permute.xlu0 %2829
      %2831 = vrot.lane.b32.xlu0 %v2824, 83
      %v2832 = vpop.permute.xlu0 %2831
      %2833 = vrot.lane.b32.xlu0 %v2826, 83
      %v2834 = vpop.permute.xlu0 %2833
      %vm2835 = vcmask 678912
      %v2836 = vsel %vm2835, %v2828, %v2830
      %v2837 = vsel %vm2835, %v2830, %v2832
      %v2838 = vsel %vm2835, %v2832, %v2834
      %2842 = vst [vmem:[#allocation4 + $0x198] sm:$0x3] %v2836
      %2843 = vst [vmem:[#allocation4 + $0x1a0] sm:$0x3] %v2837
      %2844 = vst [vmem:[#allocation4 + $0x1a8] sm:$0x3] %v2838
      %v2845 = vld [vmem:[#allocation2 + $0x2] sm:$0xff]
      %v2847 = vcombine.low %v2845, %v2845
      %v2849 = vunpack.c.l.s4 1983009808
      %v2850 = vunpack.c.0.s8 %v2849
      %v2851 = vlaneseq
      %v2852 = vshrl.u32 %v2851, 7
      %v2853 = vsub.s32 %v2850, %v2852
      %v2854 = vrot.slane %v2847, %v2853
      %v2856 = vunpack.c.l.s4 1983009808
      %v2857 = vunpack.c.0.s8 %v2856
      %v2858 = vlaneseq
      %v2859 = vshrl.u32 %v2858, 7
      %v2860 = vsub.s32 %v2857, %v2859
      %v2861 = vrot.slane %v2845, %v2860
      %v2862 = vcombine.high %v2854, %v2854
      %v2863 = vcombine.high %v2861, %v2861
      %2864 = vrot.lane.b32.xlu0 %v2854, 82
      %v2865 = vpop.permute.xlu0 %2864
      %2866 = vrot.lane.b32.xlu0 %v2862, 82
      %v2867 = vpop.permute.xlu0 %2866
      %2868 = vrot.lane.b32.xlu0 %v2861, 82
      %v2869 = vpop.permute.xlu0 %2868
      %2870 = vrot.lane.b32.xlu0 %v2863, 82
      %v2871 = vpop.permute.xlu0 %2870
      %vm2872 = vcmask 670720
      %v2873 = vsel %vm2872, %v2865, %v2867
      %v2874 = vsel %vm2872, %v2867, %v2869
      %v2875 = vsel %vm2872, %v2869, %v2871
      %2879 = vst [vmem:[#allocation4 + $0x198] sm:$0xc] %v2873
      %2880 = vst [vmem:[#allocation4 + $0x1a0] sm:$0xc] %v2874
      %2881 = vst [vmem:[#allocation4 + $0x1a8] sm:$0xc] %v2875
      %v2882 = vld [vmem:[#allocation2 + $0x2] sm:$0xff]
      %v2884 = vcombine.high %v2882, %v2882
      %v2886 = vunpack.c.l.s4 1983009808
      %v2887 = vunpack.c.0.s8 %v2886
      %v2888 = vlaneseq
      %v2889 = vshrl.u32 %v2888, 7
      %v2890 = vsub.s32 %v2887, %v2889
      %v2891 = vrot.slane %v2882, %v2890
      %v2893 = vunpack.c.l.s4 1983009808
      %v2894 = vunpack.c.0.s8 %v2893
      %v2895 = vlaneseq
      %v2896 = vshrl.u32 %v2895, 7
      %v2897 = vsub.s32 %v2894, %v2896
      %v2898 = vrot.slane %v2884, %v2897
      %v2899 = vcombine.low %v2891, %v2891
      %v2900 = vcombine.low %v2898, %v2898
      %2901 = vrot.lane.b32.xlu0 %v2899, 81
      %v2902 = vpop.permute.xlu0 %2901
      %2903 = vrot.lane.b32.xlu0 %v2891, 81
      %v2904 = vpop.permute.xlu0 %2903
      %2905 = vrot.lane.b32.xlu0 %v2900, 81
      %v2906 = vpop.permute.xlu0 %2905
      %2907 = vrot.lane.b32.xlu0 %v2898, 81
      %v2908 = vpop.permute.xlu0 %2907
      %vm2909 = vcmask 662528
      %v2910 = vsel %vm2909, %v2902, %v2904
      %v2911 = vsel %vm2909, %v2904, %v2906
      %v2912 = vsel %vm2909, %v2906, %v2908
      %2916 = vst [vmem:[#allocation4 + $0x198] sm:$0x30] %v2910
      %2917 = vst [vmem:[#allocation4 + $0x1a0] sm:$0x30] %v2911
      %2918 = vst [vmem:[#allocation4 + $0x1a8] sm:$0x30] %v2912
      %v2919 = vld [vmem:[#allocation2 + $0x2] sm:$0xff]
      %v2921 = vcombine.low %v2919, %v2919
      %v2923 = vunpack.c.l.s4 1983009808
      %v2924 = vunpack.c.0.s8 %v2923
      %v2925 = vlaneseq
      %v2926 = vshrl.u32 %v2925, 7
      %v2927 = vsub.s32 %v2924, %v2926
      %v2928 = vrot.slane %v2921, %v2927
      %v2930 = vunpack.c.l.s4 1983009808
      %v2931 = vunpack.c.0.s8 %v2930
      %v2932 = vlaneseq
      %v2933 = vshrl.u32 %v2932, 7
      %v2934 = vsub.s32 %v2931, %v2933
      %v2935 = vrot.slane %v2919, %v2934
      %v2936 = vcombine.low %v2928, %v2928
      %v2937 = vcombine.low %v2935, %v2935
      %2938 = vrot.lane.b32.xlu0 %v2936, 80
      %v2939 = vpop.permute.xlu0 %2938
      %2940 = vrot.lane.b32.xlu0 %v2928, 80
      %v2941 = vpop.permute.xlu0 %2940
      %2942 = vrot.lane.b32.xlu0 %v2937, 80
      %v2943 = vpop.permute.xlu0 %2942
      %2944 = vrot.lane.b32.xlu0 %v2935, 80
      %v2945 = vpop.permute.xlu0 %2944
      %v2946 = vsel %vm999, %v2939, %v2941
      %v2947 = vsel %vm999, %v2941, %v2943
      %v2948 = vsel %vm999, %v2943, %v2945
      %2952 = vst [vmem:[#allocation4 + $0x198] sm:$0xc0] %v2946
      %2953 = vst [vmem:[#allocation4 + $0x1a0] sm:$0xc0] %v2947
      %2954 = vst [vmem:[#allocation4 + $0x1a8] sm:$0xc0] %v2948
      %v2955 = vld [vmem:[#allocation2 + $0x2] sm:$0xff]
      %v2957 = vcombine.high %v2955, %v2955
      %v2959 = vunpack.c.l.s4 1983009808
      %v2960 = vunpack.c.0.s8 %v2959
      %v2961 = vlaneseq
      %v2962 = vshrl.u32 %v2961, 7
      %v2963 = vsub.s32 %v2960, %v2962
      %v2964 = vrot.slane %v2955, %v2963
      %v2966 = vunpack.c.l.s4 1983009808
      %v2967 = vunpack.c.0.s8 %v2966
      %v2968 = vlaneseq
      %v2969 = vshrl.u32 %v2968, 7
      %v2970 = vsub.s32 %v2967, %v2969
      %v2971 = vrot.slane %v2957, %v2970
      %v2972 = vcombine.high %v2964, %v2964
      %v2973 = vcombine.high %v2971, %v2971
      %2974 = vrot.lane.b32.xlu0 %v2964, 64
      %v2975 = vpop.permute.xlu0 %2974
      %2976 = vrot.lane.b32.xlu0 %v2972, 64
      %v2977 = vpop.permute.xlu0 %2976
      %2978 = vrot.lane.b32.xlu0 %v2971, 64
      %v2979 = vpop.permute.xlu0 %2978
      %2980 = vrot.lane.b32.xlu0 %v2973, 64
      %v2981 = vpop.permute.xlu0 %2980
      %vm2982 = vcmask 523264
      %v2983 = vsel %vm2982, %v2975, %v2977
      %v2984 = vsel %vm2982, %v2977, %v2979
      %v2985 = vsel %vm2982, %v2979, %v2981
      %2989 = vst [vmem:[#allocation4 + $0x1b0] sm:$0x3] %v2983
      %2990 = vst [vmem:[#allocation4 + $0x1b8] sm:$0x3] %v2984
      %2991 = vst [vmem:[#allocation4 + $0x1c0] sm:$0x3] %v2985
      %v2992 = vld [vmem:[#allocation2 + $0x2] sm:$0xff]
      %v2994 = vcombine.low %v2992, %v2992
      %v2996 = vunpack.c.l.s4 1983009808
      %v2997 = vunpack.c.0.s8 %v2996
      %v2998 = vlaneseq
      %v2999 = vshrl.u32 %v2998, 7
      %v3000 = vsub.s32 %v2997, %v2999
      %v3001 = vrot.slane %v2994, %v3000
      %v3003 = vunpack.c.l.s4 1983009808
      %v3004 = vunpack.c.0.s8 %v3003
      %v3005 = vlaneseq
      %v3006 = vshrl.u32 %v3005, 7
      %v3007 = vsub.s32 %v3004, %v3006
      %v3008 = vrot.slane %v2992, %v3007
      %v3009 = vcombine.high %v3001, %v3001
      %v3010 = vcombine.high %v3008, %v3008
      %3011 = vrot.lane.b32.xlu0 %v3001, 63
      %v3012 = vpop.permute.xlu0 %3011
      %3013 = vrot.lane.b32.xlu0 %v3009, 63
      %v3014 = vpop.permute.xlu0 %3013
      %3015 = vrot.lane.b32.xlu0 %v3008, 63
      %v3016 = vpop.permute.xlu0 %3015
      %3017 = vrot.lane.b32.xlu0 %v3010, 63
      %v3018 = vpop.permute.xlu0 %3017
      %vm3019 = vcmask 515072
      %v3020 = vsel %vm3019, %v3012, %v3014
      %v3021 = vsel %vm3019, %v3014, %v3016
      %v3022 = vsel %vm3019, %v3016, %v3018
      %3026 = vst [vmem:[#allocation4 + $0x1b0] sm:$0xc] %v3020
      %3027 = vst [vmem:[#allocation4 + $0x1b8] sm:$0xc] %v3021
      %3028 = vst [vmem:[#allocation4 + $0x1c0] sm:$0xc] %v3022
      %v3029 = vld [vmem:[#allocation2 + $0x2] sm:$0xff]
      %v3031 = vcombine.high %v3029, %v3029
      %v3033 = vunpack.c.l.s4 1983009808
      %v3034 = vunpack.c.0.s8 %v3033
      %v3035 = vlaneseq
      %v3036 = vshrl.u32 %v3035, 7
      %v3037 = vsub.s32 %v3034, %v3036
      %v3038 = vrot.slane %v3029, %v3037
      %v3040 = vunpack.c.l.s4 1983009808
      %v3041 = vunpack.c.0.s8 %v3040
      %v3042 = vlaneseq
      %v3043 = vshrl.u32 %v3042, 7
      %v3044 = vsub.s32 %v3041, %v3043
      %v3045 = vrot.slane %v3031, %v3044
      %v3046 = vcombine.low %v3038, %v3038
      %v3047 = vcombine.low %v3045, %v3045
      %3048 = vrot.lane.b32.xlu0 %v3046, 62
      %v3049 = vpop.permute.xlu0 %3048
      %3050 = vrot.lane.b32.xlu0 %v3038, 62
      %v3051 = vpop.permute.xlu0 %3050
      %3052 = vrot.lane.b32.xlu0 %v3047, 62
      %v3053 = vpop.permute.xlu0 %3052
      %3054 = vrot.lane.b32.xlu0 %v3045, 62
      %v3055 = vpop.permute.xlu0 %3054
      %vm3056 = vcmask 506880
      %v3057 = vsel %vm3056, %v3049, %v3051
      %v3058 = vsel %vm3056, %v3051, %v3053
      %v3059 = vsel %vm3056, %v3053, %v3055
      %3063 = vst [vmem:[#allocation4 + $0x1b0] sm:$0x30] %v3057
      %3064 = vst [vmem:[#allocation4 + $0x1b8] sm:$0x30] %v3058
      %3065 = vst [vmem:[#allocation4 + $0x1c0] sm:$0x30] %v3059
      %v3066 = vld [vmem:[#allocation2 + $0x2] sm:$0xff]
      %v3068 = vcombine.low %v3066, %v3066
      %v3070 = vunpack.c.l.s4 1983009808
      %v3071 = vunpack.c.0.s8 %v3070
      %v3072 = vlaneseq
      %v3073 = vshrl.u32 %v3072, 7
      %v3074 = vsub.s32 %v3071, %v3073
      %v3075 = vrot.slane %v3068, %v3074
      %v3077 = vunpack.c.l.s4 1983009808
      %v3078 = vunpack.c.0.s8 %v3077
      %v3079 = vlaneseq
      %v3080 = vshrl.u32 %v3079, 7
      %v3081 = vsub.s32 %v3078, %v3080
      %v3082 = vrot.slane %v3066, %v3081
      %v3083 = vcombine.low %v3075, %v3075
      %v3084 = vcombine.low %v3082, %v3082
      %3085 = vrot.lane.b32.xlu0 %v3083, 61
      %v3086 = vpop.permute.xlu0 %3085
      %3087 = vrot.lane.b32.xlu0 %v3075, 61
      %v3088 = vpop.permute.xlu0 %3087
      %3089 = vrot.lane.b32.xlu0 %v3084, 61
      %v3090 = vpop.permute.xlu0 %3089
      %3091 = vrot.lane.b32.xlu0 %v3082, 61
      %v3092 = vpop.permute.xlu0 %3091
      %vm3093 = vcmask 498688
      %v3094 = vsel %vm3093, %v3086, %v3088
      %v3095 = vsel %vm3093, %v3088, %v3090
      %v3096 = vsel %vm3093, %v3090, %v3092
      %3100 = vst [vmem:[#allocation4 + $0x1b0] sm:$0xc0] %v3094
      %3101 = vst [vmem:[#allocation4 + $0x1b8] sm:$0xc0] %v3095
      %3102 = vst [vmem:[#allocation4 + $0x1c0] sm:$0xc0] %v3096
      %v3103 = vld [vmem:[#allocation2 + $0x2] sm:$0xff]
      %v3105 = vcombine.high %v3103, %v3103
      %v3107 = vunpack.c.l.s4 1983009808
      %v3108 = vunpack.c.0.s8 %v3107
      %v3109 = vlaneseq
      %v3110 = vshrl.u32 %v3109, 7
      %v3111 = vsub.s32 %v3108, %v3110
      %v3112 = vrot.slane %v3103, %v3111
      %v3114 = vunpack.c.l.s4 1983009808
      %v3115 = vunpack.c.0.s8 %v3114
      %v3116 = vlaneseq
      %v3117 = vshrl.u32 %v3116, 7
      %v3118 = vsub.s32 %v3115, %v3117
      %v3119 = vrot.slane %v3105, %v3118
      %v3120 = vcombine.high %v3112, %v3112
      %v3121 = vcombine.high %v3119, %v3119
      %3122 = vrot.lane.b32.xlu0 %v3112, 60
      %v3123 = vpop.permute.xlu0 %3122
      %3124 = vrot.lane.b32.xlu0 %v3120, 60
      %v3125 = vpop.permute.xlu0 %3124
      %3126 = vrot.lane.b32.xlu0 %v3119, 60
      %v3127 = vpop.permute.xlu0 %3126
      %3128 = vrot.lane.b32.xlu0 %v3121, 60
      %v3129 = vpop.permute.xlu0 %3128
      %vm3130 = vcmask 490496
      %v3131 = vsel %vm3130, %v3123, %v3125
      %v3132 = vsel %vm3130, %v3125, %v3127
      %v3133 = vsel %vm3130, %v3127, %v3129
      %3137 = vst [vmem:[#allocation4 + $0x1c8] sm:$0x3] %v3131
      %3138 = vst [vmem:[#allocation4 + $0x1d0] sm:$0x3] %v3132
      %3139 = vst [vmem:[#allocation4 + $0x1d8] sm:$0x3] %v3133
      %v3140 = vld [vmem:[#allocation2 + $0x2] sm:$0xff]
      %v3142 = vcombine.low %v3140, %v3140
      %v3144 = vunpack.c.l.s4 1983009808
      %v3145 = vunpack.c.0.s8 %v3144
      %v3146 = vlaneseq
      %v3147 = vshrl.u32 %v3146, 7
      %v3148 = vsub.s32 %v3145, %v3147
      %v3149 = vrot.slane %v3142, %v3148
      %v3151 = vunpack.c.l.s4 1983009808
      %v3152 = vunpack.c.0.s8 %v3151
      %v3153 = vlaneseq
      %v3154 = vshrl.u32 %v3153, 7
      %v3155 = vsub.s32 %v3152, %v3154
      %v3156 = vrot.slane %v3140, %v3155
      %v3157 = vcombine.high %v3149, %v3149
      %v3158 = vcombine.high %v3156, %v3156
      %3159 = vrot.lane.b32.xlu0 %v3149, 59
      %v3160 = vpop.permute.xlu0 %3159
      %3161 = vrot.lane.b32.xlu0 %v3157, 59
      %v3162 = vpop.permute.xlu0 %3161
      %3163 = vrot.lane.b32.xlu0 %v3156, 59
      %v3164 = vpop.permute.xlu0 %3163
      %3165 = vrot.lane.b32.xlu0 %v3158, 59
      %v3166 = vpop.permute.xlu0 %3165
      %vm3167 = vcmask 482304
      %v3168 = vsel %vm3167, %v3160, %v3162
      %v3169 = vsel %vm3167, %v3162, %v3164
      %v3170 = vsel %vm3167, %v3164, %v3166
      %3174 = vst [vmem:[#allocation4 + $0x1c8] sm:$0xc] %v3168
      %3175 = vst [vmem:[#allocation4 + $0x1d0] sm:$0xc] %v3169
      %3176 = vst [vmem:[#allocation4 + $0x1d8] sm:$0xc] %v3170
      %v3177 = vld [vmem:[#allocation2 + $0x2] sm:$0xff]
      %v3179 = vcombine.high %v3177, %v3177
      %v3181 = vunpack.c.l.s4 1983009808
      %v3182 = vunpack.c.0.s8 %v3181
      %v3183 = vlaneseq
      %v3184 = vshrl.u32 %v3183, 7
      %v3185 = vsub.s32 %v3182, %v3184
      %v3186 = vrot.slane %v3177, %v3185
      %v3188 = vunpack.c.l.s4 1983009808
      %v3189 = vunpack.c.0.s8 %v3188
      %v3190 = vlaneseq
      %v3191 = vshrl.u32 %v3190, 7
      %v3192 = vsub.s32 %v3189, %v3191
      %v3193 = vrot.slane %v3179, %v3192
      %v3194 = vcombine.low %v3186, %v3186
      %v3195 = vcombine.low %v3193, %v3193
      %3196 = vrot.lane.b32.xlu0 %v3194, 58
      %v3197 = vpop.permute.xlu0 %3196
      %3198 = vrot.lane.b32.xlu0 %v3186, 58
      %v3199 = vpop.permute.xlu0 %3198
      %3200 = vrot.lane.b32.xlu0 %v3195, 58
      %v3201 = vpop.permute.xlu0 %3200
      %3202 = vrot.lane.b32.xlu0 %v3193, 58
      %v3203 = vpop.permute.xlu0 %3202
      %vm3204 = vcmask 474112
      %v3205 = vsel %vm3204, %v3197, %v3199
      %v3206 = vsel %vm3204, %v3199, %v3201
      %v3207 = vsel %vm3204, %v3201, %v3203
      %3211 = vst [vmem:[#allocation4 + $0x1c8] sm:$0x30] %v3205
      %3212 = vst [vmem:[#allocation4 + $0x1d0] sm:$0x30] %v3206
      %3213 = vst [vmem:[#allocation4 + $0x1d8] sm:$0x30] %v3207
      %v3214 = vld [vmem:[#allocation2 + $0x2] sm:$0xff]
      %v3216 = vcombine.low %v3214, %v3214
      %v3218 = vunpack.c.l.s4 1983009808
      %v3219 = vunpack.c.0.s8 %v3218
      %v3220 = vlaneseq
      %v3221 = vshrl.u32 %v3220, 7
      %v3222 = vsub.s32 %v3219, %v3221
      %v3223 = vrot.slane %v3216, %v3222
      %v3225 = vunpack.c.l.s4 1983009808
      %v3226 = vunpack.c.0.s8 %v3225
      %v3227 = vlaneseq
      %v3228 = vshrl.u32 %v3227, 7
      %v3229 = vsub.s32 %v3226, %v3228
      %v3230 = vrot.slane %v3214, %v3229
      %v3231 = vcombine.low %v3223, %v3223
      %v3232 = vcombine.low %v3230, %v3230
      %3233 = vrot.lane.b32.xlu0 %v3231, 57
      %v3234 = vpop.permute.xlu0 %3233
      %3235 = vrot.lane.b32.xlu0 %v3223, 57
      %v3236 = vpop.permute.xlu0 %3235
      %3237 = vrot.lane.b32.xlu0 %v3232, 57
      %v3238 = vpop.permute.xlu0 %3237
      %3239 = vrot.lane.b32.xlu0 %v3230, 57
      %v3240 = vpop.permute.xlu0 %3239
      %vm3241 = vcmask 465920
      %v3242 = vsel %vm3241, %v3234, %v3236
      %v3243 = vsel %vm3241, %v3236, %v3238
      %v3244 = vsel %vm3241, %v3238, %v3240
      %3248 = vst [vmem:[#allocation4 + $0x1c8] sm:$0xc0] %v3242
      %3249 = vst [vmem:[#allocation4 + $0x1d0] sm:$0xc0] %v3243
      %3250 = vst [vmem:[#allocation4 + $0x1d8] sm:$0xc0] %v3244
      %v3251 = vld [vmem:[#allocation2 + $0x2] sm:$0xff]
      %v3253 = vcombine.high %v3251, %v3251
      %v3255 = vunpack.c.l.s4 1983009808
      %v3256 = vunpack.c.0.s8 %v3255
      %v3257 = vlaneseq
      %v3258 = vshrl.u32 %v3257, 7
      %v3259 = vsub.s32 %v3256, %v3258
      %v3260 = vrot.slane %v3251, %v3259
      %v3262 = vunpack.c.l.s4 1983009808
      %v3263 = vunpack.c.0.s8 %v3262
      %v3264 = vlaneseq
      %v3265 = vshrl.u32 %v3264, 7
      %v3266 = vsub.s32 %v3263, %v3265
      %v3267 = vrot.slane %v3253, %v3266
      %v3268 = vcombine.high %v3260, %v3260
      %v3269 = vcombine.high %v3267, %v3267
      %3270 = vrot.lane.b32.xlu0 %v3260, 56
      %v3271 = vpop.permute.xlu0 %3270
      %3272 = vrot.lane.b32.xlu0 %v3268, 56
      %v3273 = vpop.permute.xlu0 %3272
      %3274 = vrot.lane.b32.xlu0 %v3267, 56
      %v3275 = vpop.permute.xlu0 %3274
      %3276 = vrot.lane.b32.xlu0 %v3269, 56
      %v3277 = vpop.permute.xlu0 %3276
      %v3278 = vsel %vm1332, %v3271, %v3273
      %v3279 = vsel %vm1332, %v3273, %v3275
      %v3280 = vsel %vm1332, %v3275, %v3277
      %3284 = vst [vmem:[#allocation4 + $0x1e0] sm:$0x3] %v3278
      %3285 = vst [vmem:[#allocation4 + $0x1e8] sm:$0x3] %v3279
      %3286 = vst [vmem:[#allocation4 + $0x1f0] sm:$0x3] %v3280
      %v3287 = vld [vmem:[%s1] sm:$0x77]
      %v3288 = vld [vmem:[#allocation4] sm:$0xff]
      %v3289 = vld [vmem:[#allocation4 + $0x8] sm:$0xff]
      %v3290 = vld [vmem:[#allocation4 + $0x10] sm:$0xff]
      %v3291 = vld [vmem:[#allocation4 + $0x18] sm:$0xff]
      %v3292 = vld [vmem:[#allocation4 + $0x20] sm:$0xff]
      %v3293 = vld [vmem:[#allocation4 + $0x28] sm:$0xff]
      %v3294 = vld [vmem:[#allocation4 + $0x30] sm:$0xff]
      %v3295 = vld [vmem:[#allocation4 + $0x38] sm:$0xff]
      %v3296 = vld [vmem:[#allocation4 + $0x40] sm:$0xff]
      %v3297 = vld [vmem:[#allocation4 + $0x48] sm:$0xff]
      %v3298 = vld [vmem:[#allocation4 + $0x50] sm:$0xff]
      %v3299 = vld [vmem:[#allocation4 + $0x58] sm:$0xff]
      %v3300 = vld [vmem:[#allocation4 + $0x60] sm:$0xff]
      %v3301 = vld [vmem:[#allocation4 + $0x68] sm:$0xff]
      %v3302 = vld [vmem:[#allocation4 + $0x70] sm:$0xff]
      %v3303 = vld [vmem:[#allocation4 + $0x78] sm:$0xff]
      %v3304 = vld [vmem:[#allocation4 + $0x80] sm:$0xff]
      %v3305 = vld [vmem:[#allocation4 + $0x88] sm:$0xff]
      %v3306 = vld [vmem:[#allocation4 + $0x90] sm:$0xff]
      %v3307 = vld [vmem:[#allocation4 + $0x98] sm:$0xff]
      %v3308 = vld [vmem:[#allocation4 + $0xa0] sm:$0xff]
      %v3309 = vld [vmem:[#allocation4 + $0xa8] sm:$0xff]
      %v3310 = vld [vmem:[#allocation4 + $0xb0] sm:$0xff]
      %v3311 = vld [vmem:[#allocation4 + $0xb8] sm:$0xff]
      %v3312 = vld [vmem:[#allocation4 + $0xc0] sm:$0xff]
      %v3313 = vld [vmem:[#allocation4 + $0xc8] sm:$0xff]
      %v3314 = vld [vmem:[#allocation4 + $0xd0] sm:$0xff]
      %v3315 = vld [vmem:[#allocation4 + $0xd8] sm:$0xff]
      %v3316 = vld [vmem:[#allocation4 + $0xe0] sm:$0xff]
      %v3317 = vld [vmem:[#allocation4 + $0xe8] sm:$0xff]
      %v3318 = vld [vmem:[#allocation4 + $0xf0] sm:$0xff]
      %v3319 = vld [vmem:[#allocation4 + $0xf8] sm:$0xff]
      %v3320 = vld [vmem:[#allocation4 + $0x100] sm:$0xff]
      %v3321 = vld [vmem:[#allocation4 + $0x108] sm:$0xff]
      %v3322 = vld [vmem:[#allocation4 + $0x110] sm:$0xff]
      %v3323 = vld [vmem:[#allocation4 + $0x118] sm:$0xff]
      %v3324 = vld [vmem:[#allocation4 + $0x120] sm:$0xff]
      %v3325 = vld [vmem:[#allocation4 + $0x128] sm:$0xff]
      %v3326 = vld [vmem:[#allocation4 + $0x130] sm:$0xff]
      %v3327 = vld [vmem:[#allocation4 + $0x138] sm:$0xff]
      %v3328 = vld [vmem:[#allocation4 + $0x140] sm:$0xff]
      %v3329 = vld [vmem:[#allocation4 + $0x148] sm:$0xff]
      %v3330 = vld [vmem:[#allocation4 + $0x150] sm:$0xff]
      %v3331 = vld [vmem:[#allocation4 + $0x158] sm:$0xff]
      %v3332 = vld [vmem:[#allocation4 + $0x160] sm:$0xff]
      %v3333 = vld [vmem:[#allocation4 + $0x168] sm:$0xff]
      %v3334 = vld [vmem:[#allocation4 + $0x170] sm:$0xff]
      %v3335 = vld [vmem:[#allocation4 + $0x178] sm:$0xff]
      %v3336 = vld [vmem:[#allocation4 + $0x180] sm:$0xff]
      %v3337 = vld [vmem:[#allocation4 + $0x188] sm:$0xff]
      %v3338 = vld [vmem:[#allocation4 + $0x190] sm:$0xff]
      %v3339 = vld [vmem:[#allocation4 + $0x198] sm:$0xff]
      %v3340 = vld [vmem:[#allocation4 + $0x1a0] sm:$0xff]
      %v3341 = vld [vmem:[#allocation4 + $0x1a8] sm:$0xff]
      %v3342 = vld [vmem:[#allocation4 + $0x1b0] sm:$0xff]
      %v3343 = vld [vmem:[#allocation4 + $0x1b8] sm:$0xff]
      %v3344 = vld [vmem:[#allocation4 + $0x1c0] sm:$0xff]
      %v3345 = vld [vmem:[#allocation4 + $0x1c8] sm:$0xff]
      %v3346 = vld [vmem:[#allocation4 + $0x1d0] sm:$0xff]
      %v3347 = vld [vmem:[#allocation4 + $0x1d8] sm:$0xff]
      %v3348 = vld [vmem:[#allocation4 + $0x1e0] sm:$0xff]
      %v3349 = vld [vmem:[#allocation4 + $0x1e8] sm:$0xff]
      %v3350 = vld [vmem:[#allocation4 + $0x1f0] sm:$0xff]
      %v3352 = vcombine.high %v3287, %v3287
      %vm3353 = vcmask 326656
      %v3354 = vsel %vm3353, %v3352, 0
      %3356 = vmatprep.subr.mxu0 %v3289
      %3357 = vmatpush1.msra.mxu0 %v3288
      %3358 = vmatprep.subr.mxu0 %v3292
      %3359 = vmatpush1.msra.mxu0 %v3291
      %3360 = vmatprep.subr.mxu0 %v3295
      %3361 = vmatpush1.msra.mxu0 %v3294
      %3362 = vmatprep.subr.mxu0 %v3298
      %3363 = vmatpush1.msra.mxu0 %v3297
      %3364 = vmatprep.subr.mxu0 %v3301
      %3365 = vmatpush1.msra.mxu0 %v3300
      %3366 = vmatprep.subr.mxu0 %v3304
      %3367 = vmatpush1.msra.mxu0 %v3303
      %3368 = vmatprep.subr.mxu0 %v3307
      %3369 = vmatpush1.msra.mxu0 %v3306
      %3370 = vmatprep.subr.mxu0 %v3310
      %3371 = vmatpush1.msra.mxu0 %v3309
      %3372 = vmatprep.subr.mxu0 %v3313
      %3373 = vmatpush1.msra.mxu0 %v3312
      %3374 = vmatprep.subr.mxu0 %v3316
      %3375 = vmatpush1.msra.mxu0 %v3315
      %3376 = vmatprep.subr.mxu0 %v3319
      %3377 = vmatpush1.msra.mxu0 %v3318
      %3378 = vmatprep.subr.mxu0 %v3322
      %3379 = vmatpush1.msra.mxu0 %v3321
      %3380 = vmatprep.subr.mxu0 %v3325
      %3381 = vmatpush1.msra.mxu0 %v3324
      %3382 = vmatprep.subr.mxu0 %v3328
      %3383 = vmatpush1.msra.mxu0 %v3327
      %3384 = vmatprep.subr.mxu0 %v3331
      %3385 = vmatpush1.msra.mxu0 %v3330
      %3386 = vmatprep.subr.mxu0 %v3334
      %3387 = vmatpush1.msra.mxu0 %v3333
      %3388 = vmatprep.subr.mxu0 %v3337
      %3389 = vmatpush1.msra.mxu0 %v3336
      %3390 = vmatprep.subr.mxu0 %v3340
      %3391 = vmatpush1.msra.mxu0 %v3339
      %3392 = vmatprep.subr.mxu0 %v3343
      %3393 = vmatpush1.msra.mxu0 %v3342
      %3394 = vmatprep.subr.mxu0 %v3346
      %3395 = vmatpush1.msra.mxu0 %v3345
      %3396 = vmatprep.subr.mxu0 %v3349
      %3397 = vmatpush1.msra.mxu0 %v3348
      %3398 = vmatprep.subr.mxu0 0.0
      %3399 = vmatpush1.msra.mxu0 0.0
      %3400 = vmatprep.subr.mxu0 0.0
      %3401 = vmatpush1.msra.mxu0 0.0
      %3402 = vmatprep.subr.mxu0 0.0
      %3403 = vmatpush1.msra.mxu0 0.0
      %3404 = vmatprep.subr.mxu0 0.0
      %3405 = vmatpush1.msra.mxu0 0.0
      %3406 = vmatprep.subr.mxu0 0.0
      %3407 = vmatpush1.msra.mxu0 0.0
      %3408 = vmatprep.subr.mxu0 0.0
      %3409 = vmatpush1.msra.mxu0 0.0
      %3410 = vmatprep.subr.mxu0 0.0
      %3411 = vmatpush1.msra.mxu0 0.0
      %3412 = vmatprep.subr.mxu0 0.0
      %3413 = vmatpush1.msra.mxu0 0.0
      %3414 = vmatprep.subr.mxu0 0.0
      %3415 = vmatpush1.msra.mxu0 0.0
      %3416 = vmatprep.subr.mxu0 0.0
      %3417 = vmatpush1.msra.mxu0 0.0
      %3418 = vmatprep.subr.mxu0 0.0
      %3419 = vmatpush1.msra.mxu0 0.0
      %3420 = vmatprep.mubr.f32.mxu0 %v3354
      %3421 = vmatmul.mubr.f32.gmra.mrb[0].mxu0 %v3287
      %v3422 = vpop.f32.mrb[0].mxu0
      %v3423 = vadd.f32 0.0, %v3422
      %v3424 = vpop.f32.mrb[0].mxu0
      %v3425 = vadd.f32 0.0, %v3424
      %3426 = vdwg.mxu0
      %3427 = vmatprep.subr.mxu0 0.0
      %3428 = vmatpush1.msra.mxu0 %v3290
      %3429 = vmatprep.subr.mxu0 0.0
      %3430 = vmatpush1.msra.mxu0 %v3293
      %3431 = vmatprep.subr.mxu0 0.0
      %3432 = vmatpush1.msra.mxu0 %v3296
      %3433 = vmatprep.subr.mxu0 0.0
      %3434 = vmatpush1.msra.mxu0 %v3299
      %3435 = vmatprep.subr.mxu0 0.0
      %3436 = vmatpush1.msra.mxu0 %v3302
      %3437 = vmatprep.subr.mxu0 0.0
      %3438 = vmatpush1.msra.mxu0 %v3305
      %3439 = vmatprep.subr.mxu0 0.0
      %3440 = vmatpush1.msra.mxu0 %v3308
      %3441 = vmatprep.subr.mxu0 0.0
      %3442 = vmatpush1.msra.mxu0 %v3311
      %3443 = vmatprep.subr.mxu0 0.0
      %3444 = vmatpush1.msra.mxu0 %v3314
      %3445 = vmatprep.subr.mxu0 0.0
      %3446 = vmatpush1.msra.mxu0 %v3317
      %3447 = vmatprep.subr.mxu0 0.0
      %3448 = vmatpush1.msra.mxu0 %v3320
      %3449 = vmatprep.subr.mxu0 0.0
      %3450 = vmatpush1.msra.mxu0 %v3323
      %3451 = vmatprep.subr.mxu0 0.0
      %3452 = vmatpush1.msra.mxu0 %v3326
      %3453 = vmatprep.subr.mxu0 0.0
      %3454 = vmatpush1.msra.mxu0 %v3329
      %3455 = vmatprep.subr.mxu0 0.0
      %3456 = vmatpush1.msra.mxu0 %v3332
      %3457 = vmatprep.subr.mxu0 0.0
      %3458 = vmatpush1.msra.mxu0 %v3335
      %3459 = vmatprep.subr.mxu0 0.0
      %3460 = vmatpush1.msra.mxu0 %v3338
      %3461 = vmatprep.subr.mxu0 0.0
      %3462 = vmatpush1.msra.mxu0 %v3341
      %3463 = vmatprep.subr.mxu0 0.0
      %3464 = vmatpush1.msra.mxu0 %v3344
      %3465 = vmatprep.subr.mxu0 0.0
      %3466 = vmatpush1.msra.mxu0 %v3347
      %3467 = vmatprep.subr.mxu0 0.0
      %3468 = vmatpush1.msra.mxu0 %v3350
      %3469 = vmatprep.subr.mxu0 0.0
      %3470 = vmatpush1.msra.mxu0 0.0
      %3471 = vmatprep.subr.mxu0 0.0
      %3472 = vmatpush1.msra.mxu0 0.0
      %3473 = vmatprep.subr.mxu0 0.0
      %3474 = vmatpush1.msra.mxu0 0.0
      %3475 = vmatprep.subr.mxu0 0.0
      %3476 = vmatpush1.msra.mxu0 0.0
      %3477 = vmatprep.subr.mxu0 0.0
      %3478 = vmatpush1.msra.mxu0 0.0
      %3479 = vmatprep.subr.mxu0 0.0
      %3480 = vmatpush1.msra.mxu0 0.0
      %3481 = vmatprep.subr.mxu0 0.0
      %3482 = vmatpush1.msra.mxu0 0.0
      %3483 = vmatprep.subr.mxu0 0.0
      %3484 = vmatpush1.msra.mxu0 0.0
      %3485 = vmatprep.subr.mxu0 0.0
      %3486 = vmatpush1.msra.mxu0 0.0
      %3487 = vmatprep.subr.mxu0 0.0
      %3488 = vmatpush1.msra.mxu0 0.0
      %3489 = vmatprep.subr.mxu0 0.0
      %3490 = vmatpush1.msra.mxu0 0.0
      %3491 = vmatprep.mubr.f32.mxu0 %v3354
      %3492 = vmatmul.mubr.f32.gmra.mrb[0].mxu0 %v3287
      %v3493 = vpop.f32.mrb[0].mxu0
      %v3494 = vadd.f32 0.0, %v3493
      %v3495 = vpop.f32.mrb[0].mxu0
      %3496 = vdwg.mxu0
      %v3497 = vxor.u32 %v3423, 2147483648
      %v3498 = vxor.u32 %v3425, 2147483648
      %v3499 = vxor.u32 %v3494, 2147483648
      %v3500 = vmul.f32 %v3497, 1.442695
      %v3501 = vpow.pop %v3500
      %v3502 = vmul.f32 %v3498, 1.442695
      %v3503 = vpow.pop %v3502
      %v3504 = vmul.f32 %v3499, 1.442695
      %v3505 = vpow.pop %v3504
      %v3506 = vadd.f32 %v3501, 1.0
      %v3507 = vadd.f32 %v3503, 1.0
      %v3508 = vadd.f32 %v3505, 1.0
      %v3509 = vrcp.pop %v3506
      %v3510 = vmul.f32 1.0, %v3509
      %v3511 = vrcp.pop %v3507
      %v3512 = vmul.f32 1.0, %v3511
      %v3513 = vrcp.pop %v3508
      %v3514 = vmul.f32 1.0, %v3513
      %vm3515 = vcmask 1042432
      %v3516 = vsel %vm3515, %v3510, 0.0
      %v3517 = vrot.slane %v3516, 4
      %v3518 = vadd.f32 %v3516, %v3517
      %v3519 = vrot.slane %v3518, 2
      %v3520 = vadd.f32 %v3518, %v3519
      %v3521 = vrot.slane %v3520, 1
      %v3522 = vadd.f32 %v3520, %v3521
      %v3523 = vsel %vm3515, %v3512, 0.0
      %v3524 = vrot.slane %v3523, 4
      %v3525 = vadd.f32 %v3523, %v3524
      %v3526 = vrot.slane %v3525, 2
      %v3527 = vadd.f32 %v3525, %v3526
      %v3528 = vrot.slane %v3527, 1
      %v3529 = vadd.f32 %v3527, %v3528
      %v3530 = vsel %vm3515, %v3514, 0.0
      %v3531 = vrot.slane %v3530, 4
      %v3532 = vadd.f32 %v3530, %v3531
      %v3533 = vrot.slane %v3532, 2
      %v3534 = vadd.f32 %v3532, %v3533
      %v3535 = vrot.slane %v3534, 1
      %v3536 = vadd.f32 %v3534, %v3535
      %v3539 = vcombine.low %v3522, %v3529
      %v3541 = vmul.f32 %v225, %v3539
      %v3542 = vmul.f32 %v226, %v3536
      %3543 = vst [vmem:[#allocation3] sm:$0xff] 0.0
      %vm3544 = vcmask 457732
      %vm3545 = vmor %vm3544, %vm230
      %3546 = vst.msk [vmem:[#allocation3 + $0x8] sm:$0xff] %vm3545, 0.0
      %3549 = vrot.lane.b32.xlu0 %v3541, 25
      %v3550 = vpop.permute.xlu0 %3549
      %3551 = vrot.lane.b32.xlu0 %v3542, 25
      %v3552 = vpop.permute.xlu0 %3551
      %v3553 = vrot.slane %v3550, 4
      %v3554 = vrot.slane %v3552, 4
      %v3555 = vsel %vm1924, %v3553, %v3550
      %v3556 = vsel %vm230, %v3553, %v3554
      %v3557 = vsel %vm1924, %v3556, %v3552
      %vm3560 = vcmask 1043656
      %vm3561 = vcmask 1047556
      %vm3562 = vmor %vm3561, %vm3560
      %3563 = vst.msk [vmem:[#allocation3] sm:$0xff] %vm3562, %v3555
      %vm3564 = vcmask 203780
      %vm3565 = vmor %vm3564, %vm230
      %3566 = vst.msk [vmem:[#allocation3 + $0x8] sm:$0xff] %vm3565, %v3557
      %3567 = vst [vmem:[#allocation5 + $0x60] sm:$0xf0] 0.0
      %3568 = vst [vmem:[#allocation5 + $0x68] sm:$0xf0] 0.0
      %3569 = vst [vmem:[#allocation5 + $0x70] sm:$0xf0] 0.0
      %v3570 = vld [vmem:[#allocation3] sm:$0xff]
      %v3571 = vld [vmem:[#allocation3 + $0x8] sm:$0xf]
      %v3573 = vcombine.high %v3570, %v3570
      %3575 = vst [vmem:[#allocation5] sm:$0xf] %v3570
      %3576 = vst [vmem:[#allocation5 + $0x8] sm:$0xf] %v3573
      %3577 = vst [vmem:[#allocation5 + $0x10] sm:$0xf] %v3571
      %v3578 = vld [vmem:[#allocation3] sm:$0xff]
      %v3579 = vld [vmem:[#allocation3 + $0x8] sm:$0xff]
      %v3582 = vcombine.low %v3578, %v3578
      %v3583 = vcombine.low %v3579, %v3579
      %3584 = vrot.lane.b32.xlu0 %v3582, 127
      %v3585 = vpop.permute.xlu0 %3584
      %3586 = vrot.lane.b32.xlu0 %v3578, 127
      %v3587 = vpop.permute.xlu0 %3586
      %3588 = vrot.lane.b32.xlu0 %v3583, 127
      %v3589 = vpop.permute.xlu0 %3588
      %3590 = vrot.lane.b32.xlu0 %v3579, 127
      %v3591 = vpop.permute.xlu0 %3590
      %v3592 = vsel %vm371, %v3585, %v3587
      %v3593 = vsel %vm371, %v3587, %v3589
      %v3594 = vsel %vm371, %v3589, %v3591
      %3598 = vst [vmem:[#allocation5] sm:$0xf0] %v3592
      %3599 = vst [vmem:[#allocation5 + $0x8] sm:$0xf0] %v3593
      %3600 = vst [vmem:[#allocation5 + $0x10] sm:$0xf0] %v3594
      %v3601 = vld [vmem:[#allocation3] sm:$0xff]
      %v3602 = vld [vmem:[#allocation3 + $0x8] sm:$0xff]
      %v3605 = vcombine.high %v3601, %v3601
      %v3606 = vcombine.high %v3602, %v3602
      %3607 = vrot.lane.b32.xlu0 %v3601, 126
      %v3608 = vpop.permute.xlu0 %3607
      %3609 = vrot.lane.b32.xlu0 %v3605, 126
      %v3610 = vpop.permute.xlu0 %3609
      %3611 = vrot.lane.b32.xlu0 %v3602, 126
      %v3612 = vpop.permute.xlu0 %3611
      %3613 = vrot.lane.b32.xlu0 %v3606, 126
      %v3614 = vpop.permute.xlu0 %3613
      %v3615 = vsel %vm408, %v3608, %v3610
      %v3616 = vsel %vm408, %v3610, %v3612
      %v3617 = vsel %vm408, %v3612, %v3614
      %3621 = vst [vmem:[#allocation5 + $0x18] sm:$0xf] %v3615
      %3622 = vst [vmem:[#allocation5 + $0x20] sm:$0xf] %v3616
      %3623 = vst [vmem:[#allocation5 + $0x28] sm:$0xf] %v3617
      %v3624 = vld [vmem:[#allocation3] sm:$0xff]
      %v3625 = vld [vmem:[#allocation3 + $0x8] sm:$0xff]
      %v3628 = vcombine.low %v3624, %v3624
      %v3629 = vcombine.low %v3625, %v3625
      %3630 = vrot.lane.b32.xlu0 %v3628, 104
      %v3631 = vpop.permute.xlu0 %3630
      %3632 = vrot.lane.b32.xlu0 %v3624, 104
      %v3633 = vpop.permute.xlu0 %3632
      %3634 = vrot.lane.b32.xlu0 %v3629, 104
      %v3635 = vpop.permute.xlu0 %3634
      %3636 = vrot.lane.b32.xlu0 %v3625, 104
      %v3637 = vpop.permute.xlu0 %3636
      %v3638 = vsel %vm667, %v3631, %v3633
      %v3639 = vsel %vm667, %v3633, %v3635
      %v3640 = vsel %vm667, %v3635, %v3637
      %3644 = vst [vmem:[#allocation5 + $0x18] sm:$0xf0] %v3638
      %3645 = vst [vmem:[#allocation5 + $0x20] sm:$0xf0] %v3639
      %3646 = vst [vmem:[#allocation5 + $0x28] sm:$0xf0] %v3640
      %v3647 = vld [vmem:[#allocation3] sm:$0xff]
      %v3648 = vld [vmem:[#allocation3 + $0x8] sm:$0xff]
      %v3651 = vcombine.high %v3647, %v3647
      %v3652 = vcombine.high %v3648, %v3648
      %3653 = vrot.lane.b32.xlu0 %v3647, 103
      %v3654 = vpop.permute.xlu0 %3653
      %3655 = vrot.lane.b32.xlu0 %v3651, 103
      %v3656 = vpop.permute.xlu0 %3655
      %3657 = vrot.lane.b32.xlu0 %v3648, 103
      %v3658 = vpop.permute.xlu0 %3657
      %3659 = vrot.lane.b32.xlu0 %v3652, 103
      %v3660 = vpop.permute.xlu0 %3659
      %v3661 = vsel %vm704, %v3654, %v3656
      %v3662 = vsel %vm704, %v3656, %v3658
      %v3663 = vsel %vm704, %v3658, %v3660
      %3667 = vst [vmem:[#allocation5 + $0x30] sm:$0xf] %v3661
      %3668 = vst [vmem:[#allocation5 + $0x38] sm:$0xf] %v3662
      %3669 = vst [vmem:[#allocation5 + $0x40] sm:$0xf] %v3663
      %v3670 = vld [vmem:[#allocation3] sm:$0xff]
      %v3671 = vld [vmem:[#allocation3 + $0x8] sm:$0xff]
      %v3674 = vcombine.low %v3670, %v3670
      %v3675 = vcombine.low %v3671, %v3671
      %3676 = vrot.lane.b32.xlu0 %v3674, 102
      %v3677 = vpop.permute.xlu0 %3676
      %3678 = vrot.lane.b32.xlu0 %v3670, 102
      %v3679 = vpop.permute.xlu0 %3678
      %3680 = vrot.lane.b32.xlu0 %v3675, 102
      %v3681 = vpop.permute.xlu0 %3680
      %3682 = vrot.lane.b32.xlu0 %v3671, 102
      %v3683 = vpop.permute.xlu0 %3682
      %v3684 = vsel %vm741, %v3677, %v3679
      %v3685 = vsel %vm741, %v3679, %v3681
      %v3686 = vsel %vm741, %v3681, %v3683
      %3690 = vst [vmem:[#allocation5 + $0x30] sm:$0xf0] %v3684
      %3691 = vst [vmem:[#allocation5 + $0x38] sm:$0xf0] %v3685
      %3692 = vst [vmem:[#allocation5 + $0x40] sm:$0xf0] %v3686
      %v3693 = vld [vmem:[#allocation3] sm:$0xff]
      %v3694 = vld [vmem:[#allocation3 + $0x8] sm:$0xff]
      %v3697 = vcombine.high %v3693, %v3693
      %v3698 = vcombine.high %v3694, %v3694
      %3699 = vrot.lane.b32.xlu0 %v3693, 80
      %v3700 = vpop.permute.xlu0 %3699
      %3701 = vrot.lane.b32.xlu0 %v3697, 80
      %v3702 = vpop.permute.xlu0 %3701
      %3703 = vrot.lane.b32.xlu0 %v3694, 80
      %v3704 = vpop.permute.xlu0 %3703
      %3705 = vrot.lane.b32.xlu0 %v3698, 80
      %v3706 = vpop.permute.xlu0 %3705
      %v3707 = vsel %vm999, %v3700, %v3702
      %v3708 = vsel %vm999, %v3702, %v3704
      %v3709 = vsel %vm999, %v3704, %v3706
      %3713 = vst [vmem:[#allocation5 + $0x48] sm:$0xf] %v3707
      %3714 = vst [vmem:[#allocation5 + $0x50] sm:$0xf] %v3708
      %3715 = vst [vmem:[#allocation5 + $0x58] sm:$0xf] %v3709
      %v3716 = vld [vmem:[#allocation3] sm:$0xff]
      %v3717 = vld [vmem:[#allocation3 + $0x8] sm:$0xff]
      %v3720 = vcombine.low %v3716, %v3716
      %v3721 = vcombine.low %v3717, %v3717
      %3722 = vrot.lane.b32.xlu0 %v3720, 79
      %v3723 = vpop.permute.xlu0 %3722
      %3724 = vrot.lane.b32.xlu0 %v3716, 79
      %v3725 = vpop.permute.xlu0 %3724
      %3726 = vrot.lane.b32.xlu0 %v3721, 79
      %v3727 = vpop.permute.xlu0 %3726
      %3728 = vrot.lane.b32.xlu0 %v3717, 79
      %v3729 = vpop.permute.xlu0 %3728
      %v3730 = vsel %vm1036, %v3723, %v3725
      %v3731 = vsel %vm1036, %v3725, %v3727
      %v3732 = vsel %vm1036, %v3727, %v3729
      %3736 = vst [vmem:[#allocation5 + $0x48] sm:$0xf0] %v3730
      %3737 = vst [vmem:[#allocation5 + $0x50] sm:$0xf0] %v3731
      %3738 = vst [vmem:[#allocation5 + $0x58] sm:$0xf0] %v3732
      %v3739 = vld [vmem:[#allocation3] sm:$0xff]
      %v3740 = vld [vmem:[#allocation3 + $0x8] sm:$0xff]
      %v3743 = vcombine.high %v3739, %v3739
      %v3744 = vcombine.high %v3740, %v3740
      %3745 = vrot.lane.b32.xlu0 %v3739, 78
      %v3746 = vpop.permute.xlu0 %3745
      %3747 = vrot.lane.b32.xlu0 %v3743, 78
      %v3748 = vpop.permute.xlu0 %3747
      %3749 = vrot.lane.b32.xlu0 %v3740, 78
      %v3750 = vpop.permute.xlu0 %3749
      %3751 = vrot.lane.b32.xlu0 %v3744, 78
      %v3752 = vpop.permute.xlu0 %3751
      %v3753 = vsel %vm1073, %v3746, %v3748
      %v3754 = vsel %vm1073, %v3748, %v3750
      %v3755 = vsel %vm1073, %v3750, %v3752
      %3759 = vst [vmem:[#allocation5 + $0x60] sm:$0xf] %v3753
      %3760 = vst [vmem:[#allocation5 + $0x68] sm:$0xf] %v3754
      %3761 = vst [vmem:[#allocation5 + $0x70] sm:$0xf] %v3755
      %v3762 = vld [vmem:[%s2] sm:$0xf]
      %v3763 = vld [vmem:[#allocation5] sm:$0xff]
      %v3764 = vld [vmem:[#allocation5 + $0x8] sm:$0xff]
      %v3765 = vld [vmem:[#allocation5 + $0x10] sm:$0xff]
      %v3766 = vld [vmem:[#allocation5 + $0x18] sm:$0xff]
      %v3767 = vld [vmem:[#allocation5 + $0x20] sm:$0xff]
      %v3768 = vld [vmem:[#allocation5 + $0x28] sm:$0xff]
      %v3769 = vld [vmem:[#allocation5 + $0x30] sm:$0xff]
      %v3770 = vld [vmem:[#allocation5 + $0x38] sm:$0xff]
      %v3771 = vld [vmem:[#allocation5 + $0x40] sm:$0xff]
      %v3772 = vld [vmem:[#allocation5 + $0x48] sm:$0xff]
      %v3773 = vld [vmem:[#allocation5 + $0x50] sm:$0xff]
      %v3774 = vld [vmem:[#allocation5 + $0x58] sm:$0xff]
      %v3775 = vld [vmem:[#allocation5 + $0x60] sm:$0xff]
      %v3776 = vld [vmem:[#allocation5 + $0x68] sm:$0xff]
      %v3777 = vld [vmem:[#allocation5 + $0x70] sm:$0xff]
      %v3779 = vsel %vm3353, %v3762, 0
      %3781 = vmatprep.subr.mxu0 %v3764
      %3782 = vmatpush1.msra.mxu0 %v3763
      %3783 = vmatprep.subr.mxu0 %v3767
      %3784 = vmatpush1.msra.mxu0 %v3766
      %3785 = vmatprep.subr.mxu0 %v3770
      %3786 = vmatpush1.msra.mxu0 %v3769
      %3787 = vmatprep.subr.mxu0 %v3773
      %3788 = vmatpush1.msra.mxu0 %v3772
      %3789 = vmatprep.subr.mxu0 %v3776
      %3790 = vmatpush1.msra.mxu0 %v3775
      %3791 = vmatprep.subr.mxu0 0.0
      %3792 = vmatpush1.msra.mxu0 0.0
      %3793 = vmatprep.subr.mxu0 0.0
      %3794 = vmatpush1.msra.mxu0 0.0
      %3795 = vmatprep.subr.mxu0 0.0
      %3796 = vmatpush1.msra.mxu0 0.0
      %3797 = vmatprep.subr.mxu0 0.0
      %3798 = vmatpush1.msra.mxu0 0.0
      %3799 = vmatprep.subr.mxu0 0.0
      %3800 = vmatpush1.msra.mxu0 0.0
      %3801 = vmatprep.subr.mxu0 0.0
      %3802 = vmatpush1.msra.mxu0 0.0
      %3803 = vmatprep.subr.mxu0 0.0
      %3804 = vmatpush1.msra.mxu0 0.0
      %3805 = vmatprep.subr.mxu0 0.0
      %3806 = vmatpush1.msra.mxu0 0.0
      %3807 = vmatprep.subr.mxu0 0.0
      %3808 = vmatpush1.msra.mxu0 0.0
      %3809 = vmatprep.subr.mxu0 0.0
      %3810 = vmatpush1.msra.mxu0 0.0
      %3811 = vmatprep.subr.mxu0 0.0
      %3812 = vmatpush1.msra.mxu0 0.0
      %3813 = vmatprep.subr.mxu0 0.0
      %3814 = vmatpush1.msra.mxu0 0.0
      %3815 = vmatprep.subr.mxu0 0.0
      %3816 = vmatpush1.msra.mxu0 0.0
      %3817 = vmatprep.subr.mxu0 0.0
      %3818 = vmatpush1.msra.mxu0 0.0
      %3819 = vmatprep.subr.mxu0 0.0
      %3820 = vmatpush1.msra.mxu0 0.0
      %3821 = vmatprep.subr.mxu0 0.0
      %3822 = vmatpush1.msra.mxu0 0.0
      %3823 = vmatprep.subr.mxu0 0.0
      %3824 = vmatpush1.msra.mxu0 0.0
      %3825 = vmatprep.subr.mxu0 0.0
      %3826 = vmatpush1.msra.mxu0 0.0
      %3827 = vmatprep.subr.mxu0 0.0
      %3828 = vmatpush1.msra.mxu0 0.0
      %3829 = vmatprep.subr.mxu0 0.0
      %3830 = vmatpush1.msra.mxu0 0.0
      %3831 = vmatprep.subr.mxu0 0.0
      %3832 = vmatpush1.msra.mxu0 0.0
      %3833 = vmatprep.subr.mxu0 0.0
      %3834 = vmatpush1.msra.mxu0 0.0
      %3835 = vmatprep.subr.mxu0 0.0
      %3836 = vmatpush1.msra.mxu0 0.0
      %3837 = vmatprep.subr.mxu0 0.0
      %3838 = vmatpush1.msra.mxu0 0.0
      %3839 = vmatprep.subr.mxu0 0.0
      %3840 = vmatpush1.msra.mxu0 0.0
      %3841 = vmatprep.subr.mxu0 0.0
      %3842 = vmatpush1.msra.mxu0 0.0
      %3843 = vmatprep.subr.mxu0 0.0
      %3844 = vmatpush1.msra.mxu0 0.0
      %3845 = vmatprep.mubr.f32.mxu0 0.0
      %3846 = vmatmul.mubr.f32.gmra.mrb[0].mxu0 %v3779
      %v3847 = vpop.f32.mrb[0].mxu0
      %v3848 = vadd.f32 0.0, %v3847
      %v3849 = vpop.f32.mrb[0].mxu0
      %v3850 = vadd.f32 0.0, %v3849
      %3851 = vdwg.mxu0
      %3852 = vmatprep.subr.mxu0 0.0
      %3853 = vmatpush1.msra.mxu0 %v3765
      %3854 = vmatprep.subr.mxu0 0.0
      %3855 = vmatpush1.msra.mxu0 %v3768
      %3856 = vmatprep.subr.mxu0 0.0
      %3857 = vmatpush1.msra.mxu0 %v3771
      %3858 = vmatprep.subr.mxu0 0.0
      %3859 = vmatpush1.msra.mxu0 %v3774
      %3860 = vmatprep.subr.mxu0 0.0
      %3861 = vmatpush1.msra.mxu0 %v3777
      %3862 = vmatprep.subr.mxu0 0.0
      %3863 = vmatpush1.msra.mxu0 0.0
      %3864 = vmatprep.subr.mxu0 0.0
      %3865 = vmatpush1.msra.mxu0 0.0
      %3866 = vmatprep.subr.mxu0 0.0
      %3867 = vmatpush1.msra.mxu0 0.0
      %3868 = vmatprep.subr.mxu0 0.0
      %3869 = vmatpush1.msra.mxu0 0.0
      %3870 = vmatprep.subr.mxu0 0.0
      %3871 = vmatpush1.msra.mxu0 0.0
      %3872 = vmatprep.subr.mxu0 0.0
      %3873 = vmatpush1.msra.mxu0 0.0
      %3874 = vmatprep.subr.mxu0 0.0
      %3875 = vmatpush1.msra.mxu0 0.0
      %3876 = vmatprep.subr.mxu0 0.0
      %3877 = vmatpush1.msra.mxu0 0.0
      %3878 = vmatprep.subr.mxu0 0.0
      %3879 = vmatpush1.msra.mxu0 0.0
      %3880 = vmatprep.subr.mxu0 0.0
      %3881 = vmatpush1.msra.mxu0 0.0
      %3882 = vmatprep.subr.mxu0 0.0
      %3883 = vmatpush1.msra.mxu0 0.0
      %3884 = vmatprep.subr.mxu0 0.0
      %3885 = vmatpush1.msra.mxu0 0.0
      %3886 = vmatprep.subr.mxu0 0.0
      %3887 = vmatpush1.msra.mxu0 0.0
      %3888 = vmatprep.subr.mxu0 0.0
      %3889 = vmatpush1.msra.mxu0 0.0
      %3890 = vmatprep.subr.mxu0 0.0
      %3891 = vmatpush1.msra.mxu0 0.0
      %3892 = vmatprep.subr.mxu0 0.0
      %3893 = vmatpush1.msra.mxu0 0.0
      %3894 = vmatprep.subr.mxu0 0.0
      %3895 = vmatpush1.msra.mxu0 0.0
      %3896 = vmatprep.subr.mxu0 0.0
      %3897 = vmatpush1.msra.mxu0 0.0
      %3898 = vmatprep.subr.mxu0 0.0
      %3899 = vmatpush1.msra.mxu0 0.0
      %3900 = vmatprep.subr.mxu0 0.0
      %3901 = vmatpush1.msra.mxu0 0.0
      %3902 = vmatprep.subr.mxu0 0.0
      %3903 = vmatpush1.msra.mxu0 0.0
      %3904 = vmatprep.subr.mxu0 0.0
      %3905 = vmatpush1.msra.mxu0 0.0
      %3906 = vmatprep.subr.mxu0 0.0
      %3907 = vmatpush1.msra.mxu0 0.0
      %3908 = vmatprep.subr.mxu0 0.0
      %3909 = vmatpush1.msra.mxu0 0.0
      %3910 = vmatprep.subr.mxu0 0.0
      %3911 = vmatpush1.msra.mxu0 0.0
      %3912 = vmatprep.subr.mxu0 0.0
      %3913 = vmatpush1.msra.mxu0 0.0
      %3914 = vmatprep.subr.mxu0 0.0
      %3915 = vmatpush1.msra.mxu0 0.0
      %3916 = vmatprep.mubr.f32.mxu0 0.0
      %3917 = vmatmul.mubr.f32.gmra.mrb[0].mxu0 %v3779
      %v3918 = vpop.f32.mrb[0].mxu0
      %v3919 = vadd.f32 0.0, %v3918
      %v3920 = vpop.f32.mrb[0].mxu0
      %3921 = vdwg.mxu0
      %v3922 = vld [vmem:[%s3] sm:$0xf]
      %3924 = vset.pattern.permute.xlu0 0
      %3925 = vperm.xlu0 %3924, %v3922
      %v3926 = vpop.permute.xlu0 %3925
      %v3928 = vmul.f32 %v3848, %v3926
      %v3929 = vmul.f32 %v3850, %v3926
      %v3930 = vmul.f32 %v3919, %v3926
      %v3931 = vld [vmem:[%s4] sm:$0xf]
      %3933 = vset.pattern.permute.xlu0 0
      %3934 = vperm.xlu0 %3933, %v3931
      %v3935 = vpop.permute.xlu0 %3934
      %v3937 = vadd.f32 %v3928, %v3935
      %v3938 = vadd.f32 %v3929, %v3935
      %v3939 = vadd.f32 %v3930, %v3935
      %v3940 = vmax.f32 %v3937, 0.0
      %v3941 = vmax.f32 %v3938, 0.0
      %v3942 = vmax.f32 %v3939, 0.0
      %v3945 = vcombine.low %v3940, %v3941
      %3947 = vst [vmem:[%s224] sm:$0xff] %v3945
      %3948 = vst [vmem:[%s224 + $0x8] sm:$0xf] %v3942
      %p3949 = scmp.lt.s32.totalorder %s16, 1
      %s3950 = scalar_select %p3949, %s16, 1
      %s3951 = smul.addr %s3950, 3
      %s3952 = smul.addr %s3951, 4
      %s3953 = scalar_lea.vmem %s5, %s3952
      // Predicated region
      $region41: #{spatial_attention.1} parent=39 // pred_check
        %p3954 = pneg %p144
      $region42: #{spatial_attention.1} parent=39 // pred_check_branch
        %3956 = sbr.rel (%p3954) target = $region44
      $region43: #{spatial_attention.1} parent=39 // pred_region
        _
      $region44: #{spatial_attention.1} parent=39 // pred_fallthru
        _
    $region40: #{spatial_attention.1} parent=5 // pred_fallthru
      _
    %p3957 = scmp.le.s32.totalorder 2, %s11
    // Predicated region
    $region45: #{spatial_attention.1} parent=5 // pred_check
      %p3958 = pneg %p3957
    $region46: #{spatial_attention.1} parent=5 // pred_check_branch
      %3960 = sbr.rel (%p3958) target = $region48
    $region47: #{spatial_attention.1} parent=5 // pred_region
      %s3961 = ssub.s32 %s11, 2
      // Predicated region
      $region49: #{spatial_attention.1} parent=47 // pred_check
        %p3962 = pneg %p150
      $region50: #{spatial_attention.1} parent=47 // pred_check_branch
        %3964 = sbr.rel (%p3962) target = $region52
      $region51: #{spatial_attention.1} parent=47 // pred_region
        %p3965 = scmp.lt.s32.totalorder %s17, 1
        %s3966 = scalar_select %p3965, %s17, 1
        %s3967 = smul.addr %s3966, 3
        %s3968 = smul.addr %s3967, 4
        %s3969 = scalar_lea.vmem %s5, %s3968
      $region52: #{spatial_attention.1} parent=47 // pred_fallthru
        _
    $region48: #{spatial_attention.1} parent=5 // pred_fallthru
      _
  $region6: #{spatial_attention.1} parent=0 // loop_footer
    %s15 = sadd.s32 1, %s11
  $region7: #{spatial_attention.1} parent=0 // loop_footer_branch
    %10 = sbr.rel target = $region3
  $region8: #{spatial_attention.1} parent=0 // loop_exit
    _

</llo_original>
